<compile_context>
chip_gen: v5e
topology: v5e:2x2
jax: 0.10.0
libtpu: 0.0.40
codegen_flags: <defaults>
</compile_context>

<pallas_src>
import functools

import jax
import jax.numpy as jnp
from jax.experimental import pallas as pl
from jax.experimental.pallas import tpu as pltpu

LOG_STD_MAX = 2.0
LOG_STD_MIN = -5.0

# Architecture constants fixed by the PyTorch module.
K1, S1, C1OUT = 8, 4, 16     # conv1: Conv2d(C, 16, kernel=8, stride=4)
K2, S2, C2OUT = 4, 2, 32     # conv2: Conv2d(16, 32, kernel=4, stride=2)
NGROUP = K2 * K2             # 16 conv2 kernel offsets (dh, dw)
HEAD_PAD = 128               # merged mean/log_std head padded to 128 lanes

MXU_DTYPE = jnp.bfloat16     # bf16 MXU path, f32 accumulation


def _dot(a, b):
    return jnp.dot(a.astype(MXU_DTYPE), b.astype(MXU_DTYPE),
                   preferred_element_type=jnp.float32)


# ------------------------------ fused kernel ---------------------------------
def _actor_kernel(patches_ref, w1_ref, b1_ref, w2_ref, b2_ref,
                  wfc_ref, bfc_ref, wfc1_ref, bfc1_ref, whead_ref, bhead_ref,
                  out_ref, y1_ref, y2f_ref, *, Bt, P, act_dim):
    CK = w1_ref.shape[0]                       # C * K1 * K1 (conv1 patch size)

    # conv1 (+ReLU): one dot per conv2 kernel offset, K = C*64; each writes its
    # 16 output channels into a column block of the lane-dense (P*Bt, 256)
    # bf16 scratch y1.  /255 is folded into w1; b1 is zero (kept for form).
    for g in range(NGROUP):
        blk = _dot(patches_ref[:, g * CK:(g + 1) * CK], w1_ref[...]) + b1_ref[...]
        y1_ref[:, g * C1OUT:(g + 1) * C1OUT] = (
            jnp.maximum(blk, 0.0).astype(MXU_DTYPE))

    # conv2 (+ReLU): single dot, the offset/group dimension lives in K = 256.
    y2 = jnp.maximum(_dot(y1_ref[...], w2_ref[...]) + b2_ref[...], 0.0)
    # y2: (P*Bt, 32) f32, rows ordered (p, b); 8-row slices are f32-tile aligned.

    # nn.Flatten: per-position row blocks -> column blocks of (Bt, P*32).
    for p in range(P):
        y2f_ref[:, p * C2OUT:(p + 1) * C2OUT] = (
            y2[p * Bt:(p + 1) * Bt, :].astype(MXU_DTYPE))

    # encoder fc + the outer F.relu from CNNActor.forward: single dot, K=P*32.
    enc = jnp.maximum(_dot(y2f_ref[...], wfc_ref[...]) + bfc_ref[...], 0.0)
    enc = enc.astype(MXU_DTYPE)                # (Bt, 256)

    # fc1 + ReLU.
    x = jnp.maximum(_dot(enc, wfc1_ref[...]) + bfc1_ref[...], 0.0)
    x = x.astype(MXU_DTYPE)                    # (Bt, 256)

    # merged mean / log_std head (zero-padded to 128 lanes, single dot).
    h = _dot(x, whead_ref[...]) + bhead_ref[...]           # (Bt, 128) f32
    squashed = LOG_STD_MIN + 0.5 * (LOG_STD_MAX - LOG_STD_MIN) * (jnp.tanh(h) + 1.0)
    col = jax.lax.broadcasted_iota(jnp.int32, h.shape, 1)
    is_log_std = jnp.logical_and(col >= act_dim, col < 2 * act_dim)
    out_ref[...] = jnp.where(is_log_std, squashed, h)      # unmasked 128-lane store


# ------------------------------ JAX wrapper -----------------------------------
def _build_patches(obs, H2, W2, Bt):
    """im2col: rows = (b_tile, p, b_in_tile), cols = (dh, dw, c, kh, kw).

    Only 16 static slices of the image (one per conv2 kernel offset): for a
    fixed (dh, dw) the conv1 patches of all conv2 output positions tile a
    contiguous region with stride 8, so slicing + reshape suffices."""
    Bp, C, _, _ = obs.shape
    P = H2 * W2
    blocks = []
    for dh in range(K2):
        for dw in range(K2):
            r0, c0 = S1 * dh, S1 * dw
            reg = obs[:, :, r0:r0 + S1 * S2 * H2, c0:c0 + S1 * S2 * W2]
            reg = reg.reshape(Bp, C, H2, S1 * S2, W2, S1 * S2)
            reg = jnp.transpose(reg, (0, 2, 4, 1, 3, 5))       # (Bp,H2,W2,C,8,8)
            blocks.append(reg.reshape(Bp, P, C * K1 * K1))
    pat = jnp.stack(blocks, axis=2)                 # (Bp, P, 16, C*64)
    pat = pat.reshape(Bp, P, NGROUP * C * K1 * K1)  # cols (g, c, kh, kw)
    nbt = Bp // Bt
    pat = pat.reshape(nbt, Bt, P, -1)
    pat = jnp.transpose(pat, (0, 2, 1, 3))          # rows (b_tile, p, b_in_tile)
    return pat.reshape(nbt * P * Bt, -1).astype(MXU_DTYPE)


@functools.partial(jax.jit, static_argnames=("act_dim", "batch_tile"))
def cnn_actor_forward(params, obs, *, act_dim, batch_tile=8):
    obs = obs.astype(jnp.float32)
    B, C, H, W = obs.shape
    H1, W1 = (H - K1) // S1 + 1, (W - K1) // S1 + 1
    H2, W2 = (H1 - K2) // S2 + 1, (W1 - K2) // S2 + 1
    P = H2 * W2
    enc_out = params["wfc"].shape[1]
    hidden = params["wfc1"].shape[1]
    assert params["wfc"].shape[0] == P * C2OUT, "params/obs shape mismatch"
    assert batch_tile % 8 == 0

    Bt = batch_tile
    Bp = ((B + Bt - 1) // Bt) * Bt
    if Bp != B:
        obs = jnp.pad(obs, ((0, Bp - B), (0, 0), (0, 0), (0, 0)))
    nbt = Bp // Bt

    patches = _build_patches(obs, H2, W2, Bt)        # (nbt*P*Bt, 16*C*64) bf16
    rows_per_tile = P * Bt
    gcols = patches.shape[1]

    weights = (params["w1"], params["b1"], params["w2"], params["b2"],
               params["wfc"], params["bfc"], params["wfc1"], params["bfc1"],
               params["whead"], params["bhead"])

    # Cost / VMEM bookkeeping.
    R = Bp * P
    flops = 2 * (R * gcols * C1OUT
                 + R * NGROUP * C1OUT * C2OUT
                 + Bp * P * C2OUT * enc_out
                 + Bp * enc_out * hidden
                 + Bp * hidden * HEAD_PAD)
    weight_bytes = sum(int(w.size) * w.dtype.itemsize for w in weights)
    patch_tile_bytes = rows_per_tile * gcols * 2
    scratch_bytes = rows_per_tile * NGROUP * C1OUT * 2 + Bt * P * C2OUT * 2
    out_tile_bytes = Bt * HEAD_PAD * 4
    needed = 2 * patch_tile_bytes + weight_bytes + scratch_bytes + 2 * out_tile_bytes
    vmem_limit = int(min(max(2 * needed, 16 << 20), 48 << 20))   # fits v7x 64 MiB

    in_specs = ([pl.BlockSpec((rows_per_tile, gcols), lambda i: (i, 0))]
                + [pl.BlockSpec(w.shape, lambda i: (0, 0)) for w in weights])

    out = pl.pallas_call(
        functools.partial(_actor_kernel, Bt=Bt, P=P, act_dim=act_dim),
        out_shape=jax.ShapeDtypeStruct((Bp, HEAD_PAD), jnp.float32),
        grid=(nbt,),
        in_specs=in_specs,
        out_specs=pl.BlockSpec((Bt, HEAD_PAD), lambda i: (i, 0)),
        scratch_shapes=[pltpu.VMEM((rows_per_tile, NGROUP * C1OUT), MXU_DTYPE),
                        pltpu.VMEM((Bt, P * C2OUT), MXU_DTYPE)],
        compiler_params=pltpu.CompilerParams(
            dimension_semantics=("parallel",),
            vmem_limit_bytes=vmem_limit),
        cost_estimate=pl.CostEstimate(flops=int(flops),
                                      transcendentals=int(Bp * HEAD_PAD),
                                      bytes_accessed=int(patches.size * 2
                                                         + weight_bytes
                                                         + Bp * HEAD_PAD * 4)),
    )(patches, *weights)

    mean = out[:B, :act_dim]
    log_std = out[:B, act_dim:2 * act_dim]
    return mean, log_std


# -------------------------- parameter construction ----------------------------
def kaiming_normal(key, shape, fan_in):
    return ((2.0 / fan_in) ** 0.5
            * jax.random.normal(key, shape, dtype=jnp.float32))


def torch_default_linear(key, in_f, out_f):
    kw, kb = jax.random.split(key)
    lim = 1.0 / (in_f ** 0.5)
    w = jax.random.uniform(kw, (in_f, out_f), minval=-lim, maxval=lim,
                           dtype=jnp.float32)
    b = jax.random.uniform(kb, (1, out_f), minval=-lim, maxval=lim,
                           dtype=jnp.float32)
    return w, b


def init_params(key, obs_shape, act_dim, enc_out=256, hidden=256):
    C, H, W = obs_shape
    H1, W1 = (H - K1) // S1 + 1, (W - K1) // S1 + 1
    H2, W2 = (H1 - K2) // S2 + 1, (W1 - K2) // S2 + 1
    P = H2 * W2
    k1, k2, k3, k4, k5, k6 = jax.random.split(key, 6)

    # conv1: kaiming weight, zero bias; rows (c, kh, kw); /255 folded in.
    w1 = kaiming_normal(k1, (C1OUT, C, K1, K1), C * K1 * K1)
    w1 = (w1.reshape(C1OUT, C * K1 * K1).T / 255.0).astype(MXU_DTYPE)
    b1 = jnp.zeros((1, C1OUT), jnp.float32)

    # conv2: kaiming weight, zero bias; rows reordered to (dh, dw, c_in) to
    # match the kernel's column-block layout of y1.
    w2t = kaiming_normal(k2, (C2OUT, C1OUT, K2, K2), C1OUT * K2 * K2)
    w2 = jnp.transpose(w2t, (2, 3, 1, 0)).reshape(NGROUP * C1OUT, C2OUT)
    w2 = w2.astype(MXU_DTYPE)
    b2 = jnp.zeros((1, C2OUT), jnp.float32)

    # encoder fc: Linear(32*P, enc_out); rows reordered from torch's NCHW
    # flatten order (c, p) to the kernel's (p, c) column-block order.
    flat = C2OUT * P
    wfct = kaiming_normal(k3, (enc_out, flat), flat)          # torch (out, in)
    wfc = jnp.transpose(wfct.reshape(enc_out, C2OUT, P), (2, 1, 0))
    wfc = wfc.reshape(P * C2OUT, enc_out).astype(MXU_DTYPE)
    bfc = jnp.zeros((1, enc_out), jnp.float32)

    # fc1 / fc_mean / fc_log_std: default torch nn.Linear init.
    wfc1, bfc1 = torch_default_linear(k4, enc_out, hidden)
    wmean, bmean = torch_default_linear(k5, hidden, act_dim)
    wls, bls = torch_default_linear(k6, hidden, act_dim)

    # merged + zero-padded (hidden, 128) head: cols [0:A)=mean, [A:2A)=log_std.
    whead = jnp.zeros((hidden, HEAD_PAD), jnp.float32)
    whead = whead.at[:, :act_dim].set(wmean)
    whead = whead.at[:, act_dim:2 * act_dim].set(wls)
    bhead = jnp.zeros((1, HEAD_PAD), jnp.float32)
    bhead = bhead.at[:, :act_dim].set(bmean[0])
    bhead = bhead.at[:, act_dim:2 * act_dim].set(bls[0])

    return dict(w1=w1, b1=b1, w2=w2, b2=b2, wfc=wfc, bfc=bfc,
                wfc1=wfc1.astype(MXU_DTYPE), bfc1=bfc1,
                whead=whead.astype(MXU_DTYPE), bhead=bhead)


# ---------------------------------- main ---------------------------------------
if __name__ == "__main__":
    key = jax.random.PRNGKey(0)
    kp, ko = jax.random.split(key)

    B, C, H, W = 2, 4, 32, 32     # stacked-frame observation (small example)
    act_dim = 3                   # CarRacing continuous action space

    params = init_params(kp, (C, H, W), act_dim)
    obs = jax.random.uniform(ko, (B, C, H, W), minval=0.0, maxval=255.0,
                             dtype=jnp.float32)

    mean, log_std = cnn_actor_forward(params, obs, act_dim=act_dim)
    jax.block_until_ready((mean, log_std))

    assert mean.shape == (B, act_dim) and mean.dtype == jnp.float32
    assert log_std.shape == (B, act_dim) and log_std.dtype == jnp.float32
    assert bool(jnp.all(jnp.isfinite(mean)))
    assert bool(jnp.all(jnp.isfinite(log_std)))
    assert bool(jnp.all(log_std >= LOG_STD_MIN - 1e-4))
    assert bool(jnp.all(log_std <= LOG_STD_MAX + 1e-4))
    print("KERNEL_OK")
</pallas_src>

<mosaic_0001>
module attributes {stable_mosaic.version = 11 : i64} {
  func.func @_actor_kernel(%arg0: i32, %arg1: memref<32x4096xbf16, #tpu.memory_space<vmem>>, %arg2: memref<256x16xbf16, #tpu.memory_space<vmem>>, %arg3: memref<1x16xf32, #tpu.memory_space<vmem>>, %arg4: memref<256x32xbf16, #tpu.memory_space<vmem>>, %arg5: memref<1x32xf32, #tpu.memory_space<vmem>>, %arg6: memref<128x256xbf16, #tpu.memory_space<vmem>>, %arg7: memref<1x256xf32, #tpu.memory_space<vmem>>, %arg8: memref<256x256xbf16, #tpu.memory_space<vmem>>, %arg9: memref<1x256xf32, #tpu.memory_space<vmem>>, %arg10: memref<256x128xbf16, #tpu.memory_space<vmem>>, %arg11: memref<1x128xf32, #tpu.memory_space<vmem>>, %arg12: memref<8x128xf32, #tpu.memory_space<vmem>>, %arg13: memref<32x256xbf16, #tpu.memory_space<vmem>>, %arg14: memref<8x128xbf16, #tpu.memory_space<vmem>>) attributes {dimension_semantics = [#tpu.dimension_semantics<parallel>], iteration_bounds = array<i64: 1>, scalar_prefetch = 0 : i64, scratch_operands = 2 : i64, tpu.core_type = #tpu.core_type<tc>, window_params = [{transform_indices = @transform_0, window_bounds = array<i64: 32, 4096>}, {pipeline_mode = #tpu.pipeline_mode<synchronous>, transform_indices = @transform_1, window_bounds = array<i64: 256, 16>}, {pipeline_mode = #tpu.pipeline_mode<synchronous>, transform_indices = @transform_2, window_bounds = array<i64: 1, 16>}, {pipeline_mode = #tpu.pipeline_mode<synchronous>, transform_indices = @transform_3, window_bounds = array<i64: 256, 32>}, {pipeline_mode = #tpu.pipeline_mode<synchronous>, transform_indices = @transform_4, window_bounds = array<i64: 1, 32>}, {pipeline_mode = #tpu.pipeline_mode<synchronous>, transform_indices = @transform_5, window_bounds = array<i64: 128, 256>}, {pipeline_mode = #tpu.pipeline_mode<synchronous>, transform_indices = @transform_6, window_bounds = array<i64: 1, 256>}, {pipeline_mode = #tpu.pipeline_mode<synchronous>, transform_indices = @transform_7, window_bounds = array<i64: 256, 256>}, {pipeline_mode = #tpu.pipeline_mode<synchronous>, transform_indices = @transform_8, window_bounds = array<i64: 1, 256>}, {pipeline_mode = #tpu.pipeline_mode<synchronous>, transform_indices = @transform_9, window_bounds = array<i64: 256, 128>}, {pipeline_mode = #tpu.pipeline_mode<synchronous>, transform_indices = @transform_10, window_bounds = array<i64: 1, 128>}, {transform_indices = @transform_11, window_bounds = array<i64: 8, 128>}]} {
    %c0 = arith.constant 0 : index
    %c0_0 = arith.constant 0 : index
    %0 = vector.load %arg1[%c0, %c0_0] : memref<32x4096xbf16, #tpu.memory_space<vmem>>, vector<32x256xbf16>
    %c0_1 = arith.constant 0 : index
    %c0_2 = arith.constant 0 : index
    %1 = vector.load %arg2[%c0_1, %c0_2] : memref<256x16xbf16, #tpu.memory_space<vmem>>, vector<256x16xbf16>
    %cst = arith.constant dense<0.000000e+00> : vector<32x16xf32>
    %2 = tpu.matmul %0, %1, %cst {dimension_numbers = #tpu.dot_dimension_numbers<[1], [0], [0], [1], [0, 0, 1, 1], [], []>} : vector<32x256xbf16>, vector<256x16xbf16>, vector<32x16xf32> -> vector<32x16xf32>
    %c0_3 = arith.constant 0 : index
    %c0_4 = arith.constant 0 : index
    %3 = vector.load %arg3[%c0_3, %c0_4] : memref<1x16xf32, #tpu.memory_space<vmem>>, vector<1x16xf32>
    %4 = vector.broadcast %3 : vector<1x16xf32> to vector<32x16xf32>
    %5 = arith.addf %2, %4 : vector<32x16xf32>
    %cst_5 = arith.constant 0.000000e+00 : f32
    %6 = vector.broadcast %cst_5 : f32 to vector<32x16xf32>
    %7 = arith.maximumf %5, %6 : vector<32x16xf32>
    %8 = arith.truncf %7 : vector<32x16xf32> to vector<32x16xbf16>
    %c0_6 = arith.constant 0 : index
    %c0_7 = arith.constant 0 : index
    %9 = vector.load %arg13[%c0_6, %c0_7] : memref<32x256xbf16, #tpu.memory_space<vmem>>, vector<32x16xbf16>
    tpu.vector_store %arg13[%c0_6, %c0_7], %8 {strides = array<i32>} : memref<32x256xbf16, #tpu.memory_space<vmem>>, vector<32x16xbf16>,
    %c0_8 = arith.constant 0 : index
    %c256 = arith.constant 256 : index
    %10 = vector.load %arg1[%c0_8, %c256] : memref<32x4096xbf16, #tpu.memory_space<vmem>>, vector<32x256xbf16>
    %c0_9 = arith.constant 0 : index
    %c0_10 = arith.constant 0 : index
    %11 = vector.load %arg2[%c0_9, %c0_10] : memref<256x16xbf16, #tpu.memory_space<vmem>>, vector<256x16xbf16>
    %cst_11 = arith.constant dense<0.000000e+00> : vector<32x16xf32>
    %12 = tpu.matmul %10, %11, %cst_11 {dimension_numbers = #tpu.dot_dimension_numbers<[1], [0], [0], [1], [0, 0, 1, 1], [], []>} : vector<32x256xbf16>, vector<256x16xbf16>, vector<32x16xf32> -> vector<32x16xf32>
    %c0_12 = arith.constant 0 : index
    %c0_13 = arith.constant 0 : index
    %13 = vector.load %arg3[%c0_12, %c0_13] : memref<1x16xf32, #tpu.memory_space<vmem>>, vector<1x16xf32>
    %14 = vector.broadcast %13 : vector<1x16xf32> to vector<32x16xf32>
    %15 = arith.addf %12, %14 : vector<32x16xf32>
    %cst_14 = arith.constant 0.000000e+00 : f32
    %16 = vector.broadcast %cst_14 : f32 to vector<32x16xf32>
    %17 = arith.maximumf %15, %16 : vector<32x16xf32>
    %18 = arith.truncf %17 : vector<32x16xf32> to vector<32x16xbf16>
    %c0_15 = arith.constant 0 : index
    %c16 = arith.constant 16 : index
    %19 = vector.load %arg13[%c0_15, %c16] : memref<32x256xbf16, #tpu.memory_space<vmem>>, vector<32x16xbf16>
    tpu.vector_store %arg13[%c0_15, %c16], %18 {strides = array<i32>} : memref<32x256xbf16, #tpu.memory_space<vmem>>, vector<32x16xbf16>,
    %c0_16 = arith.constant 0 : index
    %c512 = arith.constant 512 : index
    %20 = vector.load %arg1[%c0_16, %c512] : memref<32x4096xbf16, #tpu.memory_space<vmem>>, vector<32x256xbf16>
    %c0_17 = arith.constant 0 : index
    %c0_18 = arith.constant 0 : index
    %21 = vector.load %arg2[%c0_17, %c0_18] : memref<256x16xbf16, #tpu.memory_space<vmem>>, vector<256x16xbf16>
    %cst_19 = arith.constant dense<0.000000e+00> : vector<32x16xf32>
    %22 = tpu.matmul %20, %21, %cst_19 {dimension_numbers = #tpu.dot_dimension_numbers<[1], [0], [0], [1], [0, 0, 1, 1], [], []>} : vector<32x256xbf16>, vector<256x16xbf16>, vector<32x16xf32> -> vector<32x16xf32>
    %c0_20 = arith.constant 0 : index
    %c0_21 = arith.constant 0 : index
    %23 = vector.load %arg3[%c0_20, %c0_21] : memref<1x16xf32, #tpu.memory_space<vmem>>, vector<1x16xf32>
    %24 = vector.broadcast %23 : vector<1x16xf32> to vector<32x16xf32>
    %25 = arith.addf %22, %24 : vector<32x16xf32>
    %cst_22 = arith.constant 0.000000e+00 : f32
    %26 = vector.broadcast %cst_22 : f32 to vector<32x16xf32>
    %27 = arith.maximumf %25, %26 : vector<32x16xf32>
    %28 = arith.truncf %27 : vector<32x16xf32> to vector<32x16xbf16>
    %c0_23 = arith.constant 0 : index
    %c32 = arith.constant 32 : index
    %29 = vector.load %arg13[%c0_23, %c32] : memref<32x256xbf16, #tpu.memory_space<vmem>>, vector<32x16xbf16>
    tpu.vector_store %arg13[%c0_23, %c32], %28 {strides = array<i32>} : memref<32x256xbf16, #tpu.memory_space<vmem>>, vector<32x16xbf16>,
    %c0_24 = arith.constant 0 : index
    %c768 = arith.constant 768 : index
    %30 = vector.load %arg1[%c0_24, %c768] : memref<32x4096xbf16, #tpu.memory_space<vmem>>, vector<32x256xbf16>
    %c0_25 = arith.constant 0 : index
    %c0_26 = arith.constant 0 : index
    %31 = vector.load %arg2[%c0_25, %c0_26] : memref<256x16xbf16, #tpu.memory_space<vmem>>, vector<256x16xbf16>
    %cst_27 = arith.constant dense<0.000000e+00> : vector<32x16xf32>
    %32 = tpu.matmul %30, %31, %cst_27 {dimension_numbers = #tpu.dot_dimension_numbers<[1], [0], [0], [1], [0, 0, 1, 1], [], []>} : vector<32x256xbf16>, vector<256x16xbf16>, vector<32x16xf32> -> vector<32x16xf32>
    %c0_28 = arith.constant 0 : index
    %c0_29 = arith.constant 0 : index
    %33 = vector.load %arg3[%c0_28, %c0_29] : memref<1x16xf32, #tpu.memory_space<vmem>>, vector<1x16xf32>
    %34 = vector.broadcast %33 : vector<1x16xf32> to vector<32x16xf32>
    %35 = arith.addf %32, %34 : vector<32x16xf32>
    %cst_30 = arith.constant 0.000000e+00 : f32
    %36 = vector.broadcast %cst_30 : f32 to vector<32x16xf32>
    %37 = arith.maximumf %35, %36 : vector<32x16xf32>
    %38 = arith.truncf %37 : vector<32x16xf32> to vector<32x16xbf16>
    %c0_31 = arith.constant 0 : index
    %c48 = arith.constant 48 : index
    %39 = vector.load %arg13[%c0_31, %c48] : memref<32x256xbf16, #tpu.memory_space<vmem>>, vector<32x16xbf16>
    tpu.vector_store %arg13[%c0_31, %c48], %38 {strides = array<i32>} : memref<32x256xbf16, #tpu.memory_space<vmem>>, vector<32x16xbf16>,
    %c0_32 = arith.constant 0 : index
    %c1024 = arith.constant 1024 : index
    %40 = vector.load %arg1[%c0_32, %c1024] : memref<32x4096xbf16, #tpu.memory_space<vmem>>, vector<32x256xbf16>
    %c0_33 = arith.constant 0 : index
    %c0_34 = arith.constant 0 : index
    %41 = vector.load %arg2[%c0_33, %c0_34] : memref<256x16xbf16, #tpu.memory_space<vmem>>, vector<256x16xbf16>
    %cst_35 = arith.constant dense<0.000000e+00> : vector<32x16xf32>
    %42 = tpu.matmul %40, %41, %cst_35 {dimension_numbers = #tpu.dot_dimension_numbers<[1], [0], [0], [1], [0, 0, 1, 1], [], []>} : vector<32x256xbf16>, vector<256x16xbf16>, vector<32x16xf32> -> vector<32x16xf32>
    %c0_36 = arith.constant 0 : index
    %c0_37 = arith.constant 0 : index
    %43 = vector.load %arg3[%c0_36, %c0_37] : memref<1x16xf32, #tpu.memory_space<vmem>>, vector<1x16xf32>
    %44 = vector.broadcast %43 : vector<1x16xf32> to vector<32x16xf32>
    %45 = arith.addf %42, %44 : vector<32x16xf32>
    %cst_38 = arith.constant 0.000000e+00 : f32
    %46 = vector.broadcast %cst_38 : f32 to vector<32x16xf32>
    %47 = arith.maximumf %45, %46 : vector<32x16xf32>
    %48 = arith.truncf %47 : vector<32x16xf32> to vector<32x16xbf16>
    %c0_39 = arith.constant 0 : index
    %c64 = arith.constant 64 : index
    %49 = vector.load %arg13[%c0_39, %c64] : memref<32x256xbf16, #tpu.memory_space<vmem>>, vector<32x16xbf16>
    tpu.vector_store %arg13[%c0_39, %c64], %48 {strides = array<i32>} : memref<32x256xbf16, #tpu.memory_space<vmem>>, vector<32x16xbf16>,
    %c0_40 = arith.constant 0 : index
    %c1280 = arith.constant 1280 : index
    %50 = vector.load %arg1[%c0_40, %c1280] : memref<32x4096xbf16, #tpu.memory_space<vmem>>, vector<32x256xbf16>
    %c0_41 = arith.constant 0 : index
    %c0_42 = arith.constant 0 : index
    %51 = vector.load %arg2[%c0_41, %c0_42] : memref<256x16xbf16, #tpu.memory_space<vmem>>, vector<256x16xbf16>
    %cst_43 = arith.constant dense<0.000000e+00> : vector<32x16xf32>
    %52 = tpu.matmul %50, %51, %cst_43 {dimension_numbers = #tpu.dot_dimension_numbers<[1], [0], [0], [1], [0, 0, 1, 1], [], []>} : vector<32x256xbf16>, vector<256x16xbf16>, vector<32x16xf32> -> vector<32x16xf32>
    %c0_44 = arith.constant 0 : index
    %c0_45 = arith.constant 0 : index
    %53 = vector.load %arg3[%c0_44, %c0_45] : memref<1x16xf32, #tpu.memory_space<vmem>>, vector<1x16xf32>
    %54 = vector.broadcast %53 : vector<1x16xf32> to vector<32x16xf32>
    %55 = arith.addf %52, %54 : vector<32x16xf32>
    %cst_46 = arith.constant 0.000000e+00 : f32
    %56 = vector.broadcast %cst_46 : f32 to vector<32x16xf32>
    %57 = arith.maximumf %55, %56 : vector<32x16xf32>
    %58 = arith.truncf %57 : vector<32x16xf32> to vector<32x16xbf16>
    %c0_47 = arith.constant 0 : index
    %c80 = arith.constant 80 : index
    %59 = vector.load %arg13[%c0_47, %c80] : memref<32x256xbf16, #tpu.memory_space<vmem>>, vector<32x16xbf16>
    tpu.vector_store %arg13[%c0_47, %c80], %58 {strides = array<i32>} : memref<32x256xbf16, #tpu.memory_space<vmem>>, vector<32x16xbf16>,
    %c0_48 = arith.constant 0 : index
    %c1536 = arith.constant 1536 : index
    %60 = vector.load %arg1[%c0_48, %c1536] : memref<32x4096xbf16, #tpu.memory_space<vmem>>, vector<32x256xbf16>
    %c0_49 = arith.constant 0 : index
    %c0_50 = arith.constant 0 : index
    %61 = vector.load %arg2[%c0_49, %c0_50] : memref<256x16xbf16, #tpu.memory_space<vmem>>, vector<256x16xbf16>
    %cst_51 = arith.constant dense<0.000000e+00> : vector<32x16xf32>
    %62 = tpu.matmul %60, %61, %cst_51 {dimension_numbers = #tpu.dot_dimension_numbers<[1], [0], [0], [1], [0, 0, 1, 1], [], []>} : vector<32x256xbf16>, vector<256x16xbf16>, vector<32x16xf32> -> vector<32x16xf32>
    %c0_52 = arith.constant 0 : index
    %c0_53 = arith.constant 0 : index
    %63 = vector.load %arg3[%c0_52, %c0_53] : memref<1x16xf32, #tpu.memory_space<vmem>>, vector<1x16xf32>
    %64 = vector.broadcast %63 : vector<1x16xf32> to vector<32x16xf32>
    %65 = arith.addf %62, %64 : vector<32x16xf32>
    %cst_54 = arith.constant 0.000000e+00 : f32
    %66 = vector.broadcast %cst_54 : f32 to vector<32x16xf32>
    %67 = arith.maximumf %65, %66 : vector<32x16xf32>
    %68 = arith.truncf %67 : vector<32x16xf32> to vector<32x16xbf16>
    %c0_55 = arith.constant 0 : index
    %c96 = arith.constant 96 : index
    %69 = vector.load %arg13[%c0_55, %c96] : memref<32x256xbf16, #tpu.memory_space<vmem>>, vector<32x16xbf16>
    tpu.vector_store %arg13[%c0_55, %c96], %68 {strides = array<i32>} : memref<32x256xbf16, #tpu.memory_space<vmem>>, vector<32x16xbf16>,
    %c0_56 = arith.constant 0 : index
    %c1792 = arith.constant 1792 : index
    %70 = vector.load %arg1[%c0_56, %c1792] : memref<32x4096xbf16, #tpu.memory_space<vmem>>, vector<32x256xbf16>
    %c0_57 = arith.constant 0 : index
    %c0_58 = arith.constant 0 : index
    %71 = vector.load %arg2[%c0_57, %c0_58] : memref<256x16xbf16, #tpu.memory_space<vmem>>, vector<256x16xbf16>
    %cst_59 = arith.constant dense<0.000000e+00> : vector<32x16xf32>
    %72 = tpu.matmul %70, %71, %cst_59 {dimension_numbers = #tpu.dot_dimension_numbers<[1], [0], [0], [1], [0, 0, 1, 1], [], []>} : vector<32x256xbf16>, vector<256x16xbf16>, vector<32x16xf32> -> vector<32x16xf32>
    %c0_60 = arith.constant 0 : index
    %c0_61 = arith.constant 0 : index
    %73 = vector.load %arg3[%c0_60, %c0_61] : memref<1x16xf32, #tpu.memory_space<vmem>>, vector<1x16xf32>
    %74 = vector.broadcast %73 : vector<1x16xf32> to vector<32x16xf32>
    %75 = arith.addf %72, %74 : vector<32x16xf32>
    %cst_62 = arith.constant 0.000000e+00 : f32
    %76 = vector.broadcast %cst_62 : f32 to vector<32x16xf32>
    %77 = arith.maximumf %75, %76 : vector<32x16xf32>
    %78 = arith.truncf %77 : vector<32x16xf32> to vector<32x16xbf16>
    %c0_63 = arith.constant 0 : index
    %c112 = arith.constant 112 : index
    %79 = vector.load %arg13[%c0_63, %c112] : memref<32x256xbf16, #tpu.memory_space<vmem>>, vector<32x16xbf16>
    tpu.vector_store %arg13[%c0_63, %c112], %78 {strides = array<i32>} : memref<32x256xbf16, #tpu.memory_space<vmem>>, vector<32x16xbf16>,
    %c0_64 = arith.constant 0 : index
    %c2048 = arith.constant 2048 : index
    %80 = vector.load %arg1[%c0_64, %c2048] : memref<32x4096xbf16, #tpu.memory_space<vmem>>, vector<32x256xbf16>
    %c0_65 = arith.constant 0 : index
    %c0_66 = arith.constant 0 : index
    %81 = vector.load %arg2[%c0_65, %c0_66] : memref<256x16xbf16, #tpu.memory_space<vmem>>, vector<256x16xbf16>
    %cst_67 = arith.constant dense<0.000000e+00> : vector<32x16xf32>
    %82 = tpu.matmul %80, %81, %cst_67 {dimension_numbers = #tpu.dot_dimension_numbers<[1], [0], [0], [1], [0, 0, 1, 1], [], []>} : vector<32x256xbf16>, vector<256x16xbf16>, vector<32x16xf32> -> vector<32x16xf32>
    %c0_68 = arith.constant 0 : index
    %c0_69 = arith.constant 0 : index
    %83 = vector.load %arg3[%c0_68, %c0_69] : memref<1x16xf32, #tpu.memory_space<vmem>>, vector<1x16xf32>
    %84 = vector.broadcast %83 : vector<1x16xf32> to vector<32x16xf32>
    %85 = arith.addf %82, %84 : vector<32x16xf32>
    %cst_70 = arith.constant 0.000000e+00 : f32
    %86 = vector.broadcast %cst_70 : f32 to vector<32x16xf32>
    %87 = arith.maximumf %85, %86 : vector<32x16xf32>
    %88 = arith.truncf %87 : vector<32x16xf32> to vector<32x16xbf16>
    %c0_71 = arith.constant 0 : index
    %c128 = arith.constant 128 : index
    %89 = vector.load %arg13[%c0_71, %c128] : memref<32x256xbf16, #tpu.memory_space<vmem>>, vector<32x16xbf16>
    tpu.vector_store %arg13[%c0_71, %c128], %88 {strides = array<i32>} : memref<32x256xbf16, #tpu.memory_space<vmem>>, vector<32x16xbf16>,
    %c0_72 = arith.constant 0 : index
    %c2304 = arith.constant 2304 : index
    %90 = vector.load %arg1[%c0_72, %c2304] : memref<32x4096xbf16, #tpu.memory_space<vmem>>, vector<32x256xbf16>
    %c0_73 = arith.constant 0 : index
    %c0_74 = arith.constant 0 : index
    %91 = vector.load %arg2[%c0_73, %c0_74] : memref<256x16xbf16, #tpu.memory_space<vmem>>, vector<256x16xbf16>
    %cst_75 = arith.constant dense<0.000000e+00> : vector<32x16xf32>
    %92 = tpu.matmul %90, %91, %cst_75 {dimension_numbers = #tpu.dot_dimension_numbers<[1], [0], [0], [1], [0, 0, 1, 1], [], []>} : vector<32x256xbf16>, vector<256x16xbf16>, vector<32x16xf32> -> vector<32x16xf32>
    %c0_76 = arith.constant 0 : index
    %c0_77 = arith.constant 0 : index
    %93 = vector.load %arg3[%c0_76, %c0_77] : memref<1x16xf32, #tpu.memory_space<vmem>>, vector<1x16xf32>
    %94 = vector.broadcast %93 : vector<1x16xf32> to vector<32x16xf32>
    %95 = arith.addf %92, %94 : vector<32x16xf32>
    %cst_78 = arith.constant 0.000000e+00 : f32
    %96 = vector.broadcast %cst_78 : f32 to vector<32x16xf32>
    %97 = arith.maximumf %95, %96 : vector<32x16xf32>
    %98 = arith.truncf %97 : vector<32x16xf32> to vector<32x16xbf16>
    %c0_79 = arith.constant 0 : index
    %c144 = arith.constant 144 : index
    %99 = vector.load %arg13[%c0_79, %c144] : memref<32x256xbf16, #tpu.memory_space<vmem>>, vector<32x16xbf16>
    tpu.vector_store %arg13[%c0_79, %c144], %98 {strides = array<i32>} : memref<32x256xbf16, #tpu.memory_space<vmem>>, vector<32x16xbf16>,
    %c0_80 = arith.constant 0 : index
    %c2560 = arith.constant 2560 : index
    %100 = vector.load %arg1[%c0_80, %c2560] : memref<32x4096xbf16, #tpu.memory_space<vmem>>, vector<32x256xbf16>
    %c0_81 = arith.constant 0 : index
    %c0_82 = arith.constant 0 : index
    %101 = vector.load %arg2[%c0_81, %c0_82] : memref<256x16xbf16, #tpu.memory_space<vmem>>, vector<256x16xbf16>
    %cst_83 = arith.constant dense<0.000000e+00> : vector<32x16xf32>
    %102 = tpu.matmul %100, %101, %cst_83 {dimension_numbers = #tpu.dot_dimension_numbers<[1], [0], [0], [1], [0, 0, 1, 1], [], []>} : vector<32x256xbf16>, vector<256x16xbf16>, vector<32x16xf32> -> vector<32x16xf32>
    %c0_84 = arith.constant 0 : index
    %c0_85 = arith.constant 0 : index
    %103 = vector.load %arg3[%c0_84, %c0_85] : memref<1x16xf32, #tpu.memory_space<vmem>>, vector<1x16xf32>
    %104 = vector.broadcast %103 : vector<1x16xf32> to vector<32x16xf32>
    %105 = arith.addf %102, %104 : vector<32x16xf32>
    %cst_86 = arith.constant 0.000000e+00 : f32
    %106 = vector.broadcast %cst_86 : f32 to vector<32x16xf32>
    %107 = arith.maximumf %105, %106 : vector<32x16xf32>
    %108 = arith.truncf %107 : vector<32x16xf32> to vector<32x16xbf16>
    %c0_87 = arith.constant 0 : index
    %c160 = arith.constant 160 : index
    %109 = vector.load %arg13[%c0_87, %c160] : memref<32x256xbf16, #tpu.memory_space<vmem>>, vector<32x16xbf16>
    tpu.vector_store %arg13[%c0_87, %c160], %108 {strides = array<i32>} : memref<32x256xbf16, #tpu.memory_space<vmem>>, vector<32x16xbf16>,
    %c0_88 = arith.constant 0 : index
    %c2816 = arith.constant 2816 : index
    %110 = vector.load %arg1[%c0_88, %c2816] : memref<32x4096xbf16, #tpu.memory_space<vmem>>, vector<32x256xbf16>
    %c0_89 = arith.constant 0 : index
    %c0_90 = arith.constant 0 : index
    %111 = vector.load %arg2[%c0_89, %c0_90] : memref<256x16xbf16, #tpu.memory_space<vmem>>, vector<256x16xbf16>
    %cst_91 = arith.constant dense<0.000000e+00> : vector<32x16xf32>
    %112 = tpu.matmul %110, %111, %cst_91 {dimension_numbers = #tpu.dot_dimension_numbers<[1], [0], [0], [1], [0, 0, 1, 1], [], []>} : vector<32x256xbf16>, vector<256x16xbf16>, vector<32x16xf32> -> vector<32x16xf32>
    %c0_92 = arith.constant 0 : index
    %c0_93 = arith.constant 0 : index
    %113 = vector.load %arg3[%c0_92, %c0_93] : memref<1x16xf32, #tpu.memory_space<vmem>>, vector<1x16xf32>
    %114 = vector.broadcast %113 : vector<1x16xf32> to vector<32x16xf32>
    %115 = arith.addf %112, %114 : vector<32x16xf32>
    %cst_94 = arith.constant 0.000000e+00 : f32
    %116 = vector.broadcast %cst_94 : f32 to vector<32x16xf32>
    %117 = arith.maximumf %115, %116 : vector<32x16xf32>
    %118 = arith.truncf %117 : vector<32x16xf32> to vector<32x16xbf16>
    %c0_95 = arith.constant 0 : index
    %c176 = arith.constant 176 : index
    %119 = vector.load %arg13[%c0_95, %c176] : memref<32x256xbf16, #tpu.memory_space<vmem>>, vector<32x16xbf16>
    tpu.vector_store %arg13[%c0_95, %c176], %118 {strides = array<i32>} : memref<32x256xbf16, #tpu.memory_space<vmem>>, vector<32x16xbf16>,
    %c0_96 = arith.constant 0 : index
    %c3072 = arith.constant 3072 : index
    %120 = vector.load %arg1[%c0_96, %c3072] : memref<32x4096xbf16, #tpu.memory_space<vmem>>, vector<32x256xbf16>
    %c0_97 = arith.constant 0 : index
    %c0_98 = arith.constant 0 : index
    %121 = vector.load %arg2[%c0_97, %c0_98] : memref<256x16xbf16, #tpu.memory_space<vmem>>, vector<256x16xbf16>
    %cst_99 = arith.constant dense<0.000000e+00> : vector<32x16xf32>
    %122 = tpu.matmul %120, %121, %cst_99 {dimension_numbers = #tpu.dot_dimension_numbers<[1], [0], [0], [1], [0, 0, 1, 1], [], []>} : vector<32x256xbf16>, vector<256x16xbf16>, vector<32x16xf32> -> vector<32x16xf32>
    %c0_100 = arith.constant 0 : index
    %c0_101 = arith.constant 0 : index
    %123 = vector.load %arg3[%c0_100, %c0_101] : memref<1x16xf32, #tpu.memory_space<vmem>>, vector<1x16xf32>
    %124 = vector.broadcast %123 : vector<1x16xf32> to vector<32x16xf32>
    %125 = arith.addf %122, %124 : vector<32x16xf32>
    %cst_102 = arith.constant 0.000000e+00 : f32
    %126 = vector.broadcast %cst_102 : f32 to vector<32x16xf32>
    %127 = arith.maximumf %125, %126 : vector<32x16xf32>
    %128 = arith.truncf %127 : vector<32x16xf32> to vector<32x16xbf16>
    %c0_103 = arith.constant 0 : index
    %c192 = arith.constant 192 : index
    %129 = vector.load %arg13[%c0_103, %c192] : memref<32x256xbf16, #tpu.memory_space<vmem>>, vector<32x16xbf16>
    tpu.vector_store %arg13[%c0_103, %c192], %128 {strides = array<i32>} : memref<32x256xbf16, #tpu.memory_space<vmem>>, vector<32x16xbf16>,
    %c0_104 = arith.constant 0 : index
    %c3328 = arith.constant 3328 : index
    %130 = vector.load %arg1[%c0_104, %c3328] : memref<32x4096xbf16, #tpu.memory_space<vmem>>, vector<32x256xbf16>
    %c0_105 = arith.constant 0 : index
    %c0_106 = arith.constant 0 : index
    %131 = vector.load %arg2[%c0_105, %c0_106] : memref<256x16xbf16, #tpu.memory_space<vmem>>, vector<256x16xbf16>
    %cst_107 = arith.constant dense<0.000000e+00> : vector<32x16xf32>
    %132 = tpu.matmul %130, %131, %cst_107 {dimension_numbers = #tpu.dot_dimension_numbers<[1], [0], [0], [1], [0, 0, 1, 1], [], []>} : vector<32x256xbf16>, vector<256x16xbf16>, vector<32x16xf32> -> vector<32x16xf32>
    %c0_108 = arith.constant 0 : index
    %c0_109 = arith.constant 0 : index
    %133 = vector.load %arg3[%c0_108, %c0_109] : memref<1x16xf32, #tpu.memory_space<vmem>>, vector<1x16xf32>
    %134 = vector.broadcast %133 : vector<1x16xf32> to vector<32x16xf32>
    %135 = arith.addf %132, %134 : vector<32x16xf32>
    %cst_110 = arith.constant 0.000000e+00 : f32
    %136 = vector.broadcast %cst_110 : f32 to vector<32x16xf32>
    %137 = arith.maximumf %135, %136 : vector<32x16xf32>
    %138 = arith.truncf %137 : vector<32x16xf32> to vector<32x16xbf16>
    %c0_111 = arith.constant 0 : index
    %c208 = arith.constant 208 : index
    %139 = vector.load %arg13[%c0_111, %c208] : memref<32x256xbf16, #tpu.memory_space<vmem>>, vector<32x16xbf16>
    tpu.vector_store %arg13[%c0_111, %c208], %138 {strides = array<i32>} : memref<32x256xbf16, #tpu.memory_space<vmem>>, vector<32x16xbf16>,
    %c0_112 = arith.constant 0 : index
    %c3584 = arith.constant 3584 : index
    %140 = vector.load %arg1[%c0_112, %c3584] : memref<32x4096xbf16, #tpu.memory_space<vmem>>, vector<32x256xbf16>
    %c0_113 = arith.constant 0 : index
    %c0_114 = arith.constant 0 : index
    %141 = vector.load %arg2[%c0_113, %c0_114] : memref<256x16xbf16, #tpu.memory_space<vmem>>, vector<256x16xbf16>
    %cst_115 = arith.constant dense<0.000000e+00> : vector<32x16xf32>
    %142 = tpu.matmul %140, %141, %cst_115 {dimension_numbers = #tpu.dot_dimension_numbers<[1], [0], [0], [1], [0, 0, 1, 1], [], []>} : vector<32x256xbf16>, vector<256x16xbf16>, vector<32x16xf32> -> vector<32x16xf32>
    %c0_116 = arith.constant 0 : index
    %c0_117 = arith.constant 0 : index
    %143 = vector.load %arg3[%c0_116, %c0_117] : memref<1x16xf32, #tpu.memory_space<vmem>>, vector<1x16xf32>
    %144 = vector.broadcast %143 : vector<1x16xf32> to vector<32x16xf32>
    %145 = arith.addf %142, %144 : vector<32x16xf32>
    %cst_118 = arith.constant 0.000000e+00 : f32
    %146 = vector.broadcast %cst_118 : f32 to vector<32x16xf32>
    %147 = arith.maximumf %145, %146 : vector<32x16xf32>
    %148 = arith.truncf %147 : vector<32x16xf32> to vector<32x16xbf16>
    %c0_119 = arith.constant 0 : index
    %c224 = arith.constant 224 : index
    %149 = vector.load %arg13[%c0_119, %c224] : memref<32x256xbf16, #tpu.memory_space<vmem>>, vector<32x16xbf16>
    tpu.vector_store %arg13[%c0_119, %c224], %148 {strides = array<i32>} : memref<32x256xbf16, #tpu.memory_space<vmem>>, vector<32x16xbf16>,
    %c0_120 = arith.constant 0 : index
    %c3840 = arith.constant 3840 : index
    %150 = vector.load %arg1[%c0_120, %c3840] : memref<32x4096xbf16, #tpu.memory_space<vmem>>, vector<32x256xbf16>
    %c0_121 = arith.constant 0 : index
    %c0_122 = arith.constant 0 : index
    %151 = vector.load %arg2[%c0_121, %c0_122] : memref<256x16xbf16, #tpu.memory_space<vmem>>, vector<256x16xbf16>
    %cst_123 = arith.constant dense<0.000000e+00> : vector<32x16xf32>
    %152 = tpu.matmul %150, %151, %cst_123 {dimension_numbers = #tpu.dot_dimension_numbers<[1], [0], [0], [1], [0, 0, 1, 1], [], []>} : vector<32x256xbf16>, vector<256x16xbf16>, vector<32x16xf32> -> vector<32x16xf32>
    %c0_124 = arith.constant 0 : index
    %c0_125 = arith.constant 0 : index
    %153 = vector.load %arg3[%c0_124, %c0_125] : memref<1x16xf32, #tpu.memory_space<vmem>>, vector<1x16xf32>
    %154 = vector.broadcast %153 : vector<1x16xf32> to vector<32x16xf32>
    %155 = arith.addf %152, %154 : vector<32x16xf32>
    %cst_126 = arith.constant 0.000000e+00 : f32
    %156 = vector.broadcast %cst_126 : f32 to vector<32x16xf32>
    %157 = arith.maximumf %155, %156 : vector<32x16xf32>
    %158 = arith.truncf %157 : vector<32x16xf32> to vector<32x16xbf16>
    %c0_127 = arith.constant 0 : index
    %c240 = arith.constant 240 : index
    %159 = vector.load %arg13[%c0_127, %c240] : memref<32x256xbf16, #tpu.memory_space<vmem>>, vector<32x16xbf16>
    tpu.vector_store %arg13[%c0_127, %c240], %158 {strides = array<i32>} : memref<32x256xbf16, #tpu.memory_space<vmem>>, vector<32x16xbf16>,
    %c0_128 = arith.constant 0 : index
    %c0_129 = arith.constant 0 : index
    %160 = vector.load %arg13[%c0_128, %c0_129] : memref<32x256xbf16, #tpu.memory_space<vmem>>, vector<32x256xbf16>
    %c0_130 = arith.constant 0 : index
    %c0_131 = arith.constant 0 : index
    %161 = vector.load %arg4[%c0_130, %c0_131] : memref<256x32xbf16, #tpu.memory_space<vmem>>, vector<256x32xbf16>
    %cst_132 = arith.constant dense<0.000000e+00> : vector<32x32xf32>
    %162 = tpu.matmul %160, %161, %cst_132 {dimension_numbers = #tpu.dot_dimension_numbers<[1], [0], [0], [1], [0, 0, 1, 1], [], []>} : vector<32x256xbf16>, vector<256x32xbf16>, vector<32x32xf32> -> vector<32x32xf32>
    %c0_133 = arith.constant 0 : index
    %c0_134 = arith.constant 0 : index
    %163 = vector.load %arg5[%c0_133, %c0_134] : memref<1x32xf32, #tpu.memory_space<vmem>>, vector<1x32xf32>
    %164 = vector.broadcast %163 : vector<1x32xf32> to vector<32x32xf32>
    %165 = arith.addf %162, %164 : vector<32x32xf32>
    %cst_135 = arith.constant 0.000000e+00 : f32
    %166 = vector.broadcast %cst_135 : f32 to vector<32x32xf32>
    %167 = arith.maximumf %165, %166 : vector<32x32xf32>
    %168 = vector.extract_strided_slice %167 {offsets = [0, 0], sizes = [8, 32], strides = [1, 1]} : vector<32x32xf32> to vector<8x32xf32>
    %169 = arith.truncf %168 : vector<8x32xf32> to vector<8x32xbf16>
    %c0_136 = arith.constant 0 : index
    %c0_137 = arith.constant 0 : index
    %170 = vector.load %arg14[%c0_136, %c0_137] : memref<8x128xbf16, #tpu.memory_space<vmem>>, vector<8x32xbf16>
    tpu.vector_store %arg14[%c0_136, %c0_137], %169 {strides = array<i32>} : memref<8x128xbf16, #tpu.memory_space<vmem>>, vector<8x32xbf16>,
    %171 = vector.extract_strided_slice %167 {offsets = [8, 0], sizes = [8, 32], strides = [1, 1]} : vector<32x32xf32> to vector<8x32xf32>
    %172 = arith.truncf %171 : vector<8x32xf32> to vector<8x32xbf16>
    %c0_138 = arith.constant 0 : index
    %c32_139 = arith.constant 32 : index
    %173 = vector.load %arg14[%c0_138, %c32_139] : memref<8x128xbf16, #tpu.memory_space<vmem>>, vector<8x32xbf16>
    tpu.vector_store %arg14[%c0_138, %c32_139], %172 {strides = array<i32>} : memref<8x128xbf16, #tpu.memory_space<vmem>>, vector<8x32xbf16>,
    %174 = vector.extract_strided_slice %167 {offsets = [16, 0], sizes = [8, 32], strides = [1, 1]} : vector<32x32xf32> to vector<8x32xf32>
    %175 = arith.truncf %174 : vector<8x32xf32> to vector<8x32xbf16>
    %c0_140 = arith.constant 0 : index
    %c64_141 = arith.constant 64 : index
    %176 = vector.load %arg14[%c0_140, %c64_141] : memref<8x128xbf16, #tpu.memory_space<vmem>>, vector<8x32xbf16>
    tpu.vector_store %arg14[%c0_140, %c64_141], %175 {strides = array<i32>} : memref<8x128xbf16, #tpu.memory_space<vmem>>, vector<8x32xbf16>,
    %177 = vector.extract_strided_slice %167 {offsets = [24, 0], sizes = [8, 32], strides = [1, 1]} : vector<32x32xf32> to vector<8x32xf32>
    %178 = arith.truncf %177 : vector<8x32xf32> to vector<8x32xbf16>
    %c0_142 = arith.constant 0 : index
    %c96_143 = arith.constant 96 : index
    %179 = vector.load %arg14[%c0_142, %c96_143] : memref<8x128xbf16, #tpu.memory_space<vmem>>, vector<8x32xbf16>
    tpu.vector_store %arg14[%c0_142, %c96_143], %178 {strides = array<i32>} : memref<8x128xbf16, #tpu.memory_space<vmem>>, vector<8x32xbf16>,
    %c0_144 = arith.constant 0 : index
    %c0_145 = arith.constant 0 : index
    %180 = vector.load %arg14[%c0_144, %c0_145] : memref<8x128xbf16, #tpu.memory_space<vmem>>, vector<8x128xbf16>
    %c0_146 = arith.constant 0 : index
    %c0_147 = arith.constant 0 : index
    %181 = vector.load %arg6[%c0_146, %c0_147] : memref<128x256xbf16, #tpu.memory_space<vmem>>, vector<128x256xbf16>
    %cst_148 = arith.constant dense<0.000000e+00> : vector<8x256xf32>
    %182 = tpu.matmul %180, %181, %cst_148 {dimension_numbers = #tpu.dot_dimension_numbers<[1], [0], [0], [1], [0, 0, 1, 1], [], []>} : vector<8x128xbf16>, vector<128x256xbf16>, vector<8x256xf32> -> vector<8x256xf32>
    %c0_149 = arith.constant 0 : index
    %c0_150 = arith.constant 0 : index
    %183 = vector.load %arg7[%c0_149, %c0_150] : memref<1x256xf32, #tpu.memory_space<vmem>>, vector<1x256xf32>
    %184 = vector.broadcast %183 : vector<1x256xf32> to vector<8x256xf32>
    %185 = arith.addf %182, %184 : vector<8x256xf32>
    %cst_151 = arith.constant 0.000000e+00 : f32
    %186 = vector.broadcast %cst_151 : f32 to vector<8x256xf32>
    %187 = arith.maximumf %185, %186 : vector<8x256xf32>
    %188 = arith.truncf %187 : vector<8x256xf32> to vector<8x256xbf16>
    %c0_152 = arith.constant 0 : index
    %c0_153 = arith.constant 0 : index
    %189 = vector.load %arg8[%c0_152, %c0_153] : memref<256x256xbf16, #tpu.memory_space<vmem>>, vector<256x256xbf16>
    %cst_154 = arith.constant dense<0.000000e+00> : vector<8x256xf32>
    %190 = tpu.matmul %188, %189, %cst_154 {dimension_numbers = #tpu.dot_dimension_numbers<[1], [0], [0], [1], [0, 0, 1, 1], [], []>} : vector<8x256xbf16>, vector<256x256xbf16>, vector<8x256xf32> -> vector<8x256xf32>
    %c0_155 = arith.constant 0 : index
    %c0_156 = arith.constant 0 : index
    %191 = vector.load %arg9[%c0_155, %c0_156] : memref<1x256xf32, #tpu.memory_space<vmem>>, vector<1x256xf32>
    %192 = vector.broadcast %191 : vector<1x256xf32> to vector<8x256xf32>
    %193 = arith.addf %190, %192 : vector<8x256xf32>
    %cst_157 = arith.constant 0.000000e+00 : f32
    %194 = vector.broadcast %cst_157 : f32 to vector<8x256xf32>
    %195 = arith.maximumf %193, %194 : vector<8x256xf32>
    %196 = arith.truncf %195 : vector<8x256xf32> to vector<8x256xbf16>
    %c0_158 = arith.constant 0 : index
    %c0_159 = arith.constant 0 : index
    %197 = vector.load %arg10[%c0_158, %c0_159] : memref<256x128xbf16, #tpu.memory_space<vmem>>, vector<256x128xbf16>
    %cst_160 = arith.constant dense<0.000000e+00> : vector<8x128xf32>
    %198 = tpu.matmul %196, %197, %cst_160 {dimension_numbers = #tpu.dot_dimension_numbers<[1], [0], [0], [1], [0, 0, 1, 1], [], []>} : vector<8x256xbf16>, vector<256x128xbf16>, vector<8x128xf32> -> vector<8x128xf32>
    %c0_161 = arith.constant 0 : index
    %c0_162 = arith.constant 0 : index
    %199 = vector.load %arg11[%c0_161, %c0_162] : memref<1x128xf32, #tpu.memory_space<vmem>>, vector<1x128xf32>
    %200 = vector.broadcast %199 : vector<1x128xf32> to vector<8x128xf32>
    %201 = arith.addf %198, %200 : vector<8x128xf32>
    %202 = math.tanh %201 : vector<8x128xf32>
    %cst_163 = arith.constant 1.000000e+00 : f32
    %203 = vector.broadcast %cst_163 : f32 to vector<8x128xf32>
    %204 = arith.addf %202, %203 : vector<8x128xf32>
    %cst_164 = arith.constant 3.500000e+00 : f32
    %205 = vector.broadcast %cst_164 : f32 to vector<8x128xf32>
    %206 = arith.mulf %205, %204 : vector<8x128xf32>
    %cst_165 = arith.constant -5.000000e+00 : f32
    %207 = vector.broadcast %cst_165 : f32 to vector<8x128xf32>
    %208 = arith.addf %207, %206 : vector<8x128xf32>
    %209 = tpu.iota {dimensions = array<i32: 1>} : vector<8x128xi32>
    %c3_i32 = arith.constant 3 : i32
    %210 = vector.broadcast %c3_i32 : i32 to vector<8x128xi32>
    %211 = arith.cmpi sge, %209, %210 : vector<8x128xi32>
    %c6_i32 = arith.constant 6 : i32
    %212 = vector.broadcast %c6_i32 : i32 to vector<8x128xi32>
    %213 = arith.cmpi slt, %209, %212 : vector<8x128xi32>
    %214 = arith.andi %211, %213 : vector<8x128xi1>
    %215 = arith.select %214, %208, %201 : vector<8x128xi1>, vector<8x128xf32>
    %c0_166 = arith.constant 0 : index
    %c0_167 = arith.constant 0 : index
    %216 = vector.load %arg12[%c0_166, %c0_167] : memref<8x128xf32, #tpu.memory_space<vmem>>, vector<8x128xf32>
    tpu.vector_store %arg12[%c0_166, %c0_167], %215 {strides = array<i32>} : memref<8x128xf32, #tpu.memory_space<vmem>>, vector<8x128xf32>,
    return
  }
  func.func @transform_0(%arg0: i32) -> (i32, i32) {
    %c0_i32 = arith.constant 0 : i32
    %c0_i32_0 = arith.constant 0 : i32
    return %arg0, %c0_i32 : i32, i32
  }
  func.func @transform_1(%arg0: i32) -> (i32, i32) {
    %c0_i32 = arith.constant 0 : i32
    %c0_i32_0 = arith.constant 0 : i32
    %c0_i32_1 = arith.constant 0 : i32
    return %c0_i32, %c0_i32_0 : i32, i32
  }
  func.func @transform_2(%arg0: i32) -> (i32, i32) {
    %c0_i32 = arith.constant 0 : i32
    %c0_i32_0 = arith.constant 0 : i32
    %c0_i32_1 = arith.constant 0 : i32
    return %c0_i32, %c0_i32_0 : i32, i32
  }
  func.func @transform_3(%arg0: i32) -> (i32, i32) {
    %c0_i32 = arith.constant 0 : i32
    %c0_i32_0 = arith.constant 0 : i32
    %c0_i32_1 = arith.constant 0 : i32
    return %c0_i32, %c0_i32_0 : i32, i32
  }
  func.func @transform_4(%arg0: i32) -> (i32, i32) {
    %c0_i32 = arith.constant 0 : i32
    %c0_i32_0 = arith.constant 0 : i32
    %c0_i32_1 = arith.constant 0 : i32
    return %c0_i32, %c0_i32_0 : i32, i32
  }
  func.func @transform_5(%arg0: i32) -> (i32, i32) {
    %c0_i32 = arith.constant 0 : i32
    %c0_i32_0 = arith.constant 0 : i32
    %c0_i32_1 = arith.constant 0 : i32
    return %c0_i32, %c0_i32_0 : i32, i32
  }
  func.func @transform_6(%arg0: i32) -> (i32, i32) {
    %c0_i32 = arith.constant 0 : i32
    %c0_i32_0 = arith.constant 0 : i32
    %c0_i32_1 = arith.constant 0 : i32
    return %c0_i32, %c0_i32_0 : i32, i32
  }
  func.func @transform_7(%arg0: i32) -> (i32, i32) {
    %c0_i32 = arith.constant 0 : i32
    %c0_i32_0 = arith.constant 0 : i32
    %c0_i32_1 = arith.constant 0 : i32
    return %c0_i32, %c0_i32_0 : i32, i32
  }
  func.func @transform_8(%arg0: i32) -> (i32, i32) {
    %c0_i32 = arith.constant 0 : i32
    %c0_i32_0 = arith.constant 0 : i32
    %c0_i32_1 = arith.constant 0 : i32
    return %c0_i32, %c0_i32_0 : i32, i32
  }
  func.func @transform_9(%arg0: i32) -> (i32, i32) {
    %c0_i32 = arith.constant 0 : i32
    %c0_i32_0 = arith.constant 0 : i32
    %c0_i32_1 = arith.constant 0 : i32
    return %c0_i32, %c0_i32_0 : i32, i32
  }
  func.func @transform_10(%arg0: i32) -> (i32, i32) {
    %c0_i32 = arith.constant 0 : i32
    %c0_i32_0 = arith.constant 0 : i32
    %c0_i32_1 = arith.constant 0 : i32
    return %c0_i32, %c0_i32_0 : i32, i32
  }
  func.func @transform_11(%arg0: i32) -> (i32, i32) {
    %c0_i32 = arith.constant 0 : i32
    %c0_i32_0 = arith.constant 0 : i32
    return %arg0, %c0_i32 : i32, i32
  }
}

</mosaic_0001>

<llo_original>
// kernel: cnn_actor_forward.1
$region0: #{cnn_actor_forward.1}
  #allocation0 [shape = 'u32[]', space=smem, size = 0x4, offset = 0x4, fixed_abs, tag = 'smem constant byte address 0x4 - core index']
  #allocation1 [shape = 'u32[72,128]{1,0:T(1,128)}', space=vmem, size = 0x9000, scoped, tag = 'internal scratch']
  #allocation2 [shape = 'bf16[32,256]{1,0:T(8,128)(2,1)}', space=vmem, size = 0x4000, scoped, tag = 'scratch operand']
  #allocation3 [shape = 'bf16[8,128]{1,0:T(8,128)(2,1)}', space=vmem, size = 0x800, scoped, tag = 'scratch operand']
  %s0 = inlined_call_operand.vmem [shape: bf16[32,4096], index: 0, kind: input, shape index: {}]
  %s1 = inlined_call_operand.vmem [shape: bf16[256,16], index: 1, kind: input, shape index: {}]
  %s2 = inlined_call_operand.vmem [shape: f32[1,16], index: 2, kind: input, shape index: {}]
  %s3 = inlined_call_operand.vmem [shape: bf16[256,32], index: 3, kind: input, shape index: {}]
  %s4 = inlined_call_operand.vmem [shape: f32[1,32], index: 4, kind: input, shape index: {}]
  %s5 = inlined_call_operand.vmem [shape: bf16[128,256], index: 5, kind: input, shape index: {}]
  %s6 = inlined_call_operand.vmem [shape: f32[1,256], index: 6, kind: input, shape index: {}]
  %s7 = inlined_call_operand.vmem [shape: bf16[256,256], index: 7, kind: input, shape index: {}]
  %s8 = inlined_call_operand.vmem [shape: f32[1,256], index: 8, kind: input, shape index: {}]
  %s9 = inlined_call_operand.vmem [shape: bf16[256,128], index: 9, kind: input, shape index: {}]
  %s10 = inlined_call_operand.vmem [shape: f32[1,128], index: 10, kind: input, shape index: {}]
  %s11 = inlined_call_operand.vmem [shape: f32[8,128], index: 11, kind: output, shape index: {}]
  %s12 = sld [smem:[#allocation0]]
  $region54: #{cnn_actor_forward.1} parent=0
    _
  %s14 = ssub.s32 1, %s12
  %s15 = scalar_select 0, %s14, %s12
  // Predicated region
  $region2: #{cnn_actor_forward.1} parent=0 // pred_check
    _
  $region3: #{cnn_actor_forward.1} parent=0 // pred_check_branch
    %17 = sbr.rel (0) target = $region5
  $region4: #{cnn_actor_forward.1} parent=0 // pred_region
    _
  $region5: #{cnn_actor_forward.1} parent=0 // pred_fallthru
    _
  // Predicated region
  $region6: #{cnn_actor_forward.1} parent=0 // pred_check
    _
  $region7: #{cnn_actor_forward.1} parent=0 // pred_check_branch
    %19 = sbr.rel (0) target = $region9
  $region8: #{cnn_actor_forward.1} parent=0 // pred_region
    _
  $region9: #{cnn_actor_forward.1} parent=0 // pred_fallthru
    _
  // Predicated region
  $region10: #{cnn_actor_forward.1} parent=0 // pred_check
    _
  $region11: #{cnn_actor_forward.1} parent=0 // pred_check_branch
    %21 = sbr.rel (0) target = $region13
  $region12: #{cnn_actor_forward.1} parent=0 // pred_region
    _
  $region13: #{cnn_actor_forward.1} parent=0 // pred_fallthru
    _
  // Predicated region
  $region14: #{cnn_actor_forward.1} parent=0 // pred_check
    _
  $region15: #{cnn_actor_forward.1} parent=0 // pred_check_branch
    %23 = sbr.rel (0) target = $region17
  $region16: #{cnn_actor_forward.1} parent=0 // pred_region
    _
  $region17: #{cnn_actor_forward.1} parent=0 // pred_fallthru
    _
  // Predicated region
  $region18: #{cnn_actor_forward.1} parent=0 // pred_check
    _
  $region19: #{cnn_actor_forward.1} parent=0 // pred_check_branch
    %25 = sbr.rel (0) target = $region21
  $region20: #{cnn_actor_forward.1} parent=0 // pred_region
    _
  $region21: #{cnn_actor_forward.1} parent=0 // pred_fallthru
    _
  // Predicated region
  $region22: #{cnn_actor_forward.1} parent=0 // pred_check
    _
  $region23: #{cnn_actor_forward.1} parent=0 // pred_check_branch
    %27 = sbr.rel (0) target = $region25
  $region24: #{cnn_actor_forward.1} parent=0 // pred_region
    _
  $region25: #{cnn_actor_forward.1} parent=0 // pred_fallthru
    _
  // Predicated region
  $region26: #{cnn_actor_forward.1} parent=0 // pred_check
    _
  $region27: #{cnn_actor_forward.1} parent=0 // pred_check_branch
    %29 = sbr.rel (0) target = $region29
  $region28: #{cnn_actor_forward.1} parent=0 // pred_region
    _
  $region29: #{cnn_actor_forward.1} parent=0 // pred_fallthru
    _
  // Predicated region
  $region30: #{cnn_actor_forward.1} parent=0 // pred_check
    _
  $region31: #{cnn_actor_forward.1} parent=0 // pred_check_branch
    %31 = sbr.rel (0) target = $region33
  $region32: #{cnn_actor_forward.1} parent=0 // pred_region
    _
  $region33: #{cnn_actor_forward.1} parent=0 // pred_fallthru
    _
  // Predicated region
  $region34: #{cnn_actor_forward.1} parent=0 // pred_check
    _
  $region35: #{cnn_actor_forward.1} parent=0 // pred_check_branch
    %33 = sbr.rel (0) target = $region37
  $region36: #{cnn_actor_forward.1} parent=0 // pred_region
    _
  $region37: #{cnn_actor_forward.1} parent=0 // pred_fallthru
    _
  // Predicated region
  $region38: #{cnn_actor_forward.1} parent=0 // pred_check
    _
  $region39: #{cnn_actor_forward.1} parent=0 // pred_check_branch
    %35 = sbr.rel (0) target = $region41
  $region40: #{cnn_actor_forward.1} parent=0 // pred_region
    _
  $region41: #{cnn_actor_forward.1} parent=0 // pred_fallthru
    _
  // Predicated region
  $region42: #{cnn_actor_forward.1} parent=0 // pred_check
    _
  $region43: #{cnn_actor_forward.1} parent=0 // pred_check_branch
    %37 = sbr.rel (0) target = $region45
  $region44: #{cnn_actor_forward.1} parent=0 // pred_region
    _
  $region45: #{cnn_actor_forward.1} parent=0 // pred_fallthru
    _
  %v38 = vld [vmem:[%s0] sm:$0xff]
  %v39 = vld [vmem:[%s0 + $0x80] sm:$0xff]
  %v40 = vld [vmem:[%s0 + $0x100] sm:$0xff]
  %v41 = vld [vmem:[%s0 + $0x180] sm:$0xff]
  %v42 = vld [vmem:[%s1] sm:$0xf]
  %v43 = vld [vmem:[%s1 + $0x4] sm:$0xf]
  %v44 = vld [vmem:[%s1 + $0x8] sm:$0xf]
  %v45 = vld [vmem:[%s1 + $0xc] sm:$0xf]
  %v46 = vld [vmem:[%s1 + $0x10] sm:$0xf]
  %v47 = vld [vmem:[%s1 + $0x14] sm:$0xf]
  %v48 = vld [vmem:[%s1 + $0x18] sm:$0xf]
  %v49 = vld [vmem:[%s1 + $0x1c] sm:$0xf]
  %v50 = vld [vmem:[%s1 + $0x20] sm:$0xf]
  %v51 = vld [vmem:[%s1 + $0x24] sm:$0xf]
  %v52 = vld [vmem:[%s1 + $0x28] sm:$0xf]
  %v53 = vld [vmem:[%s1 + $0x2c] sm:$0xf]
  %v54 = vld [vmem:[%s1 + $0x30] sm:$0xf]
  %v55 = vld [vmem:[%s1 + $0x34] sm:$0xf]
  %v56 = vld [vmem:[%s1 + $0x38] sm:$0xf]
  %v57 = vld [vmem:[%s1 + $0x3c] sm:$0xf]
  %v58 = vld [vmem:[%s1 + $0x40] sm:$0xf]
  %v59 = vld [vmem:[%s1 + $0x44] sm:$0xf]
  %v60 = vld [vmem:[%s1 + $0x48] sm:$0xf]
  %v61 = vld [vmem:[%s1 + $0x4c] sm:$0xf]
  %v62 = vld [vmem:[%s1 + $0x50] sm:$0xf]
  %v63 = vld [vmem:[%s1 + $0x54] sm:$0xf]
  %v64 = vld [vmem:[%s1 + $0x58] sm:$0xf]
  %v65 = vld [vmem:[%s1 + $0x5c] sm:$0xf]
  %v66 = vld [vmem:[%s1 + $0x60] sm:$0xf]
  %v67 = vld [vmem:[%s1 + $0x64] sm:$0xf]
  %v68 = vld [vmem:[%s1 + $0x68] sm:$0xf]
  %v69 = vld [vmem:[%s1 + $0x6c] sm:$0xf]
  %v70 = vld [vmem:[%s1 + $0x70] sm:$0xf]
  %v71 = vld [vmem:[%s1 + $0x74] sm:$0xf]
  %v72 = vld [vmem:[%s1 + $0x78] sm:$0xf]
  %v73 = vld [vmem:[%s1 + $0x7c] sm:$0xf]
  %v74 = vld [vmem:[%s2] sm:$0x1]
  %v76 = vperm.slane %v74, 0
  %v82 = vunpack.c.l.b16 %v38
  %v83 = vunpack.c.h.b16 %v38
  %v84 = vunpack.c.l.b16 %v39
  %v85 = vunpack.c.h.b16 %v39
  %v86 = vunpack.c.l.b16 %v40
  %v87 = vunpack.c.h.b16 %v40
  %v88 = vunpack.c.l.b16 %v41
  %v89 = vunpack.c.h.b16 %v41
  %v90 = vpack.c.b16 %v84, %v82
  %v91 = vpack.c.b16 %v85, %v83
  %v92 = vpack.c.b16 %v88, %v86
  %v93 = vpack.c.b16 %v89, %v87
  %v130 = vunpack.c.l.b16 %v42
  %v131 = vunpack.c.l.b16 %v43
  %v132 = vunpack.c.l.b16 %v44
  %v133 = vunpack.c.l.b16 %v45
  %v134 = vunpack.c.l.b16 %v46
  %v135 = vunpack.c.l.b16 %v47
  %v136 = vunpack.c.l.b16 %v48
  %v137 = vunpack.c.l.b16 %v49
  %v138 = vunpack.c.l.b16 %v50
  %v139 = vunpack.c.l.b16 %v51
  %v140 = vunpack.c.l.b16 %v52
  %v141 = vunpack.c.l.b16 %v53
  %v142 = vunpack.c.l.b16 %v54
  %v143 = vunpack.c.l.b16 %v55
  %v144 = vunpack.c.l.b16 %v56
  %v145 = vunpack.c.l.b16 %v57
  %v146 = vunpack.c.l.b16 %v58
  %v147 = vunpack.c.l.b16 %v59
  %v148 = vunpack.c.l.b16 %v60
  %v149 = vunpack.c.l.b16 %v61
  %v150 = vunpack.c.l.b16 %v62
  %v151 = vunpack.c.l.b16 %v63
  %v152 = vunpack.c.l.b16 %v64
  %v153 = vunpack.c.l.b16 %v65
  %v154 = vunpack.c.l.b16 %v66
  %v155 = vunpack.c.l.b16 %v67
  %v156 = vunpack.c.l.b16 %v68
  %v157 = vunpack.c.l.b16 %v69
  %v158 = vunpack.c.l.b16 %v70
  %v159 = vunpack.c.l.b16 %v71
  %v160 = vunpack.c.l.b16 %v72
  %v161 = vunpack.c.l.b16 %v73
  %v162 = vpack.c.b16 %v131, %v130
  %v163 = vpack.c.b16 %v133, %v132
  %v164 = vpack.c.b16 %v135, %v134
  %v165 = vpack.c.b16 %v137, %v136
  %v166 = vpack.c.b16 %v139, %v138
  %v167 = vpack.c.b16 %v141, %v140
  %v168 = vpack.c.b16 %v143, %v142
  %v169 = vpack.c.b16 %v145, %v144
  %v170 = vpack.c.b16 %v147, %v146
  %v171 = vpack.c.b16 %v149, %v148
  %v172 = vpack.c.b16 %v151, %v150
  %v173 = vpack.c.b16 %v153, %v152
  %v174 = vpack.c.b16 %v155, %v154
  %v175 = vpack.c.b16 %v157, %v156
  %v176 = vpack.c.b16 %v159, %v158
  %v177 = vpack.c.b16 %v161, %v160
  %194 = vmatpush.bf16.msra.mxu0 %v169
  %195 = vmatpush.bf16.msra.mxu0 %v168
  %196 = vmatpush.bf16.msra.mxu0 %v167
  %197 = vmatpush.bf16.msra.mxu0 %v166
  %198 = vmatpush.bf16.msra.mxu0 %v165
  %199 = vmatpush.bf16.msra.mxu0 %v164
  %200 = vmatpush.bf16.msra.mxu0 %v163
  %201 = vmatpush.bf16.msra.mxu0 %v162
  %202 = vmatmul.bf16.gmra.mxu0 %v90
  %v203 = vpop.f32.mrf.mxu0
  %v204 = vadd.f32 %v76, %v203
  %v205 = vpop.f32.mrf.mxu0
  %v206 = vadd.f32 %v76, %v205
  %207 = vmatmul.bf16.gmra.mxu0 %v92
  %v208 = vpop.f32.mrf.mxu0
  %v209 = vadd.f32 %v76, %v208
  %v210 = vpop.f32.mrf.mxu0
  %v211 = vadd.f32 %v76, %v210
  %212 = vdwg.mxu0
  %213 = vmatpush.bf16.msra.mxu0 %v177
  %214 = vmatpush.bf16.msra.mxu0 %v176
  %215 = vmatpush.bf16.msra.mxu0 %v175
  %216 = vmatpush.bf16.msra.mxu0 %v174
  %217 = vmatpush.bf16.msra.mxu0 %v173
  %218 = vmatpush.bf16.msra.mxu0 %v172
  %219 = vmatpush.bf16.msra.mxu0 %v171
  %220 = vmatpush.bf16.msra.mxu0 %v170
  %221 = vmatmul.bf16.gmra.mxu0 %v91
  %v222 = vpop.f32.mrf.mxu0
  %v223 = vadd.f32 %v204, %v222
  %v224 = vpop.f32.mrf.mxu0
  %v225 = vadd.f32 %v206, %v224
  %226 = vmatmul.bf16.gmra.mxu0 %v93
  %v227 = vpop.f32.mrf.mxu0
  %v228 = vadd.f32 %v209, %v227
  %v229 = vpop.f32.mrf.mxu0
  %v230 = vadd.f32 %v211, %v229
  %231 = vdwg.mxu0
  %v232 = vmax.f32 %v223, 0.0
  %v233 = vmax.f32 %v225, 0.0
  %v234 = vmax.f32 %v228, 0.0
  %v235 = vmax.f32 %v230, 0.0
  %v236 = vpack.c.bf16 %v232, %v232
  %v237 = vpack.c.bf16 %v233, %v233
  %v238 = vpack.c.bf16 %v234, %v234
  %v239 = vpack.c.bf16 %v235, %v235
  %vm240 = vcmask 125952
  %241 = vst.msk [vmem:[#allocation2] sm:$0xf] %vm240, %v236
  %242 = vst.msk [vmem:[#allocation2 + $0x8] sm:$0xf] %vm240, %v237
  %243 = vst.msk [vmem:[#allocation2 + $0x10] sm:$0xf] %vm240, %v238
  %244 = vst.msk [vmem:[#allocation2 + $0x18] sm:$0xf] %vm240, %v239
  %v245 = vld [vmem:[%s0 + $0x8] sm:$0xff]
  %v246 = vld [vmem:[%s0 + $0x88] sm:$0xff]
  %v247 = vld [vmem:[%s0 + $0x108] sm:$0xff]
  %v248 = vld [vmem:[%s0 + $0x188] sm:$0xff]
  %v249 = vld [vmem:[%s1] sm:$0xf]
  %v250 = vld [vmem:[%s1 + $0x4] sm:$0xf]
  %v251 = vld [vmem:[%s1 + $0x8] sm:$0xf]
  %v252 = vld [vmem:[%s1 + $0xc] sm:$0xf]
  %v253 = vld [vmem:[%s1 + $0x10] sm:$0xf]
  %v254 = vld [vmem:[%s1 + $0x14] sm:$0xf]
  %v255 = vld [vmem:[%s1 + $0x18] sm:$0xf]
  %v256 = vld [vmem:[%s1 + $0x1c] sm:$0xf]
  %v257 = vld [vmem:[%s1 + $0x20] sm:$0xf]
  %v258 = vld [vmem:[%s1 + $0x24] sm:$0xf]
  %v259 = vld [vmem:[%s1 + $0x28] sm:$0xf]
  %v260 = vld [vmem:[%s1 + $0x2c] sm:$0xf]
  %v261 = vld [vmem:[%s1 + $0x30] sm:$0xf]
  %v262 = vld [vmem:[%s1 + $0x34] sm:$0xf]
  %v263 = vld [vmem:[%s1 + $0x38] sm:$0xf]
  %v264 = vld [vmem:[%s1 + $0x3c] sm:$0xf]
  %v265 = vld [vmem:[%s1 + $0x40] sm:$0xf]
  %v266 = vld [vmem:[%s1 + $0x44] sm:$0xf]
  %v267 = vld [vmem:[%s1 + $0x48] sm:$0xf]
  %v268 = vld [vmem:[%s1 + $0x4c] sm:$0xf]
  %v269 = vld [vmem:[%s1 + $0x50] sm:$0xf]
  %v270 = vld [vmem:[%s1 + $0x54] sm:$0xf]
  %v271 = vld [vmem:[%s1 + $0x58] sm:$0xf]
  %v272 = vld [vmem:[%s1 + $0x5c] sm:$0xf]
  %v273 = vld [vmem:[%s1 + $0x60] sm:$0xf]
  %v274 = vld [vmem:[%s1 + $0x64] sm:$0xf]
  %v275 = vld [vmem:[%s1 + $0x68] sm:$0xf]
  %v276 = vld [vmem:[%s1 + $0x6c] sm:$0xf]
  %v277 = vld [vmem:[%s1 + $0x70] sm:$0xf]
  %v278 = vld [vmem:[%s1 + $0x74] sm:$0xf]
  %v279 = vld [vmem:[%s1 + $0x78] sm:$0xf]
  %v280 = vld [vmem:[%s1 + $0x7c] sm:$0xf]
  %v281 = vld [vmem:[%s2] sm:$0x1]
  %v283 = vperm.slane %v281, 0
  %v289 = vunpack.c.l.b16 %v245
  %v290 = vunpack.c.h.b16 %v245
  %v291 = vunpack.c.l.b16 %v246
  %v292 = vunpack.c.h.b16 %v246
  %v293 = vunpack.c.l.b16 %v247
  %v294 = vunpack.c.h.b16 %v247
  %v295 = vunpack.c.l.b16 %v248
  %v296 = vunpack.c.h.b16 %v248
  %v297 = vpack.c.b16 %v291, %v289
  %v298 = vpack.c.b16 %v292, %v290
  %v299 = vpack.c.b16 %v295, %v293
  %v300 = vpack.c.b16 %v296, %v294
  %v337 = vunpack.c.l.b16 %v249
  %v338 = vunpack.c.l.b16 %v250
  %v339 = vunpack.c.l.b16 %v251
  %v340 = vunpack.c.l.b16 %v252
  %v341 = vunpack.c.l.b16 %v253
  %v342 = vunpack.c.l.b16 %v254
  %v343 = vunpack.c.l.b16 %v255
  %v344 = vunpack.c.l.b16 %v256
  %v345 = vunpack.c.l.b16 %v257
  %v346 = vunpack.c.l.b16 %v258
  %v347 = vunpack.c.l.b16 %v259
  %v348 = vunpack.c.l.b16 %v260
  %v349 = vunpack.c.l.b16 %v261
  %v350 = vunpack.c.l.b16 %v262
  %v351 = vunpack.c.l.b16 %v263
  %v352 = vunpack.c.l.b16 %v264
  %v353 = vunpack.c.l.b16 %v265
  %v354 = vunpack.c.l.b16 %v266
  %v355 = vunpack.c.l.b16 %v267
  %v356 = vunpack.c.l.b16 %v268
  %v357 = vunpack.c.l.b16 %v269
  %v358 = vunpack.c.l.b16 %v270
  %v359 = vunpack.c.l.b16 %v271
  %v360 = vunpack.c.l.b16 %v272
  %v361 = vunpack.c.l.b16 %v273
  %v362 = vunpack.c.l.b16 %v274
  %v363 = vunpack.c.l.b16 %v275
  %v364 = vunpack.c.l.b16 %v276
  %v365 = vunpack.c.l.b16 %v277
  %v366 = vunpack.c.l.b16 %v278
  %v367 = vunpack.c.l.b16 %v279
  %v368 = vunpack.c.l.b16 %v280
  %v369 = vpack.c.b16 %v338, %v337
  %v370 = vpack.c.b16 %v340, %v339
  %v371 = vpack.c.b16 %v342, %v341
  %v372 = vpack.c.b16 %v344, %v343
  %v373 = vpack.c.b16 %v346, %v345
  %v374 = vpack.c.b16 %v348, %v347
  %v375 = vpack.c.b16 %v350, %v349
  %v376 = vpack.c.b16 %v352, %v351
  %v377 = vpack.c.b16 %v354, %v353
  %v378 = vpack.c.b16 %v356, %v355
  %v379 = vpack.c.b16 %v358, %v357
  %v380 = vpack.c.b16 %v360, %v359
  %v381 = vpack.c.b16 %v362, %v361
  %v382 = vpack.c.b16 %v364, %v363
  %v383 = vpack.c.b16 %v366, %v365
  %v384 = vpack.c.b16 %v368, %v367
  %401 = vmatpush.bf16.msra.mxu0 %v376
  %402 = vmatpush.bf16.msra.mxu0 %v375
  %403 = vmatpush.bf16.msra.mxu0 %v374
  %404 = vmatpush.bf16.msra.mxu0 %v373
  %405 = vmatpush.bf16.msra.mxu0 %v372
  %406 = vmatpush.bf16.msra.mxu0 %v371
  %407 = vmatpush.bf16.msra.mxu0 %v370
  %408 = vmatpush.bf16.msra.mxu0 %v369
  %409 = vmatmul.bf16.gmra.mxu0 %v297
  %v410 = vpop.f32.mrf.mxu0
  %v411 = vadd.f32 %v283, %v410
  %v412 = vpop.f32.mrf.mxu0
  %v413 = vadd.f32 %v283, %v412
  %414 = vmatmul.bf16.gmra.mxu0 %v299
  %v415 = vpop.f32.mrf.mxu0
  %v416 = vadd.f32 %v283, %v415
  %v417 = vpop.f32.mrf.mxu0
  %v418 = vadd.f32 %v283, %v417
  %419 = vdwg.mxu0
  %420 = vmatpush.bf16.msra.mxu0 %v384
  %421 = vmatpush.bf16.msra.mxu0 %v383
  %422 = vmatpush.bf16.msra.mxu0 %v382
  %423 = vmatpush.bf16.msra.mxu0 %v381
  %424 = vmatpush.bf16.msra.mxu0 %v380
  %425 = vmatpush.bf16.msra.mxu0 %v379
  %426 = vmatpush.bf16.msra.mxu0 %v378
  %427 = vmatpush.bf16.msra.mxu0 %v377
  %428 = vmatmul.bf16.gmra.mxu0 %v298
  %v429 = vpop.f32.mrf.mxu0
  %v430 = vadd.f32 %v411, %v429
  %v431 = vpop.f32.mrf.mxu0
  %v432 = vadd.f32 %v413, %v431
  %433 = vmatmul.bf16.gmra.mxu0 %v300
  %v434 = vpop.f32.mrf.mxu0
  %v435 = vadd.f32 %v416, %v434
  %v436 = vpop.f32.mrf.mxu0
  %v437 = vadd.f32 %v418, %v436
  %438 = vdwg.mxu0
  %v439 = vmax.f32 %v430, 0.0
  %v440 = vmax.f32 %v432, 0.0
  %v441 = vmax.f32 %v435, 0.0
  %v442 = vmax.f32 %v437, 0.0
  %v443 = vpack.c.bf16 %v439, %v439
  %v444 = vpack.c.bf16 %v440, %v440
  %v445 = vpack.c.bf16 %v441, %v441
  %v446 = vpack.c.bf16 %v442, %v442
  %451 = vrot.lane.b32.xlu0 %v443, 16
  %v452 = vpop.permute.xlu0 %451
  %453 = vrot.lane.b32.xlu0 %v444, 16
  %v454 = vpop.permute.xlu0 %453
  %455 = vrot.lane.b32.xlu0 %v445, 16
  %v456 = vpop.permute.xlu0 %455
  %457 = vrot.lane.b32.xlu0 %v446, 16
  %v458 = vpop.permute.xlu0 %457
  %vm463 = vcmask 257152
  %464 = vst.msk [vmem:[#allocation2] sm:$0xf] %vm463, %v452
  %465 = vst.msk [vmem:[#allocation2 + $0x8] sm:$0xf] %vm463, %v454
  %466 = vst.msk [vmem:[#allocation2 + $0x10] sm:$0xf] %vm463, %v456
  %467 = vst.msk [vmem:[#allocation2 + $0x18] sm:$0xf] %vm463, %v458
  %v468 = vld [vmem:[%s0 + $0x10] sm:$0xff]
  %v469 = vld [vmem:[%s0 + $0x90] sm:$0xff]
  %v470 = vld [vmem:[%s0 + $0x110] sm:$0xff]
  %v471 = vld [vmem:[%s0 + $0x190] sm:$0xff]
  %v472 = vld [vmem:[%s1] sm:$0xf]
  %v473 = vld [vmem:[%s1 + $0x4] sm:$0xf]
  %v474 = vld [vmem:[%s1 + $0x8] sm:$0xf]
  %v475 = vld [vmem:[%s1 + $0xc] sm:$0xf]
  %v476 = vld [vmem:[%s1 + $0x10] sm:$0xf]
  %v477 = vld [vmem:[%s1 + $0x14] sm:$0xf]
  %v478 = vld [vmem:[%s1 + $0x18] sm:$0xf]
  %v479 = vld [vmem:[%s1 + $0x1c] sm:$0xf]
  %v480 = vld [vmem:[%s1 + $0x20] sm:$0xf]
  %v481 = vld [vmem:[%s1 + $0x24] sm:$0xf]
  %v482 = vld [vmem:[%s1 + $0x28] sm:$0xf]
  %v483 = vld [vmem:[%s1 + $0x2c] sm:$0xf]
  %v484 = vld [vmem:[%s1 + $0x30] sm:$0xf]
  %v485 = vld [vmem:[%s1 + $0x34] sm:$0xf]
  %v486 = vld [vmem:[%s1 + $0x38] sm:$0xf]
  %v487 = vld [vmem:[%s1 + $0x3c] sm:$0xf]
  %v488 = vld [vmem:[%s1 + $0x40] sm:$0xf]
  %v489 = vld [vmem:[%s1 + $0x44] sm:$0xf]
  %v490 = vld [vmem:[%s1 + $0x48] sm:$0xf]
  %v491 = vld [vmem:[%s1 + $0x4c] sm:$0xf]
  %v492 = vld [vmem:[%s1 + $0x50] sm:$0xf]
  %v493 = vld [vmem:[%s1 + $0x54] sm:$0xf]
  %v494 = vld [vmem:[%s1 + $0x58] sm:$0xf]
  %v495 = vld [vmem:[%s1 + $0x5c] sm:$0xf]
  %v496 = vld [vmem:[%s1 + $0x60] sm:$0xf]
  %v497 = vld [vmem:[%s1 + $0x64] sm:$0xf]
  %v498 = vld [vmem:[%s1 + $0x68] sm:$0xf]
  %v499 = vld [vmem:[%s1 + $0x6c] sm:$0xf]
  %v500 = vld [vmem:[%s1 + $0x70] sm:$0xf]
  %v501 = vld [vmem:[%s1 + $0x74] sm:$0xf]
  %v502 = vld [vmem:[%s1 + $0x78] sm:$0xf]
  %v503 = vld [vmem:[%s1 + $0x7c] sm:$0xf]
  %v504 = vld [vmem:[%s2] sm:$0x1]
  %v506 = vperm.slane %v504, 0
  %v512 = vunpack.c.l.b16 %v468
  %v513 = vunpack.c.h.b16 %v468
  %v514 = vunpack.c.l.b16 %v469
  %v515 = vunpack.c.h.b16 %v469
  %v516 = vunpack.c.l.b16 %v470
  %v517 = vunpack.c.h.b16 %v470
  %v518 = vunpack.c.l.b16 %v471
  %v519 = vunpack.c.h.b16 %v471
  %v520 = vpack.c.b16 %v514, %v512
  %v521 = vpack.c.b16 %v515, %v513
  %v522 = vpack.c.b16 %v518, %v516
  %v523 = vpack.c.b16 %v519, %v517
  %v560 = vunpack.c.l.b16 %v472
  %v561 = vunpack.c.l.b16 %v473
  %v562 = vunpack.c.l.b16 %v474
  %v563 = vunpack.c.l.b16 %v475
  %v564 = vunpack.c.l.b16 %v476
  %v565 = vunpack.c.l.b16 %v477
  %v566 = vunpack.c.l.b16 %v478
  %v567 = vunpack.c.l.b16 %v479
  %v568 = vunpack.c.l.b16 %v480
  %v569 = vunpack.c.l.b16 %v481
  %v570 = vunpack.c.l.b16 %v482
  %v571 = vunpack.c.l.b16 %v483
  %v572 = vunpack.c.l.b16 %v484
  %v573 = vunpack.c.l.b16 %v485
  %v574 = vunpack.c.l.b16 %v486
  %v575 = vunpack.c.l.b16 %v487
  %v576 = vunpack.c.l.b16 %v488
  %v577 = vunpack.c.l.b16 %v489
  %v578 = vunpack.c.l.b16 %v490
  %v579 = vunpack.c.l.b16 %v491
  %v580 = vunpack.c.l.b16 %v492
  %v581 = vunpack.c.l.b16 %v493
  %v582 = vunpack.c.l.b16 %v494
  %v583 = vunpack.c.l.b16 %v495
  %v584 = vunpack.c.l.b16 %v496
  %v585 = vunpack.c.l.b16 %v497
  %v586 = vunpack.c.l.b16 %v498
  %v587 = vunpack.c.l.b16 %v499
  %v588 = vunpack.c.l.b16 %v500
  %v589 = vunpack.c.l.b16 %v501
  %v590 = vunpack.c.l.b16 %v502
  %v591 = vunpack.c.l.b16 %v503
  %v592 = vpack.c.b16 %v561, %v560
  %v593 = vpack.c.b16 %v563, %v562
  %v594 = vpack.c.b16 %v565, %v564
  %v595 = vpack.c.b16 %v567, %v566
  %v596 = vpack.c.b16 %v569, %v568
  %v597 = vpack.c.b16 %v571, %v570
  %v598 = vpack.c.b16 %v573, %v572
  %v599 = vpack.c.b16 %v575, %v574
  %v600 = vpack.c.b16 %v577, %v576
  %v601 = vpack.c.b16 %v579, %v578
  %v602 = vpack.c.b16 %v581, %v580
  %v603 = vpack.c.b16 %v583, %v582
  %v604 = vpack.c.b16 %v585, %v584
  %v605 = vpack.c.b16 %v587, %v586
  %v606 = vpack.c.b16 %v589, %v588
  %v607 = vpack.c.b16 %v591, %v590
  %624 = vmatpush.bf16.msra.mxu0 %v599
  %625 = vmatpush.bf16.msra.mxu0 %v598
  %626 = vmatpush.bf16.msra.mxu0 %v597
  %627 = vmatpush.bf16.msra.mxu0 %v596
  %628 = vmatpush.bf16.msra.mxu0 %v595
  %629 = vmatpush.bf16.msra.mxu0 %v594
  %630 = vmatpush.bf16.msra.mxu0 %v593
  %631 = vmatpush.bf16.msra.mxu0 %v592
  %632 = vmatmul.bf16.gmra.mxu0 %v520
  %v633 = vpop.f32.mrf.mxu0
  %v634 = vadd.f32 %v506, %v633
  %v635 = vpop.f32.mrf.mxu0
  %v636 = vadd.f32 %v506, %v635
  %637 = vmatmul.bf16.gmra.mxu0 %v522
  %v638 = vpop.f32.mrf.mxu0
  %v639 = vadd.f32 %v506, %v638
  %v640 = vpop.f32.mrf.mxu0
  %v641 = vadd.f32 %v506, %v640
  %642 = vdwg.mxu0
  %643 = vmatpush.bf16.msra.mxu0 %v607
  %644 = vmatpush.bf16.msra.mxu0 %v606
  %645 = vmatpush.bf16.msra.mxu0 %v605
  %646 = vmatpush.bf16.msra.mxu0 %v604
  %647 = vmatpush.bf16.msra.mxu0 %v603
  %648 = vmatpush.bf16.msra.mxu0 %v602
  %649 = vmatpush.bf16.msra.mxu0 %v601
  %650 = vmatpush.bf16.msra.mxu0 %v600
  %651 = vmatmul.bf16.gmra.mxu0 %v521
  %v652 = vpop.f32.mrf.mxu0
  %v653 = vadd.f32 %v634, %v652
  %v654 = vpop.f32.mrf.mxu0
  %v655 = vadd.f32 %v636, %v654
  %656 = vmatmul.bf16.gmra.mxu0 %v523
  %v657 = vpop.f32.mrf.mxu0
  %v658 = vadd.f32 %v639, %v657
  %v659 = vpop.f32.mrf.mxu0
  %v660 = vadd.f32 %v641, %v659
  %661 = vdwg.mxu0
  %v662 = vmax.f32 %v653, 0.0
  %v663 = vmax.f32 %v655, 0.0
  %v664 = vmax.f32 %v658, 0.0
  %v665 = vmax.f32 %v660, 0.0
  %v666 = vpack.c.bf16 %v662, %v662
  %v667 = vpack.c.bf16 %v663, %v663
  %v668 = vpack.c.bf16 %v664, %v664
  %v669 = vpack.c.bf16 %v665, %v665
  %674 = vrot.lane.b32.xlu0 %v666, 32
  %v675 = vpop.permute.xlu0 %674
  %676 = vrot.lane.b32.xlu0 %v667, 32
  %v677 = vpop.permute.xlu0 %676
  %678 = vrot.lane.b32.xlu0 %v668, 32
  %v679 = vpop.permute.xlu0 %678
  %680 = vrot.lane.b32.xlu0 %v669, 32
  %v681 = vpop.permute.xlu0 %680
  %vm686 = vcmask 388352
  %687 = vst.msk [vmem:[#allocation2] sm:$0xf] %vm686, %v675
  %688 = vst.msk [vmem:[#allocation2 + $0x8] sm:$0xf] %vm686, %v677
  %689 = vst.msk [vmem:[#allocation2 + $0x10] sm:$0xf] %vm686, %v679
  %690 = vst.msk [vmem:[#allocation2 + $0x18] sm:$0xf] %vm686, %v681
  %v691 = vld [vmem:[%s0 + $0x18] sm:$0xff]
  %v692 = vld [vmem:[%s0 + $0x98] sm:$0xff]
  %v693 = vld [vmem:[%s0 + $0x118] sm:$0xff]
  %v694 = vld [vmem:[%s0 + $0x198] sm:$0xff]
  %v695 = vld [vmem:[%s1] sm:$0xf]
  %v696 = vld [vmem:[%s1 + $0x4] sm:$0xf]
  %v697 = vld [vmem:[%s1 + $0x8] sm:$0xf]
  %v698 = vld [vmem:[%s1 + $0xc] sm:$0xf]
  %v699 = vld [vmem:[%s1 + $0x10] sm:$0xf]
  %v700 = vld [vmem:[%s1 + $0x14] sm:$0xf]
  %v701 = vld [vmem:[%s1 + $0x18] sm:$0xf]
  %v702 = vld [vmem:[%s1 + $0x1c] sm:$0xf]
  %v703 = vld [vmem:[%s1 + $0x20] sm:$0xf]
  %v704 = vld [vmem:[%s1 + $0x24] sm:$0xf]
  %v705 = vld [vmem:[%s1 + $0x28] sm:$0xf]
  %v706 = vld [vmem:[%s1 + $0x2c] sm:$0xf]
  %v707 = vld [vmem:[%s1 + $0x30] sm:$0xf]
  %v708 = vld [vmem:[%s1 + $0x34] sm:$0xf]
  %v709 = vld [vmem:[%s1 + $0x38] sm:$0xf]
  %v710 = vld [vmem:[%s1 + $0x3c] sm:$0xf]
  %v711 = vld [vmem:[%s1 + $0x40] sm:$0xf]
  %v712 = vld [vmem:[%s1 + $0x44] sm:$0xf]
  %v713 = vld [vmem:[%s1 + $0x48] sm:$0xf]
  %v714 = vld [vmem:[%s1 + $0x4c] sm:$0xf]
  %v715 = vld [vmem:[%s1 + $0x50] sm:$0xf]
  %v716 = vld [vmem:[%s1 + $0x54] sm:$0xf]
  %v717 = vld [vmem:[%s1 + $0x58] sm:$0xf]
  %v718 = vld [vmem:[%s1 + $0x5c] sm:$0xf]
  %v719 = vld [vmem:[%s1 + $0x60] sm:$0xf]
  %v720 = vld [vmem:[%s1 + $0x64] sm:$0xf]
  %v721 = vld [vmem:[%s1 + $0x68] sm:$0xf]
  %v722 = vld [vmem:[%s1 + $0x6c] sm:$0xf]
  %v723 = vld [vmem:[%s1 + $0x70] sm:$0xf]
  %v724 = vld [vmem:[%s1 + $0x74] sm:$0xf]
  %v725 = vld [vmem:[%s1 + $0x78] sm:$0xf]
  %v726 = vld [vmem:[%s1 + $0x7c] sm:$0xf]
  %v727 = vld [vmem:[%s2] sm:$0x1]
  %v729 = vperm.slane %v727, 0
  %v735 = vunpack.c.l.b16 %v691
  %v736 = vunpack.c.h.b16 %v691
  %v737 = vunpack.c.l.b16 %v692
  %v738 = vunpack.c.h.b16 %v692
  %v739 = vunpack.c.l.b16 %v693
  %v740 = vunpack.c.h.b16 %v693
  %v741 = vunpack.c.l.b16 %v694
  %v742 = vunpack.c.h.b16 %v694
  %v743 = vpack.c.b16 %v737, %v735
  %v744 = vpack.c.b16 %v738, %v736
  %v745 = vpack.c.b16 %v741, %v739
  %v746 = vpack.c.b16 %v742, %v740
  %v783 = vunpack.c.l.b16 %v695
  %v784 = vunpack.c.l.b16 %v696
  %v785 = vunpack.c.l.b16 %v697
  %v786 = vunpack.c.l.b16 %v698
  %v787 = vunpack.c.l.b16 %v699
  %v788 = vunpack.c.l.b16 %v700
  %v789 = vunpack.c.l.b16 %v701
  %v790 = vunpack.c.l.b16 %v702
  %v791 = vunpack.c.l.b16 %v703
  %v792 = vunpack.c.l.b16 %v704
  %v793 = vunpack.c.l.b16 %v705
  %v794 = vunpack.c.l.b16 %v706
  %v795 = vunpack.c.l.b16 %v707
  %v796 = vunpack.c.l.b16 %v708
  %v797 = vunpack.c.l.b16 %v709
  %v798 = vunpack.c.l.b16 %v710
  %v799 = vunpack.c.l.b16 %v711
  %v800 = vunpack.c.l.b16 %v712
  %v801 = vunpack.c.l.b16 %v713
  %v802 = vunpack.c.l.b16 %v714
  %v803 = vunpack.c.l.b16 %v715
  %v804 = vunpack.c.l.b16 %v716
  %v805 = vunpack.c.l.b16 %v717
  %v806 = vunpack.c.l.b16 %v718
  %v807 = vunpack.c.l.b16 %v719
  %v808 = vunpack.c.l.b16 %v720
  %v809 = vunpack.c.l.b16 %v721
  %v810 = vunpack.c.l.b16 %v722
  %v811 = vunpack.c.l.b16 %v723
  %v812 = vunpack.c.l.b16 %v724
  %v813 = vunpack.c.l.b16 %v725
  %v814 = vunpack.c.l.b16 %v726
  %v815 = vpack.c.b16 %v784, %v783
  %v816 = vpack.c.b16 %v786, %v785
  %v817 = vpack.c.b16 %v788, %v787
  %v818 = vpack.c.b16 %v790, %v789
  %v819 = vpack.c.b16 %v792, %v791
  %v820 = vpack.c.b16 %v794, %v793
  %v821 = vpack.c.b16 %v796, %v795
  %v822 = vpack.c.b16 %v798, %v797
  %v823 = vpack.c.b16 %v800, %v799
  %v824 = vpack.c.b16 %v802, %v801
  %v825 = vpack.c.b16 %v804, %v803
  %v826 = vpack.c.b16 %v806, %v805
  %v827 = vpack.c.b16 %v808, %v807
  %v828 = vpack.c.b16 %v810, %v809
  %v829 = vpack.c.b16 %v812, %v811
  %v830 = vpack.c.b16 %v814, %v813
  %847 = vmatpush.bf16.msra.mxu0 %v822
  %848 = vmatpush.bf16.msra.mxu0 %v821
  %849 = vmatpush.bf16.msra.mxu0 %v820
  %850 = vmatpush.bf16.msra.mxu0 %v819
  %851 = vmatpush.bf16.msra.mxu0 %v818
  %852 = vmatpush.bf16.msra.mxu0 %v817
  %853 = vmatpush.bf16.msra.mxu0 %v816
  %854 = vmatpush.bf16.msra.mxu0 %v815
  %855 = vmatmul.bf16.gmra.mxu0 %v743
  %v856 = vpop.f32.mrf.mxu0
  %v857 = vadd.f32 %v729, %v856
  %v858 = vpop.f32.mrf.mxu0
  %v859 = vadd.f32 %v729, %v858
  %860 = vmatmul.bf16.gmra.mxu0 %v745
  %v861 = vpop.f32.mrf.mxu0
  %v862 = vadd.f32 %v729, %v861
  %v863 = vpop.f32.mrf.mxu0
  %v864 = vadd.f32 %v729, %v863
  %865 = vdwg.mxu0
  %866 = vmatpush.bf16.msra.mxu0 %v830
  %867 = vmatpush.bf16.msra.mxu0 %v829
  %868 = vmatpush.bf16.msra.mxu0 %v828
  %869 = vmatpush.bf16.msra.mxu0 %v827
  %870 = vmatpush.bf16.msra.mxu0 %v826
  %871 = vmatpush.bf16.msra.mxu0 %v825
  %872 = vmatpush.bf16.msra.mxu0 %v824
  %873 = vmatpush.bf16.msra.mxu0 %v823
  %874 = vmatmul.bf16.gmra.mxu0 %v744
  %v875 = vpop.f32.mrf.mxu0
  %v876 = vadd.f32 %v857, %v875
  %v877 = vpop.f32.mrf.mxu0
  %v878 = vadd.f32 %v859, %v877
  %879 = vmatmul.bf16.gmra.mxu0 %v746
  %v880 = vpop.f32.mrf.mxu0
  %v881 = vadd.f32 %v862, %v880
  %v882 = vpop.f32.mrf.mxu0
  %v883 = vadd.f32 %v864, %v882
  %884 = vdwg.mxu0
  %v885 = vmax.f32 %v876, 0.0
  %v886 = vmax.f32 %v878, 0.0
  %v887 = vmax.f32 %v881, 0.0
  %v888 = vmax.f32 %v883, 0.0
  %v889 = vpack.c.bf16 %v885, %v885
  %v890 = vpack.c.bf16 %v886, %v886
  %v891 = vpack.c.bf16 %v887, %v887
  %v892 = vpack.c.bf16 %v888, %v888
  %897 = vrot.lane.b32.xlu0 %v889, 48
  %v898 = vpop.permute.xlu0 %897
  %899 = vrot.lane.b32.xlu0 %v890, 48
  %v900 = vpop.permute.xlu0 %899
  %901 = vrot.lane.b32.xlu0 %v891, 48
  %v902 = vpop.permute.xlu0 %901
  %903 = vrot.lane.b32.xlu0 %v892, 48
  %v904 = vpop.permute.xlu0 %903
  %vm909 = vcmask 519552
  %910 = vst.msk [vmem:[#allocation2] sm:$0xf] %vm909, %v898
  %911 = vst.msk [vmem:[#allocation2 + $0x8] sm:$0xf] %vm909, %v900
  %912 = vst.msk [vmem:[#allocation2 + $0x10] sm:$0xf] %vm909, %v902
  %913 = vst.msk [vmem:[#allocation2 + $0x18] sm:$0xf] %vm909, %v904
  %v914 = vld [vmem:[%s0 + $0x20] sm:$0xff]
  %v915 = vld [vmem:[%s0 + $0xa0] sm:$0xff]
  %v916 = vld [vmem:[%s0 + $0x120] sm:$0xff]
  %v917 = vld [vmem:[%s0 + $0x1a0] sm:$0xff]
  %v918 = vld [vmem:[%s1] sm:$0xf]
  %v919 = vld [vmem:[%s1 + $0x4] sm:$0xf]
  %v920 = vld [vmem:[%s1 + $0x8] sm:$0xf]
  %v921 = vld [vmem:[%s1 + $0xc] sm:$0xf]
  %v922 = vld [vmem:[%s1 + $0x10] sm:$0xf]
  %v923 = vld [vmem:[%s1 + $0x14] sm:$0xf]
  %v924 = vld [vmem:[%s1 + $0x18] sm:$0xf]
  %v925 = vld [vmem:[%s1 + $0x1c] sm:$0xf]
  %v926 = vld [vmem:[%s1 + $0x20] sm:$0xf]
  %v927 = vld [vmem:[%s1 + $0x24] sm:$0xf]
  %v928 = vld [vmem:[%s1 + $0x28] sm:$0xf]
  %v929 = vld [vmem:[%s1 + $0x2c] sm:$0xf]
  %v930 = vld [vmem:[%s1 + $0x30] sm:$0xf]
  %v931 = vld [vmem:[%s1 + $0x34] sm:$0xf]
  %v932 = vld [vmem:[%s1 + $0x38] sm:$0xf]
  %v933 = vld [vmem:[%s1 + $0x3c] sm:$0xf]
  %v934 = vld [vmem:[%s1 + $0x40] sm:$0xf]
  %v935 = vld [vmem:[%s1 + $0x44] sm:$0xf]
  %v936 = vld [vmem:[%s1 + $0x48] sm:$0xf]
  %v937 = vld [vmem:[%s1 + $0x4c] sm:$0xf]
  %v938 = vld [vmem:[%s1 + $0x50] sm:$0xf]
  %v939 = vld [vmem:[%s1 + $0x54] sm:$0xf]
  %v940 = vld [vmem:[%s1 + $0x58] sm:$0xf]
  %v941 = vld [vmem:[%s1 + $0x5c] sm:$0xf]
  %v942 = vld [vmem:[%s1 + $0x60] sm:$0xf]
  %v943 = vld [vmem:[%s1 + $0x64] sm:$0xf]
  %v944 = vld [vmem:[%s1 + $0x68] sm:$0xf]
  %v945 = vld [vmem:[%s1 + $0x6c] sm:$0xf]
  %v946 = vld [vmem:[%s1 + $0x70] sm:$0xf]
  %v947 = vld [vmem:[%s1 + $0x74] sm:$0xf]
  %v948 = vld [vmem:[%s1 + $0x78] sm:$0xf]
  %v949 = vld [vmem:[%s1 + $0x7c] sm:$0xf]
  %v950 = vld [vmem:[%s2] sm:$0x1]
  %v952 = vperm.slane %v950, 0
  %v958 = vunpack.c.l.b16 %v914
  %v959 = vunpack.c.h.b16 %v914
  %v960 = vunpack.c.l.b16 %v915
  %v961 = vunpack.c.h.b16 %v915
  %v962 = vunpack.c.l.b16 %v916
  %v963 = vunpack.c.h.b16 %v916
  %v964 = vunpack.c.l.b16 %v917
  %v965 = vunpack.c.h.b16 %v917
  %v966 = vpack.c.b16 %v960, %v958
  %v967 = vpack.c.b16 %v961, %v959
  %v968 = vpack.c.b16 %v964, %v962
  %v969 = vpack.c.b16 %v965, %v963
  %v1006 = vunpack.c.l.b16 %v918
  %v1007 = vunpack.c.l.b16 %v919
  %v1008 = vunpack.c.l.b16 %v920
  %v1009 = vunpack.c.l.b16 %v921
  %v1010 = vunpack.c.l.b16 %v922
  %v1011 = vunpack.c.l.b16 %v923
  %v1012 = vunpack.c.l.b16 %v924
  %v1013 = vunpack.c.l.b16 %v925
  %v1014 = vunpack.c.l.b16 %v926
  %v1015 = vunpack.c.l.b16 %v927
  %v1016 = vunpack.c.l.b16 %v928
  %v1017 = vunpack.c.l.b16 %v929
  %v1018 = vunpack.c.l.b16 %v930
  %v1019 = vunpack.c.l.b16 %v931
  %v1020 = vunpack.c.l.b16 %v932
  %v1021 = vunpack.c.l.b16 %v933
  %v1022 = vunpack.c.l.b16 %v934
  %v1023 = vunpack.c.l.b16 %v935
  %v1024 = vunpack.c.l.b16 %v936
  %v1025 = vunpack.c.l.b16 %v937
  %v1026 = vunpack.c.l.b16 %v938
  %v1027 = vunpack.c.l.b16 %v939
  %v1028 = vunpack.c.l.b16 %v940
  %v1029 = vunpack.c.l.b16 %v941
  %v1030 = vunpack.c.l.b16 %v942
  %v1031 = vunpack.c.l.b16 %v943
  %v1032 = vunpack.c.l.b16 %v944
  %v1033 = vunpack.c.l.b16 %v945
  %v1034 = vunpack.c.l.b16 %v946
  %v1035 = vunpack.c.l.b16 %v947
  %v1036 = vunpack.c.l.b16 %v948
  %v1037 = vunpack.c.l.b16 %v949
  %v1038 = vpack.c.b16 %v1007, %v1006
  %v1039 = vpack.c.b16 %v1009, %v1008
  %v1040 = vpack.c.b16 %v1011, %v1010
  %v1041 = vpack.c.b16 %v1013, %v1012
  %v1042 = vpack.c.b16 %v1015, %v1014
  %v1043 = vpack.c.b16 %v1017, %v1016
  %v1044 = vpack.c.b16 %v1019, %v1018
  %v1045 = vpack.c.b16 %v1021, %v1020
  %v1046 = vpack.c.b16 %v1023, %v1022
  %v1047 = vpack.c.b16 %v1025, %v1024
  %v1048 = vpack.c.b16 %v1027, %v1026
  %v1049 = vpack.c.b16 %v1029, %v1028
  %v1050 = vpack.c.b16 %v1031, %v1030
  %v1051 = vpack.c.b16 %v1033, %v1032
  %v1052 = vpack.c.b16 %v1035, %v1034
  %v1053 = vpack.c.b16 %v1037, %v1036
  %1070 = vmatpush.bf16.msra.mxu0 %v1045
  %1071 = vmatpush.bf16.msra.mxu0 %v1044
  %1072 = vmatpush.bf16.msra.mxu0 %v1043
  %1073 = vmatpush.bf16.msra.mxu0 %v1042
  %1074 = vmatpush.bf16.msra.mxu0 %v1041
  %1075 = vmatpush.bf16.msra.mxu0 %v1040
  %1076 = vmatpush.bf16.msra.mxu0 %v1039
  %1077 = vmatpush.bf16.msra.mxu0 %v1038
  %1078 = vmatmul.bf16.gmra.mxu0 %v966
  %v1079 = vpop.f32.mrf.mxu0
  %v1080 = vadd.f32 %v952, %v1079
  %v1081 = vpop.f32.mrf.mxu0
  %v1082 = vadd.f32 %v952, %v1081
  %1083 = vmatmul.bf16.gmra.mxu0 %v968
  %v1084 = vpop.f32.mrf.mxu0
  %v1085 = vadd.f32 %v952, %v1084
  %v1086 = vpop.f32.mrf.mxu0
  %v1087 = vadd.f32 %v952, %v1086
  %1088 = vdwg.mxu0
  %1089 = vmatpush.bf16.msra.mxu0 %v1053
  %1090 = vmatpush.bf16.msra.mxu0 %v1052
  %1091 = vmatpush.bf16.msra.mxu0 %v1051
  %1092 = vmatpush.bf16.msra.mxu0 %v1050
  %1093 = vmatpush.bf16.msra.mxu0 %v1049
  %1094 = vmatpush.bf16.msra.mxu0 %v1048
  %1095 = vmatpush.bf16.msra.mxu0 %v1047
  %1096 = vmatpush.bf16.msra.mxu0 %v1046
  %1097 = vmatmul.bf16.gmra.mxu0 %v967
  %v1098 = vpop.f32.mrf.mxu0
  %v1099 = vadd.f32 %v1080, %v1098
  %v1100 = vpop.f32.mrf.mxu0
  %v1101 = vadd.f32 %v1082, %v1100
  %1102 = vmatmul.bf16.gmra.mxu0 %v969
  %v1103 = vpop.f32.mrf.mxu0
  %v1104 = vadd.f32 %v1085, %v1103
  %v1105 = vpop.f32.mrf.mxu0
  %v1106 = vadd.f32 %v1087, %v1105
  %1107 = vdwg.mxu0
  %v1108 = vmax.f32 %v1099, 0.0
  %v1109 = vmax.f32 %v1101, 0.0
  %v1110 = vmax.f32 %v1104, 0.0
  %v1111 = vmax.f32 %v1106, 0.0
  %v1112 = vpack.c.bf16 %v1108, %v1108
  %v1113 = vpack.c.bf16 %v1109, %v1109
  %v1114 = vpack.c.bf16 %v1110, %v1110
  %v1115 = vpack.c.bf16 %v1111, %v1111
  %1120 = vrot.lane.b32.xlu0 %v1112, 64
  %v1121 = vpop.permute.xlu0 %1120
  %1122 = vrot.lane.b32.xlu0 %v1113, 64
  %v1123 = vpop.permute.xlu0 %1122
  %1124 = vrot.lane.b32.xlu0 %v1114, 64
  %v1125 = vpop.permute.xlu0 %1124
  %1126 = vrot.lane.b32.xlu0 %v1115, 64
  %v1127 = vpop.permute.xlu0 %1126
  %vm1132 = vcmask 650752
  %1133 = vst.msk [vmem:[#allocation2] sm:$0xf] %vm1132, %v1121
  %1134 = vst.msk [vmem:[#allocation2 + $0x8] sm:$0xf] %vm1132, %v1123
  %1135 = vst.msk [vmem:[#allocation2 + $0x10] sm:$0xf] %vm1132, %v1125
  %1136 = vst.msk [vmem:[#allocation2 + $0x18] sm:$0xf] %vm1132, %v1127
  %v1137 = vld [vmem:[%s0 + $0x28] sm:$0xff]
  %v1138 = vld [vmem:[%s0 + $0xa8] sm:$0xff]
  %v1139 = vld [vmem:[%s0 + $0x128] sm:$0xff]
  %v1140 = vld [vmem:[%s0 + $0x1a8] sm:$0xff]
  %v1141 = vld [vmem:[%s1] sm:$0xf]
  %v1142 = vld [vmem:[%s1 + $0x4] sm:$0xf]
  %v1143 = vld [vmem:[%s1 + $0x8] sm:$0xf]
  %v1144 = vld [vmem:[%s1 + $0xc] sm:$0xf]
  %v1145 = vld [vmem:[%s1 + $0x10] sm:$0xf]
  %v1146 = vld [vmem:[%s1 + $0x14] sm:$0xf]
  %v1147 = vld [vmem:[%s1 + $0x18] sm:$0xf]
  %v1148 = vld [vmem:[%s1 + $0x1c] sm:$0xf]
  %v1149 = vld [vmem:[%s1 + $0x20] sm:$0xf]
  %v1150 = vld [vmem:[%s1 + $0x24] sm:$0xf]
  %v1151 = vld [vmem:[%s1 + $0x28] sm:$0xf]
  %v1152 = vld [vmem:[%s1 + $0x2c] sm:$0xf]
  %v1153 = vld [vmem:[%s1 + $0x30] sm:$0xf]
  %v1154 = vld [vmem:[%s1 + $0x34] sm:$0xf]
  %v1155 = vld [vmem:[%s1 + $0x38] sm:$0xf]
  %v1156 = vld [vmem:[%s1 + $0x3c] sm:$0xf]
  %v1157 = vld [vmem:[%s1 + $0x40] sm:$0xf]
  %v1158 = vld [vmem:[%s1 + $0x44] sm:$0xf]
  %v1159 = vld [vmem:[%s1 + $0x48] sm:$0xf]
  %v1160 = vld [vmem:[%s1 + $0x4c] sm:$0xf]
  %v1161 = vld [vmem:[%s1 + $0x50] sm:$0xf]
  %v1162 = vld [vmem:[%s1 + $0x54] sm:$0xf]
  %v1163 = vld [vmem:[%s1 + $0x58] sm:$0xf]
  %v1164 = vld [vmem:[%s1 + $0x5c] sm:$0xf]
  %v1165 = vld [vmem:[%s1 + $0x60] sm:$0xf]
  %v1166 = vld [vmem:[%s1 + $0x64] sm:$0xf]
  %v1167 = vld [vmem:[%s1 + $0x68] sm:$0xf]
  %v1168 = vld [vmem:[%s1 + $0x6c] sm:$0xf]
  %v1169 = vld [vmem:[%s1 + $0x70] sm:$0xf]
  %v1170 = vld [vmem:[%s1 + $0x74] sm:$0xf]
  %v1171 = vld [vmem:[%s1 + $0x78] sm:$0xf]
  %v1172 = vld [vmem:[%s1 + $0x7c] sm:$0xf]
  %v1173 = vld [vmem:[%s2] sm:$0x1]
  %v1175 = vperm.slane %v1173, 0
  %v1181 = vunpack.c.l.b16 %v1137
  %v1182 = vunpack.c.h.b16 %v1137
  %v1183 = vunpack.c.l.b16 %v1138
  %v1184 = vunpack.c.h.b16 %v1138
  %v1185 = vunpack.c.l.b16 %v1139
  %v1186 = vunpack.c.h.b16 %v1139
  %v1187 = vunpack.c.l.b16 %v1140
  %v1188 = vunpack.c.h.b16 %v1140
  %v1189 = vpack.c.b16 %v1183, %v1181
  %v1190 = vpack.c.b16 %v1184, %v1182
  %v1191 = vpack.c.b16 %v1187, %v1185
  %v1192 = vpack.c.b16 %v1188, %v1186
  %v1229 = vunpack.c.l.b16 %v1141
  %v1230 = vunpack.c.l.b16 %v1142
  %v1231 = vunpack.c.l.b16 %v1143
  %v1232 = vunpack.c.l.b16 %v1144
  %v1233 = vunpack.c.l.b16 %v1145
  %v1234 = vunpack.c.l.b16 %v1146
  %v1235 = vunpack.c.l.b16 %v1147
  %v1236 = vunpack.c.l.b16 %v1148
  %v1237 = vunpack.c.l.b16 %v1149
  %v1238 = vunpack.c.l.b16 %v1150
  %v1239 = vunpack.c.l.b16 %v1151
  %v1240 = vunpack.c.l.b16 %v1152
  %v1241 = vunpack.c.l.b16 %v1153
  %v1242 = vunpack.c.l.b16 %v1154
  %v1243 = vunpack.c.l.b16 %v1155
  %v1244 = vunpack.c.l.b16 %v1156
  %v1245 = vunpack.c.l.b16 %v1157
  %v1246 = vunpack.c.l.b16 %v1158
  %v1247 = vunpack.c.l.b16 %v1159
  %v1248 = vunpack.c.l.b16 %v1160
  %v1249 = vunpack.c.l.b16 %v1161
  %v1250 = vunpack.c.l.b16 %v1162
  %v1251 = vunpack.c.l.b16 %v1163
  %v1252 = vunpack.c.l.b16 %v1164
  %v1253 = vunpack.c.l.b16 %v1165
  %v1254 = vunpack.c.l.b16 %v1166
  %v1255 = vunpack.c.l.b16 %v1167
  %v1256 = vunpack.c.l.b16 %v1168
  %v1257 = vunpack.c.l.b16 %v1169
  %v1258 = vunpack.c.l.b16 %v1170
  %v1259 = vunpack.c.l.b16 %v1171
  %v1260 = vunpack.c.l.b16 %v1172
  %v1261 = vpack.c.b16 %v1230, %v1229
  %v1262 = vpack.c.b16 %v1232, %v1231
  %v1263 = vpack.c.b16 %v1234, %v1233
  %v1264 = vpack.c.b16 %v1236, %v1235
  %v1265 = vpack.c.b16 %v1238, %v1237
  %v1266 = vpack.c.b16 %v1240, %v1239
  %v1267 = vpack.c.b16 %v1242, %v1241
  %v1268 = vpack.c.b16 %v1244, %v1243
  %v1269 = vpack.c.b16 %v1246, %v1245
  %v1270 = vpack.c.b16 %v1248, %v1247
  %v1271 = vpack.c.b16 %v1250, %v1249
  %v1272 = vpack.c.b16 %v1252, %v1251
  %v1273 = vpack.c.b16 %v1254, %v1253
  %v1274 = vpack.c.b16 %v1256, %v1255
  %v1275 = vpack.c.b16 %v1258, %v1257
  %v1276 = vpack.c.b16 %v1260, %v1259
  %1293 = vmatpush.bf16.msra.mxu0 %v1268
  %1294 = vmatpush.bf16.msra.mxu0 %v1267
  %1295 = vmatpush.bf16.msra.mxu0 %v1266
  %1296 = vmatpush.bf16.msra.mxu0 %v1265
  %1297 = vmatpush.bf16.msra.mxu0 %v1264
  %1298 = vmatpush.bf16.msra.mxu0 %v1263
  %1299 = vmatpush.bf16.msra.mxu0 %v1262
  %1300 = vmatpush.bf16.msra.mxu0 %v1261
  %1301 = vmatmul.bf16.gmra.mxu0 %v1189
  %v1302 = vpop.f32.mrf.mxu0
  %v1303 = vadd.f32 %v1175, %v1302
  %v1304 = vpop.f32.mrf.mxu0
  %v1305 = vadd.f32 %v1175, %v1304
  %1306 = vmatmul.bf16.gmra.mxu0 %v1191
  %v1307 = vpop.f32.mrf.mxu0
  %v1308 = vadd.f32 %v1175, %v1307
  %v1309 = vpop.f32.mrf.mxu0
  %v1310 = vadd.f32 %v1175, %v1309
  %1311 = vdwg.mxu0
  %1312 = vmatpush.bf16.msra.mxu0 %v1276
  %1313 = vmatpush.bf16.msra.mxu0 %v1275
  %1314 = vmatpush.bf16.msra.mxu0 %v1274
  %1315 = vmatpush.bf16.msra.mxu0 %v1273
  %1316 = vmatpush.bf16.msra.mxu0 %v1272
  %1317 = vmatpush.bf16.msra.mxu0 %v1271
  %1318 = vmatpush.bf16.msra.mxu0 %v1270
  %1319 = vmatpush.bf16.msra.mxu0 %v1269
  %1320 = vmatmul.bf16.gmra.mxu0 %v1190
  %v1321 = vpop.f32.mrf.mxu0
  %v1322 = vadd.f32 %v1303, %v1321
  %v1323 = vpop.f32.mrf.mxu0
  %v1324 = vadd.f32 %v1305, %v1323
  %1325 = vmatmul.bf16.gmra.mxu0 %v1192
  %v1326 = vpop.f32.mrf.mxu0
  %v1327 = vadd.f32 %v1308, %v1326
  %v1328 = vpop.f32.mrf.mxu0
  %v1329 = vadd.f32 %v1310, %v1328
  %1330 = vdwg.mxu0
  %v1331 = vmax.f32 %v1322, 0.0
  %v1332 = vmax.f32 %v1324, 0.0
  %v1333 = vmax.f32 %v1327, 0.0
  %v1334 = vmax.f32 %v1329, 0.0
  %v1335 = vpack.c.bf16 %v1331, %v1331
  %v1336 = vpack.c.bf16 %v1332, %v1332
  %v1337 = vpack.c.bf16 %v1333, %v1333
  %v1338 = vpack.c.bf16 %v1334, %v1334
  %1343 = vrot.lane.b32.xlu0 %v1335, 80
  %v1344 = vpop.permute.xlu0 %1343
  %1345 = vrot.lane.b32.xlu0 %v1336, 80
  %v1346 = vpop.permute.xlu0 %1345
  %1347 = vrot.lane.b32.xlu0 %v1337, 80
  %v1348 = vpop.permute.xlu0 %1347
  %1349 = vrot.lane.b32.xlu0 %v1338, 80
  %v1350 = vpop.permute.xlu0 %1349
  %vm1355 = vcmask 781952
  %1356 = vst.msk [vmem:[#allocation2] sm:$0xf] %vm1355, %v1344
  %1357 = vst.msk [vmem:[#allocation2 + $0x8] sm:$0xf] %vm1355, %v1346
  %1358 = vst.msk [vmem:[#allocation2 + $0x10] sm:$0xf] %vm1355, %v1348
  %1359 = vst.msk [vmem:[#allocation2 + $0x18] sm:$0xf] %vm1355, %v1350
  %v1360 = vld [vmem:[%s0 + $0x30] sm:$0xff]
  %v1361 = vld [vmem:[%s0 + $0xb0] sm:$0xff]
  %v1362 = vld [vmem:[%s0 + $0x130] sm:$0xff]
  %v1363 = vld [vmem:[%s0 + $0x1b0] sm:$0xff]
  %v1364 = vld [vmem:[%s1] sm:$0xf]
  %v1365 = vld [vmem:[%s1 + $0x4] sm:$0xf]
  %v1366 = vld [vmem:[%s1 + $0x8] sm:$0xf]
  %v1367 = vld [vmem:[%s1 + $0xc] sm:$0xf]
  %v1368 = vld [vmem:[%s1 + $0x10] sm:$0xf]
  %v1369 = vld [vmem:[%s1 + $0x14] sm:$0xf]
  %v1370 = vld [vmem:[%s1 + $0x18] sm:$0xf]
  %v1371 = vld [vmem:[%s1 + $0x1c] sm:$0xf]
  %v1372 = vld [vmem:[%s1 + $0x20] sm:$0xf]
  %v1373 = vld [vmem:[%s1 + $0x24] sm:$0xf]
  %v1374 = vld [vmem:[%s1 + $0x28] sm:$0xf]
  %v1375 = vld [vmem:[%s1 + $0x2c] sm:$0xf]
  %v1376 = vld [vmem:[%s1 + $0x30] sm:$0xf]
  %v1377 = vld [vmem:[%s1 + $0x34] sm:$0xf]
  %v1378 = vld [vmem:[%s1 + $0x38] sm:$0xf]
  %v1379 = vld [vmem:[%s1 + $0x3c] sm:$0xf]
  %v1380 = vld [vmem:[%s1 + $0x40] sm:$0xf]
  %v1381 = vld [vmem:[%s1 + $0x44] sm:$0xf]
  %v1382 = vld [vmem:[%s1 + $0x48] sm:$0xf]
  %v1383 = vld [vmem:[%s1 + $0x4c] sm:$0xf]
  %v1384 = vld [vmem:[%s1 + $0x50] sm:$0xf]
  %v1385 = vld [vmem:[%s1 + $0x54] sm:$0xf]
  %v1386 = vld [vmem:[%s1 + $0x58] sm:$0xf]
  %v1387 = vld [vmem:[%s1 + $0x5c] sm:$0xf]
  %v1388 = vld [vmem:[%s1 + $0x60] sm:$0xf]
  %v1389 = vld [vmem:[%s1 + $0x64] sm:$0xf]
  %v1390 = vld [vmem:[%s1 + $0x68] sm:$0xf]
  %v1391 = vld [vmem:[%s1 + $0x6c] sm:$0xf]
  %v1392 = vld [vmem:[%s1 + $0x70] sm:$0xf]
  %v1393 = vld [vmem:[%s1 + $0x74] sm:$0xf]
  %v1394 = vld [vmem:[%s1 + $0x78] sm:$0xf]
  %v1395 = vld [vmem:[%s1 + $0x7c] sm:$0xf]
  %v1396 = vld [vmem:[%s2] sm:$0x1]
  %v1398 = vperm.slane %v1396, 0
  %v1404 = vunpack.c.l.b16 %v1360
  %v1405 = vunpack.c.h.b16 %v1360
  %v1406 = vunpack.c.l.b16 %v1361
  %v1407 = vunpack.c.h.b16 %v1361
  %v1408 = vunpack.c.l.b16 %v1362
  %v1409 = vunpack.c.h.b16 %v1362
  %v1410 = vunpack.c.l.b16 %v1363
  %v1411 = vunpack.c.h.b16 %v1363
  %v1412 = vpack.c.b16 %v1406, %v1404
  %v1413 = vpack.c.b16 %v1407, %v1405
  %v1414 = vpack.c.b16 %v1410, %v1408
  %v1415 = vpack.c.b16 %v1411, %v1409
  %v1452 = vunpack.c.l.b16 %v1364
  %v1453 = vunpack.c.l.b16 %v1365
  %v1454 = vunpack.c.l.b16 %v1366
  %v1455 = vunpack.c.l.b16 %v1367
  %v1456 = vunpack.c.l.b16 %v1368
  %v1457 = vunpack.c.l.b16 %v1369
  %v1458 = vunpack.c.l.b16 %v1370
  %v1459 = vunpack.c.l.b16 %v1371
  %v1460 = vunpack.c.l.b16 %v1372
  %v1461 = vunpack.c.l.b16 %v1373
  %v1462 = vunpack.c.l.b16 %v1374
  %v1463 = vunpack.c.l.b16 %v1375
  %v1464 = vunpack.c.l.b16 %v1376
  %v1465 = vunpack.c.l.b16 %v1377
  %v1466 = vunpack.c.l.b16 %v1378
  %v1467 = vunpack.c.l.b16 %v1379
  %v1468 = vunpack.c.l.b16 %v1380
  %v1469 = vunpack.c.l.b16 %v1381
  %v1470 = vunpack.c.l.b16 %v1382
  %v1471 = vunpack.c.l.b16 %v1383
  %v1472 = vunpack.c.l.b16 %v1384
  %v1473 = vunpack.c.l.b16 %v1385
  %v1474 = vunpack.c.l.b16 %v1386
  %v1475 = vunpack.c.l.b16 %v1387
  %v1476 = vunpack.c.l.b16 %v1388
  %v1477 = vunpack.c.l.b16 %v1389
  %v1478 = vunpack.c.l.b16 %v1390
  %v1479 = vunpack.c.l.b16 %v1391
  %v1480 = vunpack.c.l.b16 %v1392
  %v1481 = vunpack.c.l.b16 %v1393
  %v1482 = vunpack.c.l.b16 %v1394
  %v1483 = vunpack.c.l.b16 %v1395
  %v1484 = vpack.c.b16 %v1453, %v1452
  %v1485 = vpack.c.b16 %v1455, %v1454
  %v1486 = vpack.c.b16 %v1457, %v1456
  %v1487 = vpack.c.b16 %v1459, %v1458
  %v1488 = vpack.c.b16 %v1461, %v1460
  %v1489 = vpack.c.b16 %v1463, %v1462
  %v1490 = vpack.c.b16 %v1465, %v1464
  %v1491 = vpack.c.b16 %v1467, %v1466
  %v1492 = vpack.c.b16 %v1469, %v1468
  %v1493 = vpack.c.b16 %v1471, %v1470
  %v1494 = vpack.c.b16 %v1473, %v1472
  %v1495 = vpack.c.b16 %v1475, %v1474
  %v1496 = vpack.c.b16 %v1477, %v1476
  %v1497 = vpack.c.b16 %v1479, %v1478
  %v1498 = vpack.c.b16 %v1481, %v1480
  %v1499 = vpack.c.b16 %v1483, %v1482
  %1516 = vmatpush.bf16.msra.mxu0 %v1491
  %1517 = vmatpush.bf16.msra.mxu0 %v1490
  %1518 = vmatpush.bf16.msra.mxu0 %v1489
  %1519 = vmatpush.bf16.msra.mxu0 %v1488
  %1520 = vmatpush.bf16.msra.mxu0 %v1487
  %1521 = vmatpush.bf16.msra.mxu0 %v1486
  %1522 = vmatpush.bf16.msra.mxu0 %v1485
  %1523 = vmatpush.bf16.msra.mxu0 %v1484
  %1524 = vmatmul.bf16.gmra.mxu0 %v1412
  %v1525 = vpop.f32.mrf.mxu0
  %v1526 = vadd.f32 %v1398, %v1525
  %v1527 = vpop.f32.mrf.mxu0
  %v1528 = vadd.f32 %v1398, %v1527
  %1529 = vmatmul.bf16.gmra.mxu0 %v1414
  %v1530 = vpop.f32.mrf.mxu0
  %v1531 = vadd.f32 %v1398, %v1530
  %v1532 = vpop.f32.mrf.mxu0
  %v1533 = vadd.f32 %v1398, %v1532
  %1534 = vdwg.mxu0
  %1535 = vmatpush.bf16.msra.mxu0 %v1499
  %1536 = vmatpush.bf16.msra.mxu0 %v1498
  %1537 = vmatpush.bf16.msra.mxu0 %v1497
  %1538 = vmatpush.bf16.msra.mxu0 %v1496
  %1539 = vmatpush.bf16.msra.mxu0 %v1495
  %1540 = vmatpush.bf16.msra.mxu0 %v1494
  %1541 = vmatpush.bf16.msra.mxu0 %v1493
  %1542 = vmatpush.bf16.msra.mxu0 %v1492
  %1543 = vmatmul.bf16.gmra.mxu0 %v1413
  %v1544 = vpop.f32.mrf.mxu0
  %v1545 = vadd.f32 %v1526, %v1544
  %v1546 = vpop.f32.mrf.mxu0
  %v1547 = vadd.f32 %v1528, %v1546
  %1548 = vmatmul.bf16.gmra.mxu0 %v1415
  %v1549 = vpop.f32.mrf.mxu0
  %v1550 = vadd.f32 %v1531, %v1549
  %v1551 = vpop.f32.mrf.mxu0
  %v1552 = vadd.f32 %v1533, %v1551
  %1553 = vdwg.mxu0
  %v1554 = vmax.f32 %v1545, 0.0
  %v1555 = vmax.f32 %v1547, 0.0
  %v1556 = vmax.f32 %v1550, 0.0
  %v1557 = vmax.f32 %v1552, 0.0
  %v1558 = vpack.c.bf16 %v1554, %v1554
  %v1559 = vpack.c.bf16 %v1555, %v1555
  %v1560 = vpack.c.bf16 %v1556, %v1556
  %v1561 = vpack.c.bf16 %v1557, %v1557
  %1566 = vrot.lane.b32.xlu0 %v1558, 96
  %v1567 = vpop.permute.xlu0 %1566
  %1568 = vrot.lane.b32.xlu0 %v1559, 96
  %v1569 = vpop.permute.xlu0 %1568
  %1570 = vrot.lane.b32.xlu0 %v1560, 96
  %v1571 = vpop.permute.xlu0 %1570
  %1572 = vrot.lane.b32.xlu0 %v1561, 96
  %v1573 = vpop.permute.xlu0 %1572
  %vm1578 = vcmask 913152
  %1579 = vst.msk [vmem:[#allocation2] sm:$0xf] %vm1578, %v1567
  %1580 = vst.msk [vmem:[#allocation2 + $0x8] sm:$0xf] %vm1578, %v1569
  %1581 = vst.msk [vmem:[#allocation2 + $0x10] sm:$0xf] %vm1578, %v1571
  %1582 = vst.msk [vmem:[#allocation2 + $0x18] sm:$0xf] %vm1578, %v1573
  %v1583 = vld [vmem:[%s0 + $0x38] sm:$0xff]
  %v1584 = vld [vmem:[%s0 + $0xb8] sm:$0xff]
  %v1585 = vld [vmem:[%s0 + $0x138] sm:$0xff]
  %v1586 = vld [vmem:[%s0 + $0x1b8] sm:$0xff]
  %v1587 = vld [vmem:[%s1] sm:$0xf]
  %v1588 = vld [vmem:[%s1 + $0x4] sm:$0xf]
  %v1589 = vld [vmem:[%s1 + $0x8] sm:$0xf]
  %v1590 = vld [vmem:[%s1 + $0xc] sm:$0xf]
  %v1591 = vld [vmem:[%s1 + $0x10] sm:$0xf]
  %v1592 = vld [vmem:[%s1 + $0x14] sm:$0xf]
  %v1593 = vld [vmem:[%s1 + $0x18] sm:$0xf]
  %v1594 = vld [vmem:[%s1 + $0x1c] sm:$0xf]
  %v1595 = vld [vmem:[%s1 + $0x20] sm:$0xf]
  %v1596 = vld [vmem:[%s1 + $0x24] sm:$0xf]
  %v1597 = vld [vmem:[%s1 + $0x28] sm:$0xf]
  %v1598 = vld [vmem:[%s1 + $0x2c] sm:$0xf]
  %v1599 = vld [vmem:[%s1 + $0x30] sm:$0xf]
  %v1600 = vld [vmem:[%s1 + $0x34] sm:$0xf]
  %v1601 = vld [vmem:[%s1 + $0x38] sm:$0xf]
  %v1602 = vld [vmem:[%s1 + $0x3c] sm:$0xf]
  %v1603 = vld [vmem:[%s1 + $0x40] sm:$0xf]
  %v1604 = vld [vmem:[%s1 + $0x44] sm:$0xf]
  %v1605 = vld [vmem:[%s1 + $0x48] sm:$0xf]
  %v1606 = vld [vmem:[%s1 + $0x4c] sm:$0xf]
  %v1607 = vld [vmem:[%s1 + $0x50] sm:$0xf]
  %v1608 = vld [vmem:[%s1 + $0x54] sm:$0xf]
  %v1609 = vld [vmem:[%s1 + $0x58] sm:$0xf]
  %v1610 = vld [vmem:[%s1 + $0x5c] sm:$0xf]
  %v1611 = vld [vmem:[%s1 + $0x60] sm:$0xf]
  %v1612 = vld [vmem:[%s1 + $0x64] sm:$0xf]
  %v1613 = vld [vmem:[%s1 + $0x68] sm:$0xf]
  %v1614 = vld [vmem:[%s1 + $0x6c] sm:$0xf]
  %v1615 = vld [vmem:[%s1 + $0x70] sm:$0xf]
  %v1616 = vld [vmem:[%s1 + $0x74] sm:$0xf]
  %v1617 = vld [vmem:[%s1 + $0x78] sm:$0xf]
  %v1618 = vld [vmem:[%s1 + $0x7c] sm:$0xf]
  %v1619 = vld [vmem:[%s2] sm:$0x1]
  %v1621 = vperm.slane %v1619, 0
  %v1627 = vunpack.c.l.b16 %v1583
  %v1628 = vunpack.c.h.b16 %v1583
  %v1629 = vunpack.c.l.b16 %v1584
  %v1630 = vunpack.c.h.b16 %v1584
  %v1631 = vunpack.c.l.b16 %v1585
  %v1632 = vunpack.c.h.b16 %v1585
  %v1633 = vunpack.c.l.b16 %v1586
  %v1634 = vunpack.c.h.b16 %v1586
  %v1635 = vpack.c.b16 %v1629, %v1627
  %v1636 = vpack.c.b16 %v1630, %v1628
  %v1637 = vpack.c.b16 %v1633, %v1631
  %v1638 = vpack.c.b16 %v1634, %v1632
  %v1675 = vunpack.c.l.b16 %v1587
  %v1676 = vunpack.c.l.b16 %v1588
  %v1677 = vunpack.c.l.b16 %v1589
  %v1678 = vunpack.c.l.b16 %v1590
  %v1679 = vunpack.c.l.b16 %v1591
  %v1680 = vunpack.c.l.b16 %v1592
  %v1681 = vunpack.c.l.b16 %v1593
  %v1682 = vunpack.c.l.b16 %v1594
  %v1683 = vunpack.c.l.b16 %v1595
  %v1684 = vunpack.c.l.b16 %v1596
  %v1685 = vunpack.c.l.b16 %v1597
  %v1686 = vunpack.c.l.b16 %v1598
  %v1687 = vunpack.c.l.b16 %v1599
  %v1688 = vunpack.c.l.b16 %v1600
  %v1689 = vunpack.c.l.b16 %v1601
  %v1690 = vunpack.c.l.b16 %v1602
  %v1691 = vunpack.c.l.b16 %v1603
  %v1692 = vunpack.c.l.b16 %v1604
  %v1693 = vunpack.c.l.b16 %v1605
  %v1694 = vunpack.c.l.b16 %v1606
  %v1695 = vunpack.c.l.b16 %v1607
  %v1696 = vunpack.c.l.b16 %v1608
  %v1697 = vunpack.c.l.b16 %v1609
  %v1698 = vunpack.c.l.b16 %v1610
  %v1699 = vunpack.c.l.b16 %v1611
  %v1700 = vunpack.c.l.b16 %v1612
  %v1701 = vunpack.c.l.b16 %v1613
  %v1702 = vunpack.c.l.b16 %v1614
  %v1703 = vunpack.c.l.b16 %v1615
  %v1704 = vunpack.c.l.b16 %v1616
  %v1705 = vunpack.c.l.b16 %v1617
  %v1706 = vunpack.c.l.b16 %v1618
  %v1707 = vpack.c.b16 %v1676, %v1675
  %v1708 = vpack.c.b16 %v1678, %v1677
  %v1709 = vpack.c.b16 %v1680, %v1679
  %v1710 = vpack.c.b16 %v1682, %v1681
  %v1711 = vpack.c.b16 %v1684, %v1683
  %v1712 = vpack.c.b16 %v1686, %v1685
  %v1713 = vpack.c.b16 %v1688, %v1687
  %v1714 = vpack.c.b16 %v1690, %v1689
  %v1715 = vpack.c.b16 %v1692, %v1691
  %v1716 = vpack.c.b16 %v1694, %v1693
  %v1717 = vpack.c.b16 %v1696, %v1695
  %v1718 = vpack.c.b16 %v1698, %v1697
  %v1719 = vpack.c.b16 %v1700, %v1699
  %v1720 = vpack.c.b16 %v1702, %v1701
  %v1721 = vpack.c.b16 %v1704, %v1703
  %v1722 = vpack.c.b16 %v1706, %v1705
  %1739 = vmatpush.bf16.msra.mxu0 %v1714
  %1740 = vmatpush.bf16.msra.mxu0 %v1713
  %1741 = vmatpush.bf16.msra.mxu0 %v1712
  %1742 = vmatpush.bf16.msra.mxu0 %v1711
  %1743 = vmatpush.bf16.msra.mxu0 %v1710
  %1744 = vmatpush.bf16.msra.mxu0 %v1709
  %1745 = vmatpush.bf16.msra.mxu0 %v1708
  %1746 = vmatpush.bf16.msra.mxu0 %v1707
  %1747 = vmatmul.bf16.gmra.mxu0 %v1635
  %v1748 = vpop.f32.mrf.mxu0
  %v1749 = vadd.f32 %v1621, %v1748
  %v1750 = vpop.f32.mrf.mxu0
  %v1751 = vadd.f32 %v1621, %v1750
  %1752 = vmatmul.bf16.gmra.mxu0 %v1637
  %v1753 = vpop.f32.mrf.mxu0
  %v1754 = vadd.f32 %v1621, %v1753
  %v1755 = vpop.f32.mrf.mxu0
  %v1756 = vadd.f32 %v1621, %v1755
  %1757 = vdwg.mxu0
  %1758 = vmatpush.bf16.msra.mxu0 %v1722
  %1759 = vmatpush.bf16.msra.mxu0 %v1721
  %1760 = vmatpush.bf16.msra.mxu0 %v1720
  %1761 = vmatpush.bf16.msra.mxu0 %v1719
  %1762 = vmatpush.bf16.msra.mxu0 %v1718
  %1763 = vmatpush.bf16.msra.mxu0 %v1717
  %1764 = vmatpush.bf16.msra.mxu0 %v1716
  %1765 = vmatpush.bf16.msra.mxu0 %v1715
  %1766 = vmatmul.bf16.gmra.mxu0 %v1636
  %v1767 = vpop.f32.mrf.mxu0
  %v1768 = vadd.f32 %v1749, %v1767
  %v1769 = vpop.f32.mrf.mxu0
  %v1770 = vadd.f32 %v1751, %v1769
  %1771 = vmatmul.bf16.gmra.mxu0 %v1638
  %v1772 = vpop.f32.mrf.mxu0
  %v1773 = vadd.f32 %v1754, %v1772
  %v1774 = vpop.f32.mrf.mxu0
  %v1775 = vadd.f32 %v1756, %v1774
  %1776 = vdwg.mxu0
  %v1777 = vmax.f32 %v1768, 0.0
  %v1778 = vmax.f32 %v1770, 0.0
  %v1779 = vmax.f32 %v1773, 0.0
  %v1780 = vmax.f32 %v1775, 0.0
  %v1781 = vpack.c.bf16 %v1777, %v1777
  %v1782 = vpack.c.bf16 %v1778, %v1778
  %v1783 = vpack.c.bf16 %v1779, %v1779
  %v1784 = vpack.c.bf16 %v1780, %v1780
  %1789 = vrot.lane.b32.xlu0 %v1781, 112
  %v1790 = vpop.permute.xlu0 %1789
  %1791 = vrot.lane.b32.xlu0 %v1782, 112
  %v1792 = vpop.permute.xlu0 %1791
  %1793 = vrot.lane.b32.xlu0 %v1783, 112
  %v1794 = vpop.permute.xlu0 %1793
  %1795 = vrot.lane.b32.xlu0 %v1784, 112
  %v1796 = vpop.permute.xlu0 %1795
  %vm1801 = vcmask 1044352
  %1802 = vst.msk [vmem:[#allocation2] sm:$0xf] %vm1801, %v1790
  %1803 = vst.msk [vmem:[#allocation2 + $0x8] sm:$0xf] %vm1801, %v1792
  %1804 = vst.msk [vmem:[#allocation2 + $0x10] sm:$0xf] %vm1801, %v1794
  %1805 = vst.msk [vmem:[#allocation2 + $0x18] sm:$0xf] %vm1801, %v1796
  %v1806 = vld [vmem:[%s0 + $0x40] sm:$0xff]
  %v1807 = vld [vmem:[%s0 + $0xc0] sm:$0xff]
  %v1808 = vld [vmem:[%s0 + $0x140] sm:$0xff]
  %v1809 = vld [vmem:[%s0 + $0x1c0] sm:$0xff]
  %v1810 = vld [vmem:[%s1] sm:$0xf]
  %v1811 = vld [vmem:[%s1 + $0x4] sm:$0xf]
  %v1812 = vld [vmem:[%s1 + $0x8] sm:$0xf]
  %v1813 = vld [vmem:[%s1 + $0xc] sm:$0xf]
  %v1814 = vld [vmem:[%s1 + $0x10] sm:$0xf]
  %v1815 = vld [vmem:[%s1 + $0x14] sm:$0xf]
  %v1816 = vld [vmem:[%s1 + $0x18] sm:$0xf]
  %v1817 = vld [vmem:[%s1 + $0x1c] sm:$0xf]
  %v1818 = vld [vmem:[%s1 + $0x20] sm:$0xf]
  %v1819 = vld [vmem:[%s1 + $0x24] sm:$0xf]
  %v1820 = vld [vmem:[%s1 + $0x28] sm:$0xf]
  %v1821 = vld [vmem:[%s1 + $0x2c] sm:$0xf]
  %v1822 = vld [vmem:[%s1 + $0x30] sm:$0xf]
  %v1823 = vld [vmem:[%s1 + $0x34] sm:$0xf]
  %v1824 = vld [vmem:[%s1 + $0x38] sm:$0xf]
  %v1825 = vld [vmem:[%s1 + $0x3c] sm:$0xf]
  %v1826 = vld [vmem:[%s1 + $0x40] sm:$0xf]
  %v1827 = vld [vmem:[%s1 + $0x44] sm:$0xf]
  %v1828 = vld [vmem:[%s1 + $0x48] sm:$0xf]
  %v1829 = vld [vmem:[%s1 + $0x4c] sm:$0xf]
  %v1830 = vld [vmem:[%s1 + $0x50] sm:$0xf]
  %v1831 = vld [vmem:[%s1 + $0x54] sm:$0xf]
  %v1832 = vld [vmem:[%s1 + $0x58] sm:$0xf]
  %v1833 = vld [vmem:[%s1 + $0x5c] sm:$0xf]
  %v1834 = vld [vmem:[%s1 + $0x60] sm:$0xf]
  %v1835 = vld [vmem:[%s1 + $0x64] sm:$0xf]
  %v1836 = vld [vmem:[%s1 + $0x68] sm:$0xf]
  %v1837 = vld [vmem:[%s1 + $0x6c] sm:$0xf]
  %v1838 = vld [vmem:[%s1 + $0x70] sm:$0xf]
  %v1839 = vld [vmem:[%s1 + $0x74] sm:$0xf]
  %v1840 = vld [vmem:[%s1 + $0x78] sm:$0xf]
  %v1841 = vld [vmem:[%s1 + $0x7c] sm:$0xf]
  %v1842 = vld [vmem:[%s2] sm:$0x1]
  %v1844 = vperm.slane %v1842, 0
  %v1850 = vunpack.c.l.b16 %v1806
  %v1851 = vunpack.c.h.b16 %v1806
  %v1852 = vunpack.c.l.b16 %v1807
  %v1853 = vunpack.c.h.b16 %v1807
  %v1854 = vunpack.c.l.b16 %v1808
  %v1855 = vunpack.c.h.b16 %v1808
  %v1856 = vunpack.c.l.b16 %v1809
  %v1857 = vunpack.c.h.b16 %v1809
  %v1858 = vpack.c.b16 %v1852, %v1850
  %v1859 = vpack.c.b16 %v1853, %v1851
  %v1860 = vpack.c.b16 %v1856, %v1854
  %v1861 = vpack.c.b16 %v1857, %v1855
  %v1898 = vunpack.c.l.b16 %v1810
  %v1899 = vunpack.c.l.b16 %v1811
  %v1900 = vunpack.c.l.b16 %v1812
  %v1901 = vunpack.c.l.b16 %v1813
  %v1902 = vunpack.c.l.b16 %v1814
  %v1903 = vunpack.c.l.b16 %v1815
  %v1904 = vunpack.c.l.b16 %v1816
  %v1905 = vunpack.c.l.b16 %v1817
  %v1906 = vunpack.c.l.b16 %v1818
  %v1907 = vunpack.c.l.b16 %v1819
  %v1908 = vunpack.c.l.b16 %v1820
  %v1909 = vunpack.c.l.b16 %v1821
  %v1910 = vunpack.c.l.b16 %v1822
  %v1911 = vunpack.c.l.b16 %v1823
  %v1912 = vunpack.c.l.b16 %v1824
  %v1913 = vunpack.c.l.b16 %v1825
  %v1914 = vunpack.c.l.b16 %v1826
  %v1915 = vunpack.c.l.b16 %v1827
  %v1916 = vunpack.c.l.b16 %v1828
  %v1917 = vunpack.c.l.b16 %v1829
  %v1918 = vunpack.c.l.b16 %v1830
  %v1919 = vunpack.c.l.b16 %v1831
  %v1920 = vunpack.c.l.b16 %v1832
  %v1921 = vunpack.c.l.b16 %v1833
  %v1922 = vunpack.c.l.b16 %v1834
  %v1923 = vunpack.c.l.b16 %v1835
  %v1924 = vunpack.c.l.b16 %v1836
  %v1925 = vunpack.c.l.b16 %v1837
  %v1926 = vunpack.c.l.b16 %v1838
  %v1927 = vunpack.c.l.b16 %v1839
  %v1928 = vunpack.c.l.b16 %v1840
  %v1929 = vunpack.c.l.b16 %v1841
  %v1930 = vpack.c.b16 %v1899, %v1898
  %v1931 = vpack.c.b16 %v1901, %v1900
  %v1932 = vpack.c.b16 %v1903, %v1902
  %v1933 = vpack.c.b16 %v1905, %v1904
  %v1934 = vpack.c.b16 %v1907, %v1906
  %v1935 = vpack.c.b16 %v1909, %v1908
  %v1936 = vpack.c.b16 %v1911, %v1910
  %v1937 = vpack.c.b16 %v1913, %v1912
  %v1938 = vpack.c.b16 %v1915, %v1914
  %v1939 = vpack.c.b16 %v1917, %v1916
  %v1940 = vpack.c.b16 %v1919, %v1918
  %v1941 = vpack.c.b16 %v1921, %v1920
  %v1942 = vpack.c.b16 %v1923, %v1922
  %v1943 = vpack.c.b16 %v1925, %v1924
  %v1944 = vpack.c.b16 %v1927, %v1926
  %v1945 = vpack.c.b16 %v1929, %v1928
  %1962 = vmatpush.bf16.msra.mxu0 %v1937
  %1963 = vmatpush.bf16.msra.mxu0 %v1936
  %1964 = vmatpush.bf16.msra.mxu0 %v1935
  %1965 = vmatpush.bf16.msra.mxu0 %v1934
  %1966 = vmatpush.bf16.msra.mxu0 %v1933
  %1967 = vmatpush.bf16.msra.mxu0 %v1932
  %1968 = vmatpush.bf16.msra.mxu0 %v1931
  %1969 = vmatpush.bf16.msra.mxu0 %v1930
  %1970 = vmatmul.bf16.gmra.mxu0 %v1858
  %v1971 = vpop.f32.mrf.mxu0
  %v1972 = vadd.f32 %v1844, %v1971
  %v1973 = vpop.f32.mrf.mxu0
  %v1974 = vadd.f32 %v1844, %v1973
  %1975 = vmatmul.bf16.gmra.mxu0 %v1860
  %v1976 = vpop.f32.mrf.mxu0
  %v1977 = vadd.f32 %v1844, %v1976
  %v1978 = vpop.f32.mrf.mxu0
  %v1979 = vadd.f32 %v1844, %v1978
  %1980 = vdwg.mxu0
  %1981 = vmatpush.bf16.msra.mxu0 %v1945
  %1982 = vmatpush.bf16.msra.mxu0 %v1944
  %1983 = vmatpush.bf16.msra.mxu0 %v1943
  %1984 = vmatpush.bf16.msra.mxu0 %v1942
  %1985 = vmatpush.bf16.msra.mxu0 %v1941
  %1986 = vmatpush.bf16.msra.mxu0 %v1940
  %1987 = vmatpush.bf16.msra.mxu0 %v1939
  %1988 = vmatpush.bf16.msra.mxu0 %v1938
  %1989 = vmatmul.bf16.gmra.mxu0 %v1859
  %v1990 = vpop.f32.mrf.mxu0
  %v1991 = vadd.f32 %v1972, %v1990
  %v1992 = vpop.f32.mrf.mxu0
  %v1993 = vadd.f32 %v1974, %v1992
  %1994 = vmatmul.bf16.gmra.mxu0 %v1861
  %v1995 = vpop.f32.mrf.mxu0
  %v1996 = vadd.f32 %v1977, %v1995
  %v1997 = vpop.f32.mrf.mxu0
  %v1998 = vadd.f32 %v1979, %v1997
  %1999 = vdwg.mxu0
  %v2000 = vmax.f32 %v1991, 0.0
  %v2001 = vmax.f32 %v1993, 0.0
  %v2002 = vmax.f32 %v1996, 0.0
  %v2003 = vmax.f32 %v1998, 0.0
  %v2004 = vpack.c.bf16 %v2000, %v2000
  %v2005 = vpack.c.bf16 %v2001, %v2001
  %v2006 = vpack.c.bf16 %v2002, %v2002
  %v2007 = vpack.c.bf16 %v2003, %v2003
  %2008 = vst.msk [vmem:[#allocation2 + $0x4] sm:$0xf] %vm240, %v2004
  %2009 = vst.msk [vmem:[#allocation2 + $0xc] sm:$0xf] %vm240, %v2005
  %2010 = vst.msk [vmem:[#allocation2 + $0x14] sm:$0xf] %vm240, %v2006
  %2011 = vst.msk [vmem:[#allocation2 + $0x1c] sm:$0xf] %vm240, %v2007
  %v2012 = vld [vmem:[%s0 + $0x48] sm:$0xff]
  %v2013 = vld [vmem:[%s0 + $0xc8] sm:$0xff]
  %v2014 = vld [vmem:[%s0 + $0x148] sm:$0xff]
  %v2015 = vld [vmem:[%s0 + $0x1c8] sm:$0xff]
  %v2016 = vld [vmem:[%s1] sm:$0xf]
  %v2017 = vld [vmem:[%s1 + $0x4] sm:$0xf]
  %v2018 = vld [vmem:[%s1 + $0x8] sm:$0xf]
  %v2019 = vld [vmem:[%s1 + $0xc] sm:$0xf]
  %v2020 = vld [vmem:[%s1 + $0x10] sm:$0xf]
  %v2021 = vld [vmem:[%s1 + $0x14] sm:$0xf]
  %v2022 = vld [vmem:[%s1 + $0x18] sm:$0xf]
  %v2023 = vld [vmem:[%s1 + $0x1c] sm:$0xf]
  %v2024 = vld [vmem:[%s1 + $0x20] sm:$0xf]
  %v2025 = vld [vmem:[%s1 + $0x24] sm:$0xf]
  %v2026 = vld [vmem:[%s1 + $0x28] sm:$0xf]
  %v2027 = vld [vmem:[%s1 + $0x2c] sm:$0xf]
  %v2028 = vld [vmem:[%s1 + $0x30] sm:$0xf]
  %v2029 = vld [vmem:[%s1 + $0x34] sm:$0xf]
  %v2030 = vld [vmem:[%s1 + $0x38] sm:$0xf]
  %v2031 = vld [vmem:[%s1 + $0x3c] sm:$0xf]
  %v2032 = vld [vmem:[%s1 + $0x40] sm:$0xf]
  %v2033 = vld [vmem:[%s1 + $0x44] sm:$0xf]
  %v2034 = vld [vmem:[%s1 + $0x48] sm:$0xf]
  %v2035 = vld [vmem:[%s1 + $0x4c] sm:$0xf]
  %v2036 = vld [vmem:[%s1 + $0x50] sm:$0xf]
  %v2037 = vld [vmem:[%s1 + $0x54] sm:$0xf]
  %v2038 = vld [vmem:[%s1 + $0x58] sm:$0xf]
  %v2039 = vld [vmem:[%s1 + $0x5c] sm:$0xf]
  %v2040 = vld [vmem:[%s1 + $0x60] sm:$0xf]
  %v2041 = vld [vmem:[%s1 + $0x64] sm:$0xf]
  %v2042 = vld [vmem:[%s1 + $0x68] sm:$0xf]
  %v2043 = vld [vmem:[%s1 + $0x6c] sm:$0xf]
  %v2044 = vld [vmem:[%s1 + $0x70] sm:$0xf]
  %v2045 = vld [vmem:[%s1 + $0x74] sm:$0xf]
  %v2046 = vld [vmem:[%s1 + $0x78] sm:$0xf]
  %v2047 = vld [vmem:[%s1 + $0x7c] sm:$0xf]
  %v2048 = vld [vmem:[%s2] sm:$0x1]
  %v2050 = vperm.slane %v2048, 0
  %v2056 = vunpack.c.l.b16 %v2012
  %v2057 = vunpack.c.h.b16 %v2012
  %v2058 = vunpack.c.l.b16 %v2013
  %v2059 = vunpack.c.h.b16 %v2013
  %v2060 = vunpack.c.l.b16 %v2014
  %v2061 = vunpack.c.h.b16 %v2014
  %v2062 = vunpack.c.l.b16 %v2015
  %v2063 = vunpack.c.h.b16 %v2015
  %v2064 = vpack.c.b16 %v2058, %v2056
  %v2065 = vpack.c.b16 %v2059, %v2057
  %v2066 = vpack.c.b16 %v2062, %v2060
  %v2067 = vpack.c.b16 %v2063, %v2061
  %v2104 = vunpack.c.l.b16 %v2016
  %v2105 = vunpack.c.l.b16 %v2017
  %v2106 = vunpack.c.l.b16 %v2018
  %v2107 = vunpack.c.l.b16 %v2019
  %v2108 = vunpack.c.l.b16 %v2020
  %v2109 = vunpack.c.l.b16 %v2021
  %v2110 = vunpack.c.l.b16 %v2022
  %v2111 = vunpack.c.l.b16 %v2023
  %v2112 = vunpack.c.l.b16 %v2024
  %v2113 = vunpack.c.l.b16 %v2025
  %v2114 = vunpack.c.l.b16 %v2026
  %v2115 = vunpack.c.l.b16 %v2027
  %v2116 = vunpack.c.l.b16 %v2028
  %v2117 = vunpack.c.l.b16 %v2029
  %v2118 = vunpack.c.l.b16 %v2030
  %v2119 = vunpack.c.l.b16 %v2031
  %v2120 = vunpack.c.l.b16 %v2032
  %v2121 = vunpack.c.l.b16 %v2033
  %v2122 = vunpack.c.l.b16 %v2034
  %v2123 = vunpack.c.l.b16 %v2035
  %v2124 = vunpack.c.l.b16 %v2036
  %v2125 = vunpack.c.l.b16 %v2037
  %v2126 = vunpack.c.l.b16 %v2038
  %v2127 = vunpack.c.l.b16 %v2039
  %v2128 = vunpack.c.l.b16 %v2040
  %v2129 = vunpack.c.l.b16 %v2041
  %v2130 = vunpack.c.l.b16 %v2042
  %v2131 = vunpack.c.l.b16 %v2043
  %v2132 = vunpack.c.l.b16 %v2044
  %v2133 = vunpack.c.l.b16 %v2045
  %v2134 = vunpack.c.l.b16 %v2046
  %v2135 = vunpack.c.l.b16 %v2047
  %v2136 = vpack.c.b16 %v2105, %v2104
  %v2137 = vpack.c.b16 %v2107, %v2106
  %v2138 = vpack.c.b16 %v2109, %v2108
  %v2139 = vpack.c.b16 %v2111, %v2110
  %v2140 = vpack.c.b16 %v2113, %v2112
  %v2141 = vpack.c.b16 %v2115, %v2114
  %v2142 = vpack.c.b16 %v2117, %v2116
  %v2143 = vpack.c.b16 %v2119, %v2118
  %v2144 = vpack.c.b16 %v2121, %v2120
  %v2145 = vpack.c.b16 %v2123, %v2122
  %v2146 = vpack.c.b16 %v2125, %v2124
  %v2147 = vpack.c.b16 %v2127, %v2126
  %v2148 = vpack.c.b16 %v2129, %v2128
  %v2149 = vpack.c.b16 %v2131, %v2130
  %v2150 = vpack.c.b16 %v2133, %v2132
  %v2151 = vpack.c.b16 %v2135, %v2134
  %2168 = vmatpush.bf16.msra.mxu0 %v2143
  %2169 = vmatpush.bf16.msra.mxu0 %v2142
  %2170 = vmatpush.bf16.msra.mxu0 %v2141
  %2171 = vmatpush.bf16.msra.mxu0 %v2140
  %2172 = vmatpush.bf16.msra.mxu0 %v2139
  %2173 = vmatpush.bf16.msra.mxu0 %v2138
  %2174 = vmatpush.bf16.msra.mxu0 %v2137
  %2175 = vmatpush.bf16.msra.mxu0 %v2136
  %2176 = vmatmul.bf16.gmra.mxu0 %v2064
  %v2177 = vpop.f32.mrf.mxu0
  %v2178 = vadd.f32 %v2050, %v2177
  %v2179 = vpop.f32.mrf.mxu0
  %v2180 = vadd.f32 %v2050, %v2179
  %2181 = vmatmul.bf16.gmra.mxu0 %v2066
  %v2182 = vpop.f32.mrf.mxu0
  %v2183 = vadd.f32 %v2050, %v2182
  %v2184 = vpop.f32.mrf.mxu0
  %v2185 = vadd.f32 %v2050, %v2184
  %2186 = vdwg.mxu0
  %2187 = vmatpush.bf16.msra.mxu0 %v2151
  %2188 = vmatpush.bf16.msra.mxu0 %v2150
  %2189 = vmatpush.bf16.msra.mxu0 %v2149
  %2190 = vmatpush.bf16.msra.mxu0 %v2148
  %2191 = vmatpush.bf16.msra.mxu0 %v2147
  %2192 = vmatpush.bf16.msra.mxu0 %v2146
  %2193 = vmatpush.bf16.msra.mxu0 %v2145
  %2194 = vmatpush.bf16.msra.mxu0 %v2144
  %2195 = vmatmul.bf16.gmra.mxu0 %v2065
  %v2196 = vpop.f32.mrf.mxu0
  %v2197 = vadd.f32 %v2178, %v2196
  %v2198 = vpop.f32.mrf.mxu0
  %v2199 = vadd.f32 %v2180, %v2198
  %2200 = vmatmul.bf16.gmra.mxu0 %v2067
  %v2201 = vpop.f32.mrf.mxu0
  %v2202 = vadd.f32 %v2183, %v2201
  %v2203 = vpop.f32.mrf.mxu0
  %v2204 = vadd.f32 %v2185, %v2203
  %2205 = vdwg.mxu0
  %v2206 = vmax.f32 %v2197, 0.0
  %v2207 = vmax.f32 %v2199, 0.0
  %v2208 = vmax.f32 %v2202, 0.0
  %v2209 = vmax.f32 %v2204, 0.0
  %v2210 = vpack.c.bf16 %v2206, %v2206
  %v2211 = vpack.c.bf16 %v2207, %v2207
  %v2212 = vpack.c.bf16 %v2208, %v2208
  %v2213 = vpack.c.bf16 %v2209, %v2209
  %2218 = vrot.lane.b32.xlu0 %v2210, 16
  %v2219 = vpop.permute.xlu0 %2218
  %2220 = vrot.lane.b32.xlu0 %v2211, 16
  %v2221 = vpop.permute.xlu0 %2220
  %2222 = vrot.lane.b32.xlu0 %v2212, 16
  %v2223 = vpop.permute.xlu0 %2222
  %2224 = vrot.lane.b32.xlu0 %v2213, 16
  %v2225 = vpop.permute.xlu0 %2224
  %2230 = vst.msk [vmem:[#allocation2 + $0x4] sm:$0xf] %vm463, %v2219
  %2231 = vst.msk [vmem:[#allocation2 + $0xc] sm:$0xf] %vm463, %v2221
  %2232 = vst.msk [vmem:[#allocation2 + $0x14] sm:$0xf] %vm463, %v2223
  %2233 = vst.msk [vmem:[#allocation2 + $0x1c] sm:$0xf] %vm463, %v2225
  %v2234 = vld [vmem:[%s0 + $0x50] sm:$0xff]
  %v2235 = vld [vmem:[%s0 + $0xd0] sm:$0xff]
  %v2236 = vld [vmem:[%s0 + $0x150] sm:$0xff]
  %v2237 = vld [vmem:[%s0 + $0x1d0] sm:$0xff]
  %v2238 = vld [vmem:[%s1] sm:$0xf]
  %v2239 = vld [vmem:[%s1 + $0x4] sm:$0xf]
  %v2240 = vld [vmem:[%s1 + $0x8] sm:$0xf]
  %v2241 = vld [vmem:[%s1 + $0xc] sm:$0xf]
  %v2242 = vld [vmem:[%s1 + $0x10] sm:$0xf]
  %v2243 = vld [vmem:[%s1 + $0x14] sm:$0xf]
  %v2244 = vld [vmem:[%s1 + $0x18] sm:$0xf]
  %v2245 = vld [vmem:[%s1 + $0x1c] sm:$0xf]
  %v2246 = vld [vmem:[%s1 + $0x20] sm:$0xf]
  %v2247 = vld [vmem:[%s1 + $0x24] sm:$0xf]
  %v2248 = vld [vmem:[%s1 + $0x28] sm:$0xf]
  %v2249 = vld [vmem:[%s1 + $0x2c] sm:$0xf]
  %v2250 = vld [vmem:[%s1 + $0x30] sm:$0xf]
  %v2251 = vld [vmem:[%s1 + $0x34] sm:$0xf]
  %v2252 = vld [vmem:[%s1 + $0x38] sm:$0xf]
  %v2253 = vld [vmem:[%s1 + $0x3c] sm:$0xf]
  %v2254 = vld [vmem:[%s1 + $0x40] sm:$0xf]
  %v2255 = vld [vmem:[%s1 + $0x44] sm:$0xf]
  %v2256 = vld [vmem:[%s1 + $0x48] sm:$0xf]
  %v2257 = vld [vmem:[%s1 + $0x4c] sm:$0xf]
  %v2258 = vld [vmem:[%s1 + $0x50] sm:$0xf]
  %v2259 = vld [vmem:[%s1 + $0x54] sm:$0xf]
  %v2260 = vld [vmem:[%s1 + $0x58] sm:$0xf]
  %v2261 = vld [vmem:[%s1 + $0x5c] sm:$0xf]
  %v2262 = vld [vmem:[%s1 + $0x60] sm:$0xf]
  %v2263 = vld [vmem:[%s1 + $0x64] sm:$0xf]
  %v2264 = vld [vmem:[%s1 + $0x68] sm:$0xf]
  %v2265 = vld [vmem:[%s1 + $0x6c] sm:$0xf]
  %v2266 = vld [vmem:[%s1 + $0x70] sm:$0xf]
  %v2267 = vld [vmem:[%s1 + $0x74] sm:$0xf]
  %v2268 = vld [vmem:[%s1 + $0x78] sm:$0xf]
  %v2269 = vld [vmem:[%s1 + $0x7c] sm:$0xf]
  %v2270 = vld [vmem:[%s2] sm:$0x1]
  %v2272 = vperm.slane %v2270, 0
  %v2278 = vunpack.c.l.b16 %v2234
  %v2279 = vunpack.c.h.b16 %v2234
  %v2280 = vunpack.c.l.b16 %v2235
  %v2281 = vunpack.c.h.b16 %v2235
  %v2282 = vunpack.c.l.b16 %v2236
  %v2283 = vunpack.c.h.b16 %v2236
  %v2284 = vunpack.c.l.b16 %v2237
  %v2285 = vunpack.c.h.b16 %v2237
  %v2286 = vpack.c.b16 %v2280, %v2278
  %v2287 = vpack.c.b16 %v2281, %v2279
  %v2288 = vpack.c.b16 %v2284, %v2282
  %v2289 = vpack.c.b16 %v2285, %v2283
  %v2326 = vunpack.c.l.b16 %v2238
  %v2327 = vunpack.c.l.b16 %v2239
  %v2328 = vunpack.c.l.b16 %v2240
  %v2329 = vunpack.c.l.b16 %v2241
  %v2330 = vunpack.c.l.b16 %v2242
  %v2331 = vunpack.c.l.b16 %v2243
  %v2332 = vunpack.c.l.b16 %v2244
  %v2333 = vunpack.c.l.b16 %v2245
  %v2334 = vunpack.c.l.b16 %v2246
  %v2335 = vunpack.c.l.b16 %v2247
  %v2336 = vunpack.c.l.b16 %v2248
  %v2337 = vunpack.c.l.b16 %v2249
  %v2338 = vunpack.c.l.b16 %v2250
  %v2339 = vunpack.c.l.b16 %v2251
  %v2340 = vunpack.c.l.b16 %v2252
  %v2341 = vunpack.c.l.b16 %v2253
  %v2342 = vunpack.c.l.b16 %v2254
  %v2343 = vunpack.c.l.b16 %v2255
  %v2344 = vunpack.c.l.b16 %v2256
  %v2345 = vunpack.c.l.b16 %v2257
  %v2346 = vunpack.c.l.b16 %v2258
  %v2347 = vunpack.c.l.b16 %v2259
  %v2348 = vunpack.c.l.b16 %v2260
  %v2349 = vunpack.c.l.b16 %v2261
  %v2350 = vunpack.c.l.b16 %v2262
  %v2351 = vunpack.c.l.b16 %v2263
  %v2352 = vunpack.c.l.b16 %v2264
  %v2353 = vunpack.c.l.b16 %v2265
  %v2354 = vunpack.c.l.b16 %v2266
  %v2355 = vunpack.c.l.b16 %v2267
  %v2356 = vunpack.c.l.b16 %v2268
  %v2357 = vunpack.c.l.b16 %v2269
  %v2358 = vpack.c.b16 %v2327, %v2326
  %v2359 = vpack.c.b16 %v2329, %v2328
  %v2360 = vpack.c.b16 %v2331, %v2330
  %v2361 = vpack.c.b16 %v2333, %v2332
  %v2362 = vpack.c.b16 %v2335, %v2334
  %v2363 = vpack.c.b16 %v2337, %v2336
  %v2364 = vpack.c.b16 %v2339, %v2338
  %v2365 = vpack.c.b16 %v2341, %v2340
  %v2366 = vpack.c.b16 %v2343, %v2342
  %v2367 = vpack.c.b16 %v2345, %v2344
  %v2368 = vpack.c.b16 %v2347, %v2346
  %v2369 = vpack.c.b16 %v2349, %v2348
  %v2370 = vpack.c.b16 %v2351, %v2350
  %v2371 = vpack.c.b16 %v2353, %v2352
  %v2372 = vpack.c.b16 %v2355, %v2354
  %v2373 = vpack.c.b16 %v2357, %v2356
  %2390 = vmatpush.bf16.msra.mxu0 %v2365
  %2391 = vmatpush.bf16.msra.mxu0 %v2364
  %2392 = vmatpush.bf16.msra.mxu0 %v2363
  %2393 = vmatpush.bf16.msra.mxu0 %v2362
  %2394 = vmatpush.bf16.msra.mxu0 %v2361
  %2395 = vmatpush.bf16.msra.mxu0 %v2360
  %2396 = vmatpush.bf16.msra.mxu0 %v2359
  %2397 = vmatpush.bf16.msra.mxu0 %v2358
  %2398 = vmatmul.bf16.gmra.mxu0 %v2286
  %v2399 = vpop.f32.mrf.mxu0
  %v2400 = vadd.f32 %v2272, %v2399
  %v2401 = vpop.f32.mrf.mxu0
  %v2402 = vadd.f32 %v2272, %v2401
  %2403 = vmatmul.bf16.gmra.mxu0 %v2288
  %v2404 = vpop.f32.mrf.mxu0
  %v2405 = vadd.f32 %v2272, %v2404
  %v2406 = vpop.f32.mrf.mxu0
  %v2407 = vadd.f32 %v2272, %v2406
  %2408 = vdwg.mxu0
  %2409 = vmatpush.bf16.msra.mxu0 %v2373
  %2410 = vmatpush.bf16.msra.mxu0 %v2372
  %2411 = vmatpush.bf16.msra.mxu0 %v2371
  %2412 = vmatpush.bf16.msra.mxu0 %v2370
  %2413 = vmatpush.bf16.msra.mxu0 %v2369
  %2414 = vmatpush.bf16.msra.mxu0 %v2368
  %2415 = vmatpush.bf16.msra.mxu0 %v2367
  %2416 = vmatpush.bf16.msra.mxu0 %v2366
  %2417 = vmatmul.bf16.gmra.mxu0 %v2287
  %v2418 = vpop.f32.mrf.mxu0
  %v2419 = vadd.f32 %v2400, %v2418
  %v2420 = vpop.f32.mrf.mxu0
  %v2421 = vadd.f32 %v2402, %v2420
  %2422 = vmatmul.bf16.gmra.mxu0 %v2289
  %v2423 = vpop.f32.mrf.mxu0
  %v2424 = vadd.f32 %v2405, %v2423
  %v2425 = vpop.f32.mrf.mxu0
  %v2426 = vadd.f32 %v2407, %v2425
  %2427 = vdwg.mxu0
  %v2428 = vmax.f32 %v2419, 0.0
  %v2429 = vmax.f32 %v2421, 0.0
  %v2430 = vmax.f32 %v2424, 0.0
  %v2431 = vmax.f32 %v2426, 0.0
  %v2432 = vpack.c.bf16 %v2428, %v2428
  %v2433 = vpack.c.bf16 %v2429, %v2429
  %v2434 = vpack.c.bf16 %v2430, %v2430
  %v2435 = vpack.c.bf16 %v2431, %v2431
  %2440 = vrot.lane.b32.xlu0 %v2432, 32
  %v2441 = vpop.permute.xlu0 %2440
  %2442 = vrot.lane.b32.xlu0 %v2433, 32
  %v2443 = vpop.permute.xlu0 %2442
  %2444 = vrot.lane.b32.xlu0 %v2434, 32
  %v2445 = vpop.permute.xlu0 %2444
  %2446 = vrot.lane.b32.xlu0 %v2435, 32
  %v2447 = vpop.permute.xlu0 %2446
  %2452 = vst.msk [vmem:[#allocation2 + $0x4] sm:$0xf] %vm686, %v2441
  %2453 = vst.msk [vmem:[#allocation2 + $0xc] sm:$0xf] %vm686, %v2443
  %2454 = vst.msk [vmem:[#allocation2 + $0x14] sm:$0xf] %vm686, %v2445
  %2455 = vst.msk [vmem:[#allocation2 + $0x1c] sm:$0xf] %vm686, %v2447
  %v2456 = vld [vmem:[%s0 + $0x58] sm:$0xff]
  %v2457 = vld [vmem:[%s0 + $0xd8] sm:$0xff]
  %v2458 = vld [vmem:[%s0 + $0x158] sm:$0xff]
  %v2459 = vld [vmem:[%s0 + $0x1d8] sm:$0xff]
  %v2460 = vld [vmem:[%s1] sm:$0xf]
  %v2461 = vld [vmem:[%s1 + $0x4] sm:$0xf]
  %v2462 = vld [vmem:[%s1 + $0x8] sm:$0xf]
  %v2463 = vld [vmem:[%s1 + $0xc] sm:$0xf]
  %v2464 = vld [vmem:[%s1 + $0x10] sm:$0xf]
  %v2465 = vld [vmem:[%s1 + $0x14] sm:$0xf]
  %v2466 = vld [vmem:[%s1 + $0x18] sm:$0xf]
  %v2467 = vld [vmem:[%s1 + $0x1c] sm:$0xf]
  %v2468 = vld [vmem:[%s1 + $0x20] sm:$0xf]
  %v2469 = vld [vmem:[%s1 + $0x24] sm:$0xf]
  %v2470 = vld [vmem:[%s1 + $0x28] sm:$0xf]
  %v2471 = vld [vmem:[%s1 + $0x2c] sm:$0xf]
  %v2472 = vld [vmem:[%s1 + $0x30] sm:$0xf]
  %v2473 = vld [vmem:[%s1 + $0x34] sm:$0xf]
  %v2474 = vld [vmem:[%s1 + $0x38] sm:$0xf]
  %v2475 = vld [vmem:[%s1 + $0x3c] sm:$0xf]
  %v2476 = vld [vmem:[%s1 + $0x40] sm:$0xf]
  %v2477 = vld [vmem:[%s1 + $0x44] sm:$0xf]
  %v2478 = vld [vmem:[%s1 + $0x48] sm:$0xf]
  %v2479 = vld [vmem:[%s1 + $0x4c] sm:$0xf]
  %v2480 = vld [vmem:[%s1 + $0x50] sm:$0xf]
  %v2481 = vld [vmem:[%s1 + $0x54] sm:$0xf]
  %v2482 = vld [vmem:[%s1 + $0x58] sm:$0xf]
  %v2483 = vld [vmem:[%s1 + $0x5c] sm:$0xf]
  %v2484 = vld [vmem:[%s1 + $0x60] sm:$0xf]
  %v2485 = vld [vmem:[%s1 + $0x64] sm:$0xf]
  %v2486 = vld [vmem:[%s1 + $0x68] sm:$0xf]
  %v2487 = vld [vmem:[%s1 + $0x6c] sm:$0xf]
  %v2488 = vld [vmem:[%s1 + $0x70] sm:$0xf]
  %v2489 = vld [vmem:[%s1 + $0x74] sm:$0xf]
  %v2490 = vld [vmem:[%s1 + $0x78] sm:$0xf]
  %v2491 = vld [vmem:[%s1 + $0x7c] sm:$0xf]
  %v2492 = vld [vmem:[%s2] sm:$0x1]
  %v2494 = vperm.slane %v2492, 0
  %v2500 = vunpack.c.l.b16 %v2456
  %v2501 = vunpack.c.h.b16 %v2456
  %v2502 = vunpack.c.l.b16 %v2457
  %v2503 = vunpack.c.h.b16 %v2457
  %v2504 = vunpack.c.l.b16 %v2458
  %v2505 = vunpack.c.h.b16 %v2458
  %v2506 = vunpack.c.l.b16 %v2459
  %v2507 = vunpack.c.h.b16 %v2459
  %v2508 = vpack.c.b16 %v2502, %v2500
  %v2509 = vpack.c.b16 %v2503, %v2501
  %v2510 = vpack.c.b16 %v2506, %v2504
  %v2511 = vpack.c.b16 %v2507, %v2505
  %v2548 = vunpack.c.l.b16 %v2460
  %v2549 = vunpack.c.l.b16 %v2461
  %v2550 = vunpack.c.l.b16 %v2462
  %v2551 = vunpack.c.l.b16 %v2463
  %v2552 = vunpack.c.l.b16 %v2464
  %v2553 = vunpack.c.l.b16 %v2465
  %v2554 = vunpack.c.l.b16 %v2466
  %v2555 = vunpack.c.l.b16 %v2467
  %v2556 = vunpack.c.l.b16 %v2468
  %v2557 = vunpack.c.l.b16 %v2469
  %v2558 = vunpack.c.l.b16 %v2470
  %v2559 = vunpack.c.l.b16 %v2471
  %v2560 = vunpack.c.l.b16 %v2472
  %v2561 = vunpack.c.l.b16 %v2473
  %v2562 = vunpack.c.l.b16 %v2474
  %v2563 = vunpack.c.l.b16 %v2475
  %v2564 = vunpack.c.l.b16 %v2476
  %v2565 = vunpack.c.l.b16 %v2477
  %v2566 = vunpack.c.l.b16 %v2478
  %v2567 = vunpack.c.l.b16 %v2479
  %v2568 = vunpack.c.l.b16 %v2480
  %v2569 = vunpack.c.l.b16 %v2481
  %v2570 = vunpack.c.l.b16 %v2482
  %v2571 = vunpack.c.l.b16 %v2483
  %v2572 = vunpack.c.l.b16 %v2484
  %v2573 = vunpack.c.l.b16 %v2485
  %v2574 = vunpack.c.l.b16 %v2486
  %v2575 = vunpack.c.l.b16 %v2487
  %v2576 = vunpack.c.l.b16 %v2488
  %v2577 = vunpack.c.l.b16 %v2489
  %v2578 = vunpack.c.l.b16 %v2490
  %v2579 = vunpack.c.l.b16 %v2491
  %v2580 = vpack.c.b16 %v2549, %v2548
  %v2581 = vpack.c.b16 %v2551, %v2550
  %v2582 = vpack.c.b16 %v2553, %v2552
  %v2583 = vpack.c.b16 %v2555, %v2554
  %v2584 = vpack.c.b16 %v2557, %v2556
  %v2585 = vpack.c.b16 %v2559, %v2558
  %v2586 = vpack.c.b16 %v2561, %v2560
  %v2587 = vpack.c.b16 %v2563, %v2562
  %v2588 = vpack.c.b16 %v2565, %v2564
  %v2589 = vpack.c.b16 %v2567, %v2566
  %v2590 = vpack.c.b16 %v2569, %v2568
  %v2591 = vpack.c.b16 %v2571, %v2570
  %v2592 = vpack.c.b16 %v2573, %v2572
  %v2593 = vpack.c.b16 %v2575, %v2574
  %v2594 = vpack.c.b16 %v2577, %v2576
  %v2595 = vpack.c.b16 %v2579, %v2578
  %2612 = vmatpush.bf16.msra.mxu0 %v2587
  %2613 = vmatpush.bf16.msra.mxu0 %v2586
  %2614 = vmatpush.bf16.msra.mxu0 %v2585
  %2615 = vmatpush.bf16.msra.mxu0 %v2584
  %2616 = vmatpush.bf16.msra.mxu0 %v2583
  %2617 = vmatpush.bf16.msra.mxu0 %v2582
  %2618 = vmatpush.bf16.msra.mxu0 %v2581
  %2619 = vmatpush.bf16.msra.mxu0 %v2580
  %2620 = vmatmul.bf16.gmra.mxu0 %v2508
  %v2621 = vpop.f32.mrf.mxu0
  %v2622 = vadd.f32 %v2494, %v2621
  %v2623 = vpop.f32.mrf.mxu0
  %v2624 = vadd.f32 %v2494, %v2623
  %2625 = vmatmul.bf16.gmra.mxu0 %v2510
  %v2626 = vpop.f32.mrf.mxu0
  %v2627 = vadd.f32 %v2494, %v2626
  %v2628 = vpop.f32.mrf.mxu0
  %v2629 = vadd.f32 %v2494, %v2628
  %2630 = vdwg.mxu0
  %2631 = vmatpush.bf16.msra.mxu0 %v2595
  %2632 = vmatpush.bf16.msra.mxu0 %v2594
  %2633 = vmatpush.bf16.msra.mxu0 %v2593
  %2634 = vmatpush.bf16.msra.mxu0 %v2592
  %2635 = vmatpush.bf16.msra.mxu0 %v2591
  %2636 = vmatpush.bf16.msra.mxu0 %v2590
  %2637 = vmatpush.bf16.msra.mxu0 %v2589
  %2638 = vmatpush.bf16.msra.mxu0 %v2588
  %2639 = vmatmul.bf16.gmra.mxu0 %v2509
  %v2640 = vpop.f32.mrf.mxu0
  %v2641 = vadd.f32 %v2622, %v2640
  %v2642 = vpop.f32.mrf.mxu0
  %v2643 = vadd.f32 %v2624, %v2642
  %2644 = vmatmul.bf16.gmra.mxu0 %v2511
  %v2645 = vpop.f32.mrf.mxu0
  %v2646 = vadd.f32 %v2627, %v2645
  %v2647 = vpop.f32.mrf.mxu0
  %v2648 = vadd.f32 %v2629, %v2647
  %2649 = vdwg.mxu0
  %v2650 = vmax.f32 %v2641, 0.0
  %v2651 = vmax.f32 %v2643, 0.0
  %v2652 = vmax.f32 %v2646, 0.0
  %v2653 = vmax.f32 %v2648, 0.0
  %v2654 = vpack.c.bf16 %v2650, %v2650
  %v2655 = vpack.c.bf16 %v2651, %v2651
  %v2656 = vpack.c.bf16 %v2652, %v2652
  %v2657 = vpack.c.bf16 %v2653, %v2653
  %2662 = vrot.lane.b32.xlu0 %v2654, 48
  %v2663 = vpop.permute.xlu0 %2662
  %2664 = vrot.lane.b32.xlu0 %v2655, 48
  %v2665 = vpop.permute.xlu0 %2664
  %2666 = vrot.lane.b32.xlu0 %v2656, 48
  %v2667 = vpop.permute.xlu0 %2666
  %2668 = vrot.lane.b32.xlu0 %v2657, 48
  %v2669 = vpop.permute.xlu0 %2668
  %2674 = vst.msk [vmem:[#allocation2 + $0x4] sm:$0xf] %vm909, %v2663
  %2675 = vst.msk [vmem:[#allocation2 + $0xc] sm:$0xf] %vm909, %v2665
  %2676 = vst.msk [vmem:[#allocation2 + $0x14] sm:$0xf] %vm909, %v2667
  %2677 = vst.msk [vmem:[#allocation2 + $0x1c] sm:$0xf] %vm909, %v2669
  %v2678 = vld [vmem:[%s0 + $0x60] sm:$0xff]
  %v2679 = vld [vmem:[%s0 + $0xe0] sm:$0xff]
  %v2680 = vld [vmem:[%s0 + $0x160] sm:$0xff]
  %v2681 = vld [vmem:[%s0 + $0x1e0] sm:$0xff]
  %v2682 = vld [vmem:[%s1] sm:$0xf]
  %v2683 = vld [vmem:[%s1 + $0x4] sm:$0xf]
  %v2684 = vld [vmem:[%s1 + $0x8] sm:$0xf]
  %v2685 = vld [vmem:[%s1 + $0xc] sm:$0xf]
  %v2686 = vld [vmem:[%s1 + $0x10] sm:$0xf]
  %v2687 = vld [vmem:[%s1 + $0x14] sm:$0xf]
  %v2688 = vld [vmem:[%s1 + $0x18] sm:$0xf]
  %v2689 = vld [vmem:[%s1 + $0x1c] sm:$0xf]
  %v2690 = vld [vmem:[%s1 + $0x20] sm:$0xf]
  %v2691 = vld [vmem:[%s1 + $0x24] sm:$0xf]
  %v2692 = vld [vmem:[%s1 + $0x28] sm:$0xf]
  %v2693 = vld [vmem:[%s1 + $0x2c] sm:$0xf]
  %v2694 = vld [vmem:[%s1 + $0x30] sm:$0xf]
  %v2695 = vld [vmem:[%s1 + $0x34] sm:$0xf]
  %v2696 = vld [vmem:[%s1 + $0x38] sm:$0xf]
  %v2697 = vld [vmem:[%s1 + $0x3c] sm:$0xf]
  %v2698 = vld [vmem:[%s1 + $0x40] sm:$0xf]
  %v2699 = vld [vmem:[%s1 + $0x44] sm:$0xf]
  %v2700 = vld [vmem:[%s1 + $0x48] sm:$0xf]
  %v2701 = vld [vmem:[%s1 + $0x4c] sm:$0xf]
  %v2702 = vld [vmem:[%s1 + $0x50] sm:$0xf]
  %v2703 = vld [vmem:[%s1 + $0x54] sm:$0xf]
  %v2704 = vld [vmem:[%s1 + $0x58] sm:$0xf]
  %v2705 = vld [vmem:[%s1 + $0x5c] sm:$0xf]
  %v2706 = vld [vmem:[%s1 + $0x60] sm:$0xf]
  %v2707 = vld [vmem:[%s1 + $0x64] sm:$0xf]
  %v2708 = vld [vmem:[%s1 + $0x68] sm:$0xf]
  %v2709 = vld [vmem:[%s1 + $0x6c] sm:$0xf]
  %v2710 = vld [vmem:[%s1 + $0x70] sm:$0xf]
  %v2711 = vld [vmem:[%s1 + $0x74] sm:$0xf]
  %v2712 = vld [vmem:[%s1 + $0x78] sm:$0xf]
  %v2713 = vld [vmem:[%s1 + $0x7c] sm:$0xf]
  %v2714 = vld [vmem:[%s2] sm:$0x1]
  %v2716 = vperm.slane %v2714, 0
  %v2722 = vunpack.c.l.b16 %v2678
  %v2723 = vunpack.c.h.b16 %v2678
  %v2724 = vunpack.c.l.b16 %v2679
  %v2725 = vunpack.c.h.b16 %v2679
  %v2726 = vunpack.c.l.b16 %v2680
  %v2727 = vunpack.c.h.b16 %v2680
  %v2728 = vunpack.c.l.b16 %v2681
  %v2729 = vunpack.c.h.b16 %v2681
  %v2730 = vpack.c.b16 %v2724, %v2722
  %v2731 = vpack.c.b16 %v2725, %v2723
  %v2732 = vpack.c.b16 %v2728, %v2726
  %v2733 = vpack.c.b16 %v2729, %v2727
  %v2770 = vunpack.c.l.b16 %v2682
  %v2771 = vunpack.c.l.b16 %v2683
  %v2772 = vunpack.c.l.b16 %v2684
  %v2773 = vunpack.c.l.b16 %v2685
  %v2774 = vunpack.c.l.b16 %v2686
  %v2775 = vunpack.c.l.b16 %v2687
  %v2776 = vunpack.c.l.b16 %v2688
  %v2777 = vunpack.c.l.b16 %v2689
  %v2778 = vunpack.c.l.b16 %v2690
  %v2779 = vunpack.c.l.b16 %v2691
  %v2780 = vunpack.c.l.b16 %v2692
  %v2781 = vunpack.c.l.b16 %v2693
  %v2782 = vunpack.c.l.b16 %v2694
  %v2783 = vunpack.c.l.b16 %v2695
  %v2784 = vunpack.c.l.b16 %v2696
  %v2785 = vunpack.c.l.b16 %v2697
  %v2786 = vunpack.c.l.b16 %v2698
  %v2787 = vunpack.c.l.b16 %v2699
  %v2788 = vunpack.c.l.b16 %v2700
  %v2789 = vunpack.c.l.b16 %v2701
  %v2790 = vunpack.c.l.b16 %v2702
  %v2791 = vunpack.c.l.b16 %v2703
  %v2792 = vunpack.c.l.b16 %v2704
  %v2793 = vunpack.c.l.b16 %v2705
  %v2794 = vunpack.c.l.b16 %v2706
  %v2795 = vunpack.c.l.b16 %v2707
  %v2796 = vunpack.c.l.b16 %v2708
  %v2797 = vunpack.c.l.b16 %v2709
  %v2798 = vunpack.c.l.b16 %v2710
  %v2799 = vunpack.c.l.b16 %v2711
  %v2800 = vunpack.c.l.b16 %v2712
  %v2801 = vunpack.c.l.b16 %v2713
  %v2802 = vpack.c.b16 %v2771, %v2770
  %v2803 = vpack.c.b16 %v2773, %v2772
  %v2804 = vpack.c.b16 %v2775, %v2774
  %v2805 = vpack.c.b16 %v2777, %v2776
  %v2806 = vpack.c.b16 %v2779, %v2778
  %v2807 = vpack.c.b16 %v2781, %v2780
  %v2808 = vpack.c.b16 %v2783, %v2782
  %v2809 = vpack.c.b16 %v2785, %v2784
  %v2810 = vpack.c.b16 %v2787, %v2786
  %v2811 = vpack.c.b16 %v2789, %v2788
  %v2812 = vpack.c.b16 %v2791, %v2790
  %v2813 = vpack.c.b16 %v2793, %v2792
  %v2814 = vpack.c.b16 %v2795, %v2794
  %v2815 = vpack.c.b16 %v2797, %v2796
  %v2816 = vpack.c.b16 %v2799, %v2798
  %v2817 = vpack.c.b16 %v2801, %v2800
  %2834 = vmatpush.bf16.msra.mxu0 %v2809
  %2835 = vmatpush.bf16.msra.mxu0 %v2808
  %2836 = vmatpush.bf16.msra.mxu0 %v2807
  %2837 = vmatpush.bf16.msra.mxu0 %v2806
  %2838 = vmatpush.bf16.msra.mxu0 %v2805
  %2839 = vmatpush.bf16.msra.mxu0 %v2804
  %2840 = vmatpush.bf16.msra.mxu0 %v2803
  %2841 = vmatpush.bf16.msra.mxu0 %v2802
  %2842 = vmatmul.bf16.gmra.mxu0 %v2730
  %v2843 = vpop.f32.mrf.mxu0
  %v2844 = vadd.f32 %v2716, %v2843
  %v2845 = vpop.f32.mrf.mxu0
  %v2846 = vadd.f32 %v2716, %v2845
  %2847 = vmatmul.bf16.gmra.mxu0 %v2732
  %v2848 = vpop.f32.mrf.mxu0
  %v2849 = vadd.f32 %v2716, %v2848
  %v2850 = vpop.f32.mrf.mxu0
  %v2851 = vadd.f32 %v2716, %v2850
  %2852 = vdwg.mxu0
  %2853 = vmatpush.bf16.msra.mxu0 %v2817
  %2854 = vmatpush.bf16.msra.mxu0 %v2816
  %2855 = vmatpush.bf16.msra.mxu0 %v2815
  %2856 = vmatpush.bf16.msra.mxu0 %v2814
  %2857 = vmatpush.bf16.msra.mxu0 %v2813
  %2858 = vmatpush.bf16.msra.mxu0 %v2812
  %2859 = vmatpush.bf16.msra.mxu0 %v2811
  %2860 = vmatpush.bf16.msra.mxu0 %v2810
  %2861 = vmatmul.bf16.gmra.mxu0 %v2731
  %v2862 = vpop.f32.mrf.mxu0
  %v2863 = vadd.f32 %v2844, %v2862
  %v2864 = vpop.f32.mrf.mxu0
  %v2865 = vadd.f32 %v2846, %v2864
  %2866 = vmatmul.bf16.gmra.mxu0 %v2733
  %v2867 = vpop.f32.mrf.mxu0
  %v2868 = vadd.f32 %v2849, %v2867
  %v2869 = vpop.f32.mrf.mxu0
  %v2870 = vadd.f32 %v2851, %v2869
  %2871 = vdwg.mxu0
  %v2872 = vmax.f32 %v2863, 0.0
  %v2873 = vmax.f32 %v2865, 0.0
  %v2874 = vmax.f32 %v2868, 0.0
  %v2875 = vmax.f32 %v2870, 0.0
  %v2876 = vpack.c.bf16 %v2872, %v2872
  %v2877 = vpack.c.bf16 %v2873, %v2873
  %v2878 = vpack.c.bf16 %v2874, %v2874
  %v2879 = vpack.c.bf16 %v2875, %v2875
  %2884 = vrot.lane.b32.xlu0 %v2876, 64
  %v2885 = vpop.permute.xlu0 %2884
  %2886 = vrot.lane.b32.xlu0 %v2877, 64
  %v2887 = vpop.permute.xlu0 %2886
  %2888 = vrot.lane.b32.xlu0 %v2878, 64
  %v2889 = vpop.permute.xlu0 %2888
  %2890 = vrot.lane.b32.xlu0 %v2879, 64
  %v2891 = vpop.permute.xlu0 %2890
  %2896 = vst.msk [vmem:[#allocation2 + $0x4] sm:$0xf] %vm1132, %v2885
  %2897 = vst.msk [vmem:[#allocation2 + $0xc] sm:$0xf] %vm1132, %v2887
  %2898 = vst.msk [vmem:[#allocation2 + $0x14] sm:$0xf] %vm1132, %v2889
  %2899 = vst.msk [vmem:[#allocation2 + $0x1c] sm:$0xf] %vm1132, %v2891
  %v2900 = vld [vmem:[%s0 + $0x68] sm:$0xff]
  %v2901 = vld [vmem:[%s0 + $0xe8] sm:$0xff]
  %v2902 = vld [vmem:[%s0 + $0x168] sm:$0xff]
  %v2903 = vld [vmem:[%s0 + $0x1e8] sm:$0xff]
  %v2904 = vld [vmem:[%s1] sm:$0xf]
  %v2905 = vld [vmem:[%s1 + $0x4] sm:$0xf]
  %v2906 = vld [vmem:[%s1 + $0x8] sm:$0xf]
  %v2907 = vld [vmem:[%s1 + $0xc] sm:$0xf]
  %v2908 = vld [vmem:[%s1 + $0x10] sm:$0xf]
  %v2909 = vld [vmem:[%s1 + $0x14] sm:$0xf]
  %v2910 = vld [vmem:[%s1 + $0x18] sm:$0xf]
  %v2911 = vld [vmem:[%s1 + $0x1c] sm:$0xf]
  %v2912 = vld [vmem:[%s1 + $0x20] sm:$0xf]
  %v2913 = vld [vmem:[%s1 + $0x24] sm:$0xf]
  %v2914 = vld [vmem:[%s1 + $0x28] sm:$0xf]
  %v2915 = vld [vmem:[%s1 + $0x2c] sm:$0xf]
  %v2916 = vld [vmem:[%s1 + $0x30] sm:$0xf]
  %v2917 = vld [vmem:[%s1 + $0x34] sm:$0xf]
  %v2918 = vld [vmem:[%s1 + $0x38] sm:$0xf]
  %v2919 = vld [vmem:[%s1 + $0x3c] sm:$0xf]
  %v2920 = vld [vmem:[%s1 + $0x40] sm:$0xf]
  %v2921 = vld [vmem:[%s1 + $0x44] sm:$0xf]
  %v2922 = vld [vmem:[%s1 + $0x48] sm:$0xf]
  %v2923 = vld [vmem:[%s1 + $0x4c] sm:$0xf]
  %v2924 = vld [vmem:[%s1 + $0x50] sm:$0xf]
  %v2925 = vld [vmem:[%s1 + $0x54] sm:$0xf]
  %v2926 = vld [vmem:[%s1 + $0x58] sm:$0xf]
  %v2927 = vld [vmem:[%s1 + $0x5c] sm:$0xf]
  %v2928 = vld [vmem:[%s1 + $0x60] sm:$0xf]
  %v2929 = vld [vmem:[%s1 + $0x64] sm:$0xf]
  %v2930 = vld [vmem:[%s1 + $0x68] sm:$0xf]
  %v2931 = vld [vmem:[%s1 + $0x6c] sm:$0xf]
  %v2932 = vld [vmem:[%s1 + $0x70] sm:$0xf]
  %v2933 = vld [vmem:[%s1 + $0x74] sm:$0xf]
  %v2934 = vld [vmem:[%s1 + $0x78] sm:$0xf]
  %v2935 = vld [vmem:[%s1 + $0x7c] sm:$0xf]
  %v2936 = vld [vmem:[%s2] sm:$0x1]
  %v2938 = vperm.slane %v2936, 0
  %v2944 = vunpack.c.l.b16 %v2900
  %v2945 = vunpack.c.h.b16 %v2900
  %v2946 = vunpack.c.l.b16 %v2901
  %v2947 = vunpack.c.h.b16 %v2901
  %v2948 = vunpack.c.l.b16 %v2902
  %v2949 = vunpack.c.h.b16 %v2902
  %v2950 = vunpack.c.l.b16 %v2903
  %v2951 = vunpack.c.h.b16 %v2903
  %v2952 = vpack.c.b16 %v2946, %v2944
  %v2953 = vpack.c.b16 %v2947, %v2945
  %v2954 = vpack.c.b16 %v2950, %v2948
  %v2955 = vpack.c.b16 %v2951, %v2949
  %v2992 = vunpack.c.l.b16 %v2904
  %v2993 = vunpack.c.l.b16 %v2905
  %v2994 = vunpack.c.l.b16 %v2906
  %v2995 = vunpack.c.l.b16 %v2907
  %v2996 = vunpack.c.l.b16 %v2908
  %v2997 = vunpack.c.l.b16 %v2909
  %v2998 = vunpack.c.l.b16 %v2910
  %v2999 = vunpack.c.l.b16 %v2911
  %v3000 = vunpack.c.l.b16 %v2912
  %v3001 = vunpack.c.l.b16 %v2913
  %v3002 = vunpack.c.l.b16 %v2914
  %v3003 = vunpack.c.l.b16 %v2915
  %v3004 = vunpack.c.l.b16 %v2916
  %v3005 = vunpack.c.l.b16 %v2917
  %v3006 = vunpack.c.l.b16 %v2918
  %v3007 = vunpack.c.l.b16 %v2919
  %v3008 = vunpack.c.l.b16 %v2920
  %v3009 = vunpack.c.l.b16 %v2921
  %v3010 = vunpack.c.l.b16 %v2922
  %v3011 = vunpack.c.l.b16 %v2923
  %v3012 = vunpack.c.l.b16 %v2924
  %v3013 = vunpack.c.l.b16 %v2925
  %v3014 = vunpack.c.l.b16 %v2926
  %v3015 = vunpack.c.l.b16 %v2927
  %v3016 = vunpack.c.l.b16 %v2928
  %v3017 = vunpack.c.l.b16 %v2929
  %v3018 = vunpack.c.l.b16 %v2930
  %v3019 = vunpack.c.l.b16 %v2931
  %v3020 = vunpack.c.l.b16 %v2932
  %v3021 = vunpack.c.l.b16 %v2933
  %v3022 = vunpack.c.l.b16 %v2934
  %v3023 = vunpack.c.l.b16 %v2935
  %v3024 = vpack.c.b16 %v2993, %v2992
  %v3025 = vpack.c.b16 %v2995, %v2994
  %v3026 = vpack.c.b16 %v2997, %v2996
  %v3027 = vpack.c.b16 %v2999, %v2998
  %v3028 = vpack.c.b16 %v3001, %v3000
  %v3029 = vpack.c.b16 %v3003, %v3002
  %v3030 = vpack.c.b16 %v3005, %v3004
  %v3031 = vpack.c.b16 %v3007, %v3006
  %v3032 = vpack.c.b16 %v3009, %v3008
  %v3033 = vpack.c.b16 %v3011, %v3010
  %v3034 = vpack.c.b16 %v3013, %v3012
  %v3035 = vpack.c.b16 %v3015, %v3014
  %v3036 = vpack.c.b16 %v3017, %v3016
  %v3037 = vpack.c.b16 %v3019, %v3018
  %v3038 = vpack.c.b16 %v3021, %v3020
  %v3039 = vpack.c.b16 %v3023, %v3022
  %3056 = vmatpush.bf16.msra.mxu0 %v3031
  %3057 = vmatpush.bf16.msra.mxu0 %v3030
  %3058 = vmatpush.bf16.msra.mxu0 %v3029
  %3059 = vmatpush.bf16.msra.mxu0 %v3028
  %3060 = vmatpush.bf16.msra.mxu0 %v3027
  %3061 = vmatpush.bf16.msra.mxu0 %v3026
  %3062 = vmatpush.bf16.msra.mxu0 %v3025
  %3063 = vmatpush.bf16.msra.mxu0 %v3024
  %3064 = vmatmul.bf16.gmra.mxu0 %v2952
  %v3065 = vpop.f32.mrf.mxu0
  %v3066 = vadd.f32 %v2938, %v3065
  %v3067 = vpop.f32.mrf.mxu0
  %v3068 = vadd.f32 %v2938, %v3067
  %3069 = vmatmul.bf16.gmra.mxu0 %v2954
  %v3070 = vpop.f32.mrf.mxu0
  %v3071 = vadd.f32 %v2938, %v3070
  %v3072 = vpop.f32.mrf.mxu0
  %v3073 = vadd.f32 %v2938, %v3072
  %3074 = vdwg.mxu0
  %3075 = vmatpush.bf16.msra.mxu0 %v3039
  %3076 = vmatpush.bf16.msra.mxu0 %v3038
  %3077 = vmatpush.bf16.msra.mxu0 %v3037
  %3078 = vmatpush.bf16.msra.mxu0 %v3036
  %3079 = vmatpush.bf16.msra.mxu0 %v3035
  %3080 = vmatpush.bf16.msra.mxu0 %v3034
  %3081 = vmatpush.bf16.msra.mxu0 %v3033
  %3082 = vmatpush.bf16.msra.mxu0 %v3032
  %3083 = vmatmul.bf16.gmra.mxu0 %v2953
  %v3084 = vpop.f32.mrf.mxu0
  %v3085 = vadd.f32 %v3066, %v3084
  %v3086 = vpop.f32.mrf.mxu0
  %v3087 = vadd.f32 %v3068, %v3086
  %3088 = vmatmul.bf16.gmra.mxu0 %v2955
  %v3089 = vpop.f32.mrf.mxu0
  %v3090 = vadd.f32 %v3071, %v3089
  %v3091 = vpop.f32.mrf.mxu0
  %v3092 = vadd.f32 %v3073, %v3091
  %3093 = vdwg.mxu0
  %v3094 = vmax.f32 %v3085, 0.0
  %v3095 = vmax.f32 %v3087, 0.0
  %v3096 = vmax.f32 %v3090, 0.0
  %v3097 = vmax.f32 %v3092, 0.0
  %v3098 = vpack.c.bf16 %v3094, %v3094
  %v3099 = vpack.c.bf16 %v3095, %v3095
  %v3100 = vpack.c.bf16 %v3096, %v3096
  %v3101 = vpack.c.bf16 %v3097, %v3097
  %3106 = vrot.lane.b32.xlu0 %v3098, 80
  %v3107 = vpop.permute.xlu0 %3106
  %3108 = vrot.lane.b32.xlu0 %v3099, 80
  %v3109 = vpop.permute.xlu0 %3108
  %3110 = vrot.lane.b32.xlu0 %v3100, 80
  %v3111 = vpop.permute.xlu0 %3110
  %3112 = vrot.lane.b32.xlu0 %v3101, 80
  %v3113 = vpop.permute.xlu0 %3112
  %3118 = vst.msk [vmem:[#allocation2 + $0x4] sm:$0xf] %vm1355, %v3107
  %3119 = vst.msk [vmem:[#allocation2 + $0xc] sm:$0xf] %vm1355, %v3109
  %3120 = vst.msk [vmem:[#allocation2 + $0x14] sm:$0xf] %vm1355, %v3111
  %3121 = vst.msk [vmem:[#allocation2 + $0x1c] sm:$0xf] %vm1355, %v3113
  %v3122 = vld [vmem:[%s0 + $0x70] sm:$0xff]
  %v3123 = vld [vmem:[%s0 + $0xf0] sm:$0xff]
  %v3124 = vld [vmem:[%s0 + $0x170] sm:$0xff]
  %v3125 = vld [vmem:[%s0 + $0x1f0] sm:$0xff]
  %v3126 = vld [vmem:[%s1] sm:$0xf]
  %v3127 = vld [vmem:[%s1 + $0x4] sm:$0xf]
  %v3128 = vld [vmem:[%s1 + $0x8] sm:$0xf]
  %v3129 = vld [vmem:[%s1 + $0xc] sm:$0xf]
  %v3130 = vld [vmem:[%s1 + $0x10] sm:$0xf]
  %v3131 = vld [vmem:[%s1 + $0x14] sm:$0xf]
  %v3132 = vld [vmem:[%s1 + $0x18] sm:$0xf]
  %v3133 = vld [vmem:[%s1 + $0x1c] sm:$0xf]
  %v3134 = vld [vmem:[%s1 + $0x20] sm:$0xf]
  %v3135 = vld [vmem:[%s1 + $0x24] sm:$0xf]
  %v3136 = vld [vmem:[%s1 + $0x28] sm:$0xf]
  %v3137 = vld [vmem:[%s1 + $0x2c] sm:$0xf]
  %v3138 = vld [vmem:[%s1 + $0x30] sm:$0xf]
  %v3139 = vld [vmem:[%s1 + $0x34] sm:$0xf]
  %v3140 = vld [vmem:[%s1 + $0x38] sm:$0xf]
  %v3141 = vld [vmem:[%s1 + $0x3c] sm:$0xf]
  %v3142 = vld [vmem:[%s1 + $0x40] sm:$0xf]
  %v3143 = vld [vmem:[%s1 + $0x44] sm:$0xf]
  %v3144 = vld [vmem:[%s1 + $0x48] sm:$0xf]
  %v3145 = vld [vmem:[%s1 + $0x4c] sm:$0xf]
  %v3146 = vld [vmem:[%s1 + $0x50] sm:$0xf]
  %v3147 = vld [vmem:[%s1 + $0x54] sm:$0xf]
  %v3148 = vld [vmem:[%s1 + $0x58] sm:$0xf]
  %v3149 = vld [vmem:[%s1 + $0x5c] sm:$0xf]
  %v3150 = vld [vmem:[%s1 + $0x60] sm:$0xf]
  %v3151 = vld [vmem:[%s1 + $0x64] sm:$0xf]
  %v3152 = vld [vmem:[%s1 + $0x68] sm:$0xf]
  %v3153 = vld [vmem:[%s1 + $0x6c] sm:$0xf]
  %v3154 = vld [vmem:[%s1 + $0x70] sm:$0xf]
  %v3155 = vld [vmem:[%s1 + $0x74] sm:$0xf]
  %v3156 = vld [vmem:[%s1 + $0x78] sm:$0xf]
  %v3157 = vld [vmem:[%s1 + $0x7c] sm:$0xf]
  %v3158 = vld [vmem:[%s2] sm:$0x1]
  %v3160 = vperm.slane %v3158, 0
  %v3166 = vunpack.c.l.b16 %v3122
  %v3167 = vunpack.c.h.b16 %v3122
  %v3168 = vunpack.c.l.b16 %v3123
  %v3169 = vunpack.c.h.b16 %v3123
  %v3170 = vunpack.c.l.b16 %v3124
  %v3171 = vunpack.c.h.b16 %v3124
  %v3172 = vunpack.c.l.b16 %v3125
  %v3173 = vunpack.c.h.b16 %v3125
  %v3174 = vpack.c.b16 %v3168, %v3166
  %v3175 = vpack.c.b16 %v3169, %v3167
  %v3176 = vpack.c.b16 %v3172, %v3170
  %v3177 = vpack.c.b16 %v3173, %v3171
  %v3214 = vunpack.c.l.b16 %v3126
  %v3215 = vunpack.c.l.b16 %v3127
  %v3216 = vunpack.c.l.b16 %v3128
  %v3217 = vunpack.c.l.b16 %v3129
  %v3218 = vunpack.c.l.b16 %v3130
  %v3219 = vunpack.c.l.b16 %v3131
  %v3220 = vunpack.c.l.b16 %v3132
  %v3221 = vunpack.c.l.b16 %v3133
  %v3222 = vunpack.c.l.b16 %v3134
  %v3223 = vunpack.c.l.b16 %v3135
  %v3224 = vunpack.c.l.b16 %v3136
  %v3225 = vunpack.c.l.b16 %v3137
  %v3226 = vunpack.c.l.b16 %v3138
  %v3227 = vunpack.c.l.b16 %v3139
  %v3228 = vunpack.c.l.b16 %v3140
  %v3229 = vunpack.c.l.b16 %v3141
  %v3230 = vunpack.c.l.b16 %v3142
  %v3231 = vunpack.c.l.b16 %v3143
  %v3232 = vunpack.c.l.b16 %v3144
  %v3233 = vunpack.c.l.b16 %v3145
  %v3234 = vunpack.c.l.b16 %v3146
  %v3235 = vunpack.c.l.b16 %v3147
  %v3236 = vunpack.c.l.b16 %v3148
  %v3237 = vunpack.c.l.b16 %v3149
  %v3238 = vunpack.c.l.b16 %v3150
  %v3239 = vunpack.c.l.b16 %v3151
  %v3240 = vunpack.c.l.b16 %v3152
  %v3241 = vunpack.c.l.b16 %v3153
  %v3242 = vunpack.c.l.b16 %v3154
  %v3243 = vunpack.c.l.b16 %v3155
  %v3244 = vunpack.c.l.b16 %v3156
  %v3245 = vunpack.c.l.b16 %v3157
  %v3246 = vpack.c.b16 %v3215, %v3214
  %v3247 = vpack.c.b16 %v3217, %v3216
  %v3248 = vpack.c.b16 %v3219, %v3218
  %v3249 = vpack.c.b16 %v3221, %v3220
  %v3250 = vpack.c.b16 %v3223, %v3222
  %v3251 = vpack.c.b16 %v3225, %v3224
  %v3252 = vpack.c.b16 %v3227, %v3226
  %v3253 = vpack.c.b16 %v3229, %v3228
  %v3254 = vpack.c.b16 %v3231, %v3230
  %v3255 = vpack.c.b16 %v3233, %v3232
  %v3256 = vpack.c.b16 %v3235, %v3234
  %v3257 = vpack.c.b16 %v3237, %v3236
  %v3258 = vpack.c.b16 %v3239, %v3238
  %v3259 = vpack.c.b16 %v3241, %v3240
  %v3260 = vpack.c.b16 %v3243, %v3242
  %v3261 = vpack.c.b16 %v3245, %v3244
  %3278 = vmatpush.bf16.msra.mxu0 %v3253
  %3279 = vmatpush.bf16.msra.mxu0 %v3252
  %3280 = vmatpush.bf16.msra.mxu0 %v3251
  %3281 = vmatpush.bf16.msra.mxu0 %v3250
  %3282 = vmatpush.bf16.msra.mxu0 %v3249
  %3283 = vmatpush.bf16.msra.mxu0 %v3248
  %3284 = vmatpush.bf16.msra.mxu0 %v3247
  %3285 = vmatpush.bf16.msra.mxu0 %v3246
  %3286 = vmatmul.bf16.gmra.mxu0 %v3174
  %v3287 = vpop.f32.mrf.mxu0
  %v3288 = vadd.f32 %v3160, %v3287
  %v3289 = vpop.f32.mrf.mxu0
  %v3290 = vadd.f32 %v3160, %v3289
  %3291 = vmatmul.bf16.gmra.mxu0 %v3176
  %v3292 = vpop.f32.mrf.mxu0
  %v3293 = vadd.f32 %v3160, %v3292
  %v3294 = vpop.f32.mrf.mxu0
  %v3295 = vadd.f32 %v3160, %v3294
  %3296 = vdwg.mxu0
  %3297 = vmatpush.bf16.msra.mxu0 %v3261
  %3298 = vmatpush.bf16.msra.mxu0 %v3260
  %3299 = vmatpush.bf16.msra.mxu0 %v3259
  %3300 = vmatpush.bf16.msra.mxu0 %v3258
  %3301 = vmatpush.bf16.msra.mxu0 %v3257
  %3302 = vmatpush.bf16.msra.mxu0 %v3256
  %3303 = vmatpush.bf16.msra.mxu0 %v3255
  %3304 = vmatpush.bf16.msra.mxu0 %v3254
  %3305 = vmatmul.bf16.gmra.mxu0 %v3175
  %v3306 = vpop.f32.mrf.mxu0
  %v3307 = vadd.f32 %v3288, %v3306
  %v3308 = vpop.f32.mrf.mxu0
  %v3309 = vadd.f32 %v3290, %v3308
  %3310 = vmatmul.bf16.gmra.mxu0 %v3177
  %v3311 = vpop.f32.mrf.mxu0
  %v3312 = vadd.f32 %v3293, %v3311
  %v3313 = vpop.f32.mrf.mxu0
  %v3314 = vadd.f32 %v3295, %v3313
  %3315 = vdwg.mxu0
  %v3316 = vmax.f32 %v3307, 0.0
  %v3317 = vmax.f32 %v3309, 0.0
  %v3318 = vmax.f32 %v3312, 0.0
  %v3319 = vmax.f32 %v3314, 0.0
  %v3320 = vpack.c.bf16 %v3316, %v3316
  %v3321 = vpack.c.bf16 %v3317, %v3317
  %v3322 = vpack.c.bf16 %v3318, %v3318
  %v3323 = vpack.c.bf16 %v3319, %v3319
  %3328 = vrot.lane.b32.xlu0 %v3320, 96
  %v3329 = vpop.permute.xlu0 %3328
  %3330 = vrot.lane.b32.xlu0 %v3321, 96
  %v3331 = vpop.permute.xlu0 %3330
  %3332 = vrot.lane.b32.xlu0 %v3322, 96
  %v3333 = vpop.permute.xlu0 %3332
  %3334 = vrot.lane.b32.xlu0 %v3323, 96
  %v3335 = vpop.permute.xlu0 %3334
  %3340 = vst.msk [vmem:[#allocation2 + $0x4] sm:$0xf] %vm1578, %v3329
  %3341 = vst.msk [vmem:[#allocation2 + $0xc] sm:$0xf] %vm1578, %v3331
  %3342 = vst.msk [vmem:[#allocation2 + $0x14] sm:$0xf] %vm1578, %v3333
  %3343 = vst.msk [vmem:[#allocation2 + $0x1c] sm:$0xf] %vm1578, %v3335
  %v3344 = vld [vmem:[%s0 + $0x78] sm:$0xff]
  %v3345 = vld [vmem:[%s0 + $0xf8] sm:$0xff]
  %v3346 = vld [vmem:[%s0 + $0x178] sm:$0xff]
  %v3347 = vld [vmem:[%s0 + $0x1f8] sm:$0xff]
  %v3348 = vld [vmem:[%s1] sm:$0xf]
  %v3349 = vld [vmem:[%s1 + $0x4] sm:$0xf]
  %v3350 = vld [vmem:[%s1 + $0x8] sm:$0xf]
  %v3351 = vld [vmem:[%s1 + $0xc] sm:$0xf]
  %v3352 = vld [vmem:[%s1 + $0x10] sm:$0xf]
  %v3353 = vld [vmem:[%s1 + $0x14] sm:$0xf]
  %v3354 = vld [vmem:[%s1 + $0x18] sm:$0xf]
  %v3355 = vld [vmem:[%s1 + $0x1c] sm:$0xf]
  %v3356 = vld [vmem:[%s1 + $0x20] sm:$0xf]
  %v3357 = vld [vmem:[%s1 + $0x24] sm:$0xf]
  %v3358 = vld [vmem:[%s1 + $0x28] sm:$0xf]
  %v3359 = vld [vmem:[%s1 + $0x2c] sm:$0xf]
  %v3360 = vld [vmem:[%s1 + $0x30] sm:$0xf]
  %v3361 = vld [vmem:[%s1 + $0x34] sm:$0xf]
  %v3362 = vld [vmem:[%s1 + $0x38] sm:$0xf]
  %v3363 = vld [vmem:[%s1 + $0x3c] sm:$0xf]
  %v3364 = vld [vmem:[%s1 + $0x40] sm:$0xf]
  %v3365 = vld [vmem:[%s1 + $0x44] sm:$0xf]
  %v3366 = vld [vmem:[%s1 + $0x48] sm:$0xf]
  %v3367 = vld [vmem:[%s1 + $0x4c] sm:$0xf]
  %v3368 = vld [vmem:[%s1 + $0x50] sm:$0xf]
  %v3369 = vld [vmem:[%s1 + $0x54] sm:$0xf]
  %v3370 = vld [vmem:[%s1 + $0x58] sm:$0xf]
  %v3371 = vld [vmem:[%s1 + $0x5c] sm:$0xf]
  %v3372 = vld [vmem:[%s1 + $0x60] sm:$0xf]
  %v3373 = vld [vmem:[%s1 + $0x64] sm:$0xf]
  %v3374 = vld [vmem:[%s1 + $0x68] sm:$0xf]
  %v3375 = vld [vmem:[%s1 + $0x6c] sm:$0xf]
  %v3376 = vld [vmem:[%s1 + $0x70] sm:$0xf]
  %v3377 = vld [vmem:[%s1 + $0x74] sm:$0xf]
  %v3378 = vld [vmem:[%s1 + $0x78] sm:$0xf]
  %v3379 = vld [vmem:[%s1 + $0x7c] sm:$0xf]
  %v3380 = vld [vmem:[%s2] sm:$0x1]
  %v3382 = vperm.slane %v3380, 0
  %v3388 = vunpack.c.l.b16 %v3344
  %v3389 = vunpack.c.h.b16 %v3344
  %v3390 = vunpack.c.l.b16 %v3345
  %v3391 = vunpack.c.h.b16 %v3345
  %v3392 = vunpack.c.l.b16 %v3346
  %v3393 = vunpack.c.h.b16 %v3346
  %v3394 = vunpack.c.l.b16 %v3347
  %v3395 = vunpack.c.h.b16 %v3347
  %v3396 = vpack.c.b16 %v3390, %v3388
  %v3397 = vpack.c.b16 %v3391, %v3389
  %v3398 = vpack.c.b16 %v3394, %v3392
  %v3399 = vpack.c.b16 %v3395, %v3393
  %v3436 = vunpack.c.l.b16 %v3348
  %v3437 = vunpack.c.l.b16 %v3349
  %v3438 = vunpack.c.l.b16 %v3350
  %v3439 = vunpack.c.l.b16 %v3351
  %v3440 = vunpack.c.l.b16 %v3352
  %v3441 = vunpack.c.l.b16 %v3353
  %v3442 = vunpack.c.l.b16 %v3354
  %v3443 = vunpack.c.l.b16 %v3355
  %v3444 = vunpack.c.l.b16 %v3356
  %v3445 = vunpack.c.l.b16 %v3357
  %v3446 = vunpack.c.l.b16 %v3358
  %v3447 = vunpack.c.l.b16 %v3359
  %v3448 = vunpack.c.l.b16 %v3360
  %v3449 = vunpack.c.l.b16 %v3361
  %v3450 = vunpack.c.l.b16 %v3362
  %v3451 = vunpack.c.l.b16 %v3363
  %v3452 = vunpack.c.l.b16 %v3364
  %v3453 = vunpack.c.l.b16 %v3365
  %v3454 = vunpack.c.l.b16 %v3366
  %v3455 = vunpack.c.l.b16 %v3367
  %v3456 = vunpack.c.l.b16 %v3368
  %v3457 = vunpack.c.l.b16 %v3369
  %v3458 = vunpack.c.l.b16 %v3370
  %v3459 = vunpack.c.l.b16 %v3371
  %v3460 = vunpack.c.l.b16 %v3372
  %v3461 = vunpack.c.l.b16 %v3373
  %v3462 = vunpack.c.l.b16 %v3374
  %v3463 = vunpack.c.l.b16 %v3375
  %v3464 = vunpack.c.l.b16 %v3376
  %v3465 = vunpack.c.l.b16 %v3377
  %v3466 = vunpack.c.l.b16 %v3378
  %v3467 = vunpack.c.l.b16 %v3379
  %v3468 = vpack.c.b16 %v3437, %v3436
  %v3469 = vpack.c.b16 %v3439, %v3438
  %v3470 = vpack.c.b16 %v3441, %v3440
  %v3471 = vpack.c.b16 %v3443, %v3442
  %v3472 = vpack.c.b16 %v3445, %v3444
  %v3473 = vpack.c.b16 %v3447, %v3446
  %v3474 = vpack.c.b16 %v3449, %v3448
  %v3475 = vpack.c.b16 %v3451, %v3450
  %v3476 = vpack.c.b16 %v3453, %v3452
  %v3477 = vpack.c.b16 %v3455, %v3454
  %v3478 = vpack.c.b16 %v3457, %v3456
  %v3479 = vpack.c.b16 %v3459, %v3458
  %v3480 = vpack.c.b16 %v3461, %v3460
  %v3481 = vpack.c.b16 %v3463, %v3462
  %v3482 = vpack.c.b16 %v3465, %v3464
  %v3483 = vpack.c.b16 %v3467, %v3466
  %3500 = vmatpush.bf16.msra.mxu0 %v3475
  %3501 = vmatpush.bf16.msra.mxu0 %v3474
  %3502 = vmatpush.bf16.msra.mxu0 %v3473
  %3503 = vmatpush.bf16.msra.mxu0 %v3472
  %3504 = vmatpush.bf16.msra.mxu0 %v3471
  %3505 = vmatpush.bf16.msra.mxu0 %v3470
  %3506 = vmatpush.bf16.msra.mxu0 %v3469
  %3507 = vmatpush.bf16.msra.mxu0 %v3468
  %3508 = vmatmul.bf16.gmra.mxu0 %v3396
  %v3509 = vpop.f32.mrf.mxu0
  %v3510 = vadd.f32 %v3382, %v3509
  %v3511 = vpop.f32.mrf.mxu0
  %v3512 = vadd.f32 %v3382, %v3511
  %3513 = vmatmul.bf16.gmra.mxu0 %v3398
  %v3514 = vpop.f32.mrf.mxu0
  %v3515 = vadd.f32 %v3382, %v3514
  %v3516 = vpop.f32.mrf.mxu0
  %v3517 = vadd.f32 %v3382, %v3516
  %3518 = vdwg.mxu0
  %3519 = vmatpush.bf16.msra.mxu0 %v3483
  %3520 = vmatpush.bf16.msra.mxu0 %v3482
  %3521 = vmatpush.bf16.msra.mxu0 %v3481
  %3522 = vmatpush.bf16.msra.mxu0 %v3480
  %3523 = vmatpush.bf16.msra.mxu0 %v3479
  %3524 = vmatpush.bf16.msra.mxu0 %v3478
  %3525 = vmatpush.bf16.msra.mxu0 %v3477
  %3526 = vmatpush.bf16.msra.mxu0 %v3476
  %3527 = vmatmul.bf16.gmra.mxu0 %v3397
  %v3528 = vpop.f32.mrf.mxu0
  %v3529 = vadd.f32 %v3510, %v3528
  %v3530 = vpop.f32.mrf.mxu0
  %v3531 = vadd.f32 %v3512, %v3530
  %3532 = vmatmul.bf16.gmra.mxu0 %v3399
  %v3533 = vpop.f32.mrf.mxu0
  %v3534 = vadd.f32 %v3515, %v3533
  %v3535 = vpop.f32.mrf.mxu0
  %v3536 = vadd.f32 %v3517, %v3535
  %3537 = vdwg.mxu0
  %v3538 = vmax.f32 %v3529, 0.0
  %v3539 = vmax.f32 %v3531, 0.0
  %v3540 = vmax.f32 %v3534, 0.0
  %v3541 = vmax.f32 %v3536, 0.0
  %v3542 = vpack.c.bf16 %v3538, %v3538
  %v3543 = vpack.c.bf16 %v3539, %v3539
  %v3544 = vpack.c.bf16 %v3540, %v3540
  %v3545 = vpack.c.bf16 %v3541, %v3541
  %3550 = vrot.lane.b32.xlu0 %v3542, 112
  %v3551 = vpop.permute.xlu0 %3550
  %3552 = vrot.lane.b32.xlu0 %v3543, 112
  %v3553 = vpop.permute.xlu0 %3552
  %3554 = vrot.lane.b32.xlu0 %v3544, 112
  %v3555 = vpop.permute.xlu0 %3554
  %3556 = vrot.lane.b32.xlu0 %v3545, 112
  %v3557 = vpop.permute.xlu0 %3556
  %3562 = vst.msk [vmem:[#allocation2 + $0x4] sm:$0xf] %vm1801, %v3551
  %3563 = vst.msk [vmem:[#allocation2 + $0xc] sm:$0xf] %vm1801, %v3553
  %3564 = vst.msk [vmem:[#allocation2 + $0x14] sm:$0xf] %vm1801, %v3555
  %3565 = vst.msk [vmem:[#allocation2 + $0x1c] sm:$0xf] %vm1801, %v3557
  %v3566 = vld [vmem:[#allocation2] sm:$0xff]
  %v3567 = vld [vmem:[#allocation2 + $0x8] sm:$0xff]
  %v3568 = vld [vmem:[#allocation2 + $0x10] sm:$0xff]
  %v3569 = vld [vmem:[#allocation2 + $0x18] sm:$0xff]
  %v3570 = vld [vmem:[%s3] sm:$0xf]
  %v3571 = vld [vmem:[%s3 + $0x4] sm:$0xf]
  %v3572 = vld [vmem:[%s3 + $0x8] sm:$0xf]
  %v3573 = vld [vmem:[%s3 + $0xc] sm:$0xf]
  %v3574 = vld [vmem:[%s3 + $0x10] sm:$0xf]
  %v3575 = vld [vmem:[%s3 + $0x14] sm:$0xf]
  %v3576 = vld [vmem:[%s3 + $0x18] sm:$0xf]
  %v3577 = vld [vmem:[%s3 + $0x1c] sm:$0xf]
  %v3578 = vld [vmem:[%s3 + $0x20] sm:$0xf]
  %v3579 = vld [vmem:[%s3 + $0x24] sm:$0xf]
  %v3580 = vld [vmem:[%s3 + $0x28] sm:$0xf]
  %v3581 = vld [vmem:[%s3 + $0x2c] sm:$0xf]
  %v3582 = vld [vmem:[%s3 + $0x30] sm:$0xf]
  %v3583 = vld [vmem:[%s3 + $0x34] sm:$0xf]
  %v3584 = vld [vmem:[%s3 + $0x38] sm:$0xf]
  %v3585 = vld [vmem:[%s3 + $0x3c] sm:$0xf]
  %v3586 = vld [vmem:[%s3 + $0x40] sm:$0xf]
  %v3587 = vld [vmem:[%s3 + $0x44] sm:$0xf]
  %v3588 = vld [vmem:[%s3 + $0x48] sm:$0xf]
  %v3589 = vld [vmem:[%s3 + $0x4c] sm:$0xf]
  %v3590 = vld [vmem:[%s3 + $0x50] sm:$0xf]
  %v3591 = vld [vmem:[%s3 + $0x54] sm:$0xf]
  %v3592 = vld [vmem:[%s3 + $0x58] sm:$0xf]
  %v3593 = vld [vmem:[%s3 + $0x5c] sm:$0xf]
  %v3594 = vld [vmem:[%s3 + $0x60] sm:$0xf]
  %v3595 = vld [vmem:[%s3 + $0x64] sm:$0xf]
  %v3596 = vld [vmem:[%s3 + $0x68] sm:$0xf]
  %v3597 = vld [vmem:[%s3 + $0x6c] sm:$0xf]
  %v3598 = vld [vmem:[%s3 + $0x70] sm:$0xf]
  %v3599 = vld [vmem:[%s3 + $0x74] sm:$0xf]
  %v3600 = vld [vmem:[%s3 + $0x78] sm:$0xf]
  %v3601 = vld [vmem:[%s3 + $0x7c] sm:$0xf]
  %v3602 = vld [vmem:[%s4] sm:$0x1]
  %v3604 = vperm.slane %v3602, 0
  %v3610 = vunpack.c.l.b16 %v3566
  %v3611 = vunpack.c.h.b16 %v3566
  %v3612 = vunpack.c.l.b16 %v3567
  %v3613 = vunpack.c.h.b16 %v3567
  %v3614 = vunpack.c.l.b16 %v3568
  %v3615 = vunpack.c.h.b16 %v3568
  %v3616 = vunpack.c.l.b16 %v3569
  %v3617 = vunpack.c.h.b16 %v3569
  %v3618 = vpack.c.b16 %v3612, %v3610
  %v3619 = vpack.c.b16 %v3613, %v3611
  %v3620 = vpack.c.b16 %v3616, %v3614
  %v3621 = vpack.c.b16 %v3617, %v3615
  %v3658 = vunpack.c.l.b16 %v3570
  %v3659 = vunpack.c.l.b16 %v3571
  %v3660 = vunpack.c.l.b16 %v3572
  %v3661 = vunpack.c.l.b16 %v3573
  %v3662 = vunpack.c.l.b16 %v3574
  %v3663 = vunpack.c.l.b16 %v3575
  %v3664 = vunpack.c.l.b16 %v3576
  %v3665 = vunpack.c.l.b16 %v3577
  %v3666 = vunpack.c.l.b16 %v3578
  %v3667 = vunpack.c.l.b16 %v3579
  %v3668 = vunpack.c.l.b16 %v3580
  %v3669 = vunpack.c.l.b16 %v3581
  %v3670 = vunpack.c.l.b16 %v3582
  %v3671 = vunpack.c.l.b16 %v3583
  %v3672 = vunpack.c.l.b16 %v3584
  %v3673 = vunpack.c.l.b16 %v3585
  %v3674 = vunpack.c.l.b16 %v3586
  %v3675 = vunpack.c.l.b16 %v3587
  %v3676 = vunpack.c.l.b16 %v3588
  %v3677 = vunpack.c.l.b16 %v3589
  %v3678 = vunpack.c.l.b16 %v3590
  %v3679 = vunpack.c.l.b16 %v3591
  %v3680 = vunpack.c.l.b16 %v3592
  %v3681 = vunpack.c.l.b16 %v3593
  %v3682 = vunpack.c.l.b16 %v3594
  %v3683 = vunpack.c.l.b16 %v3595
  %v3684 = vunpack.c.l.b16 %v3596
  %v3685 = vunpack.c.l.b16 %v3597
  %v3686 = vunpack.c.l.b16 %v3598
  %v3687 = vunpack.c.l.b16 %v3599
  %v3688 = vunpack.c.l.b16 %v3600
  %v3689 = vunpack.c.l.b16 %v3601
  %v3690 = vpack.c.b16 %v3659, %v3658
  %v3691 = vpack.c.b16 %v3661, %v3660
  %v3692 = vpack.c.b16 %v3663, %v3662
  %v3693 = vpack.c.b16 %v3665, %v3664
  %v3694 = vpack.c.b16 %v3667, %v3666
  %v3695 = vpack.c.b16 %v3669, %v3668
  %v3696 = vpack.c.b16 %v3671, %v3670
  %v3697 = vpack.c.b16 %v3673, %v3672
  %v3698 = vpack.c.b16 %v3675, %v3674
  %v3699 = vpack.c.b16 %v3677, %v3676
  %v3700 = vpack.c.b16 %v3679, %v3678
  %v3701 = vpack.c.b16 %v3681, %v3680
  %v3702 = vpack.c.b16 %v3683, %v3682
  %v3703 = vpack.c.b16 %v3685, %v3684
  %v3704 = vpack.c.b16 %v3687, %v3686
  %v3705 = vpack.c.b16 %v3689, %v3688
  %3722 = vmatpush.bf16.msra.mxu0 %v3697
  %3723 = vmatpush.bf16.msra.mxu0 %v3696
  %3724 = vmatpush.bf16.msra.mxu0 %v3695
  %3725 = vmatpush.bf16.msra.mxu0 %v3694
  %3726 = vmatpush.bf16.msra.mxu0 %v3693
  %3727 = vmatpush.bf16.msra.mxu0 %v3692
  %3728 = vmatpush.bf16.msra.mxu0 %v3691
  %3729 = vmatpush.bf16.msra.mxu0 %v3690
  %3730 = vmatmul.bf16.gmra.mxu0 %v3618
  %v3731 = vpop.f32.mrf.mxu0
  %v3732 = vadd.f32 %v3604, %v3731
  %v3733 = vpop.f32.mrf.mxu0
  %v3734 = vadd.f32 %v3604, %v3733
  %3735 = vmatmul.bf16.gmra.mxu0 %v3620
  %v3736 = vpop.f32.mrf.mxu0
  %v3737 = vadd.f32 %v3604, %v3736
  %v3738 = vpop.f32.mrf.mxu0
  %v3739 = vadd.f32 %v3604, %v3738
  %3740 = vdwg.mxu0
  %3741 = vmatpush.bf16.msra.mxu0 %v3705
  %3742 = vmatpush.bf16.msra.mxu0 %v3704
  %3743 = vmatpush.bf16.msra.mxu0 %v3703
  %3744 = vmatpush.bf16.msra.mxu0 %v3702
  %3745 = vmatpush.bf16.msra.mxu0 %v3701
  %3746 = vmatpush.bf16.msra.mxu0 %v3700
  %3747 = vmatpush.bf16.msra.mxu0 %v3699
  %3748 = vmatpush.bf16.msra.mxu0 %v3698
  %3749 = vmatmul.bf16.gmra.mxu0 %v3619
  %v3750 = vpop.f32.mrf.mxu0
  %v3751 = vadd.f32 %v3732, %v3750
  %v3752 = vpop.f32.mrf.mxu0
  %v3753 = vadd.f32 %v3734, %v3752
  %3754 = vmatmul.bf16.gmra.mxu0 %v3621
  %v3755 = vpop.f32.mrf.mxu0
  %v3756 = vadd.f32 %v3737, %v3755
  %v3757 = vpop.f32.mrf.mxu0
  %v3758 = vadd.f32 %v3739, %v3757
  %3759 = vdwg.mxu0
  %v3760 = vmax.f32 %v3751, 0.0
  %v3761 = vmax.f32 %v3753, 0.0
  %v3762 = vmax.f32 %v3756, 0.0
  %v3763 = vmax.f32 %v3758, 0.0
  %v3764 = vpack.c.bf16 %v3760, %v3760
  %vm3765 = vcmask 257024
  %3766 = vst.msk [vmem:[#allocation3] sm:$0xf] %vm3765, %v3764
  %v3767 = vpack.c.bf16 %v3761, %v3761
  %3769 = vrot.lane.b32.xlu0 %v3767, 32
  %v3770 = vpop.permute.xlu0 %3769
  %vm3772 = vcmask 519424
  %3773 = vst.msk [vmem:[#allocation3] sm:$0xf] %vm3772, %v3770
  %v3774 = vpack.c.bf16 %v3762, %v3762
  %3776 = vrot.lane.b32.xlu0 %v3774, 64
  %v3777 = vpop.permute.xlu0 %3776
  %vm3779 = vcmask 781824
  %3780 = vst.msk [vmem:[#allocation3] sm:$0xf] %vm3779, %v3777
  %v3781 = vpack.c.bf16 %v3763, %v3763
  %3783 = vrot.lane.b32.xlu0 %v3781, 96
  %v3784 = vpop.permute.xlu0 %3783
  %vm3786 = vcmask 1044224
  %3787 = vst.msk [vmem:[#allocation3] sm:$0xf] %vm3786, %v3784
  %v3788 = vld [vmem:[#allocation3] sm:$0xf]
  %v3789 = vld [vmem:[%s5] sm:$0xff]
  %v3790 = vld [vmem:[%s5 + $0x8] sm:$0xff]
  %v3791 = vld [vmem:[%s5 + $0x10] sm:$0xff]
  %v3792 = vld [vmem:[%s5 + $0x18] sm:$0xff]
  %v3793 = vld [vmem:[%s5 + $0x20] sm:$0xff]
  %v3794 = vld [vmem:[%s5 + $0x28] sm:$0xff]
  %v3795 = vld [vmem:[%s5 + $0x30] sm:$0xff]
  %v3796 = vld [vmem:[%s5 + $0x38] sm:$0xff]
  %v3797 = vld [vmem:[%s5 + $0x40] sm:$0xff]
  %v3798 = vld [vmem:[%s5 + $0x48] sm:$0xff]
  %v3799 = vld [vmem:[%s5 + $0x50] sm:$0xff]
  %v3800 = vld [vmem:[%s5 + $0x58] sm:$0xff]
  %v3801 = vld [vmem:[%s5 + $0x60] sm:$0xff]
  %v3802 = vld [vmem:[%s5 + $0x68] sm:$0xff]
  %v3803 = vld [vmem:[%s5 + $0x70] sm:$0xff]
  %v3804 = vld [vmem:[%s5 + $0x78] sm:$0xff]
  %v3805 = vld [vmem:[%s6] sm:$0x3]
  %v3807 = vperm.slane %v3805, 0
  %v3808 = vperm.slane %v3805, 1
  %v3827 = vunpack.c.l.b16 %v3789
  %v3828 = vunpack.c.h.b16 %v3789
  %v3829 = vunpack.c.l.b16 %v3790
  %v3830 = vunpack.c.h.b16 %v3790
  %v3831 = vunpack.c.l.b16 %v3791
  %v3832 = vunpack.c.h.b16 %v3791
  %v3833 = vunpack.c.l.b16 %v3792
  %v3834 = vunpack.c.h.b16 %v3792
  %v3835 = vunpack.c.l.b16 %v3793
  %v3836 = vunpack.c.h.b16 %v3793
  %v3837 = vunpack.c.l.b16 %v3794
  %v3838 = vunpack.c.h.b16 %v3794
  %v3839 = vunpack.c.l.b16 %v3795
  %v3840 = vunpack.c.h.b16 %v3795
  %v3841 = vunpack.c.l.b16 %v3796
  %v3842 = vunpack.c.h.b16 %v3796
  %v3843 = vunpack.c.l.b16 %v3797
  %v3844 = vunpack.c.h.b16 %v3797
  %v3845 = vunpack.c.l.b16 %v3798
  %v3846 = vunpack.c.h.b16 %v3798
  %v3847 = vunpack.c.l.b16 %v3799
  %v3848 = vunpack.c.h.b16 %v3799
  %v3849 = vunpack.c.l.b16 %v3800
  %v3850 = vunpack.c.h.b16 %v3800
  %v3851 = vunpack.c.l.b16 %v3801
  %v3852 = vunpack.c.h.b16 %v3801
  %v3853 = vunpack.c.l.b16 %v3802
  %v3854 = vunpack.c.h.b16 %v3802
  %v3855 = vunpack.c.l.b16 %v3803
  %v3856 = vunpack.c.h.b16 %v3803
  %v3857 = vunpack.c.l.b16 %v3804
  %v3858 = vunpack.c.h.b16 %v3804
  %v3859 = vpack.c.b16 %v3829, %v3827
  %v3860 = vpack.c.b16 %v3830, %v3828
  %v3861 = vpack.c.b16 %v3833, %v3831
  %v3862 = vpack.c.b16 %v3834, %v3832
  %v3863 = vpack.c.b16 %v3837, %v3835
  %v3864 = vpack.c.b16 %v3838, %v3836
  %v3865 = vpack.c.b16 %v3841, %v3839
  %v3866 = vpack.c.b16 %v3842, %v3840
  %v3867 = vpack.c.b16 %v3845, %v3843
  %v3868 = vpack.c.b16 %v3846, %v3844
  %v3869 = vpack.c.b16 %v3849, %v3847
  %v3870 = vpack.c.b16 %v3850, %v3848
  %v3871 = vpack.c.b16 %v3853, %v3851
  %v3872 = vpack.c.b16 %v3854, %v3852
  %v3873 = vpack.c.b16 %v3857, %v3855
  %v3874 = vpack.c.b16 %v3858, %v3856
  %3891 = vmatpush.bf16.msra.mxu0 %v3873
  %3892 = vmatpush.bf16.msra.mxu0 %v3871
  %3893 = vmatpush.bf16.msra.mxu0 %v3869
  %3894 = vmatpush.bf16.msra.mxu0 %v3867
  %3895 = vmatpush.bf16.msra.mxu0 %v3865
  %3896 = vmatpush.bf16.msra.mxu0 %v3863
  %3897 = vmatpush.bf16.msra.mxu0 %v3861
  %3898 = vmatpush.bf16.msra.mxu0 %v3859
  %3899 = vmatmul.bf16.gmra.mxu0 %v3788
  %v3900 = vpop.f32.mrf.mxu0
  %v3901 = vadd.f32 %v3807, %v3900
  %v3902 = vpop.f32.mrf.mxu0
  %3903 = vdwg.mxu0
  %3904 = vmatpush.bf16.msra.mxu0 %v3874
  %3905 = vmatpush.bf16.msra.mxu0 %v3872
  %3906 = vmatpush.bf16.msra.mxu0 %v3870
  %3907 = vmatpush.bf16.msra.mxu0 %v3868
  %3908 = vmatpush.bf16.msra.mxu0 %v3866
  %3909 = vmatpush.bf16.msra.mxu0 %v3864
  %3910 = vmatpush.bf16.msra.mxu0 %v3862
  %3911 = vmatpush.bf16.msra.mxu0 %v3860
  %3912 = vmatmul.bf16.gmra.mxu0 %v3788
  %v3913 = vpop.f32.mrf.mxu0
  %v3914 = vadd.f32 %v3808, %v3913
  %v3915 = vpop.f32.mrf.mxu0
  %3916 = vdwg.mxu0
  %v3917 = vmax.f32 %v3901, 0.0
  %v3918 = vmax.f32 %v3914, 0.0
  %v3919 = vpack.c.bf16 %v3917, %v3917
  %v3920 = vpack.c.bf16 %v3918, %v3918
  %v3921 = vld [vmem:[%s7] sm:$0xff]
  %v3922 = vld [vmem:[%s7 + $0x8] sm:$0xff]
  %v3923 = vld [vmem:[%s7 + $0x10] sm:$0xff]
  %v3924 = vld [vmem:[%s7 + $0x18] sm:$0xff]
  %v3925 = vld [vmem:[%s7 + $0x20] sm:$0xff]
  %v3926 = vld [vmem:[%s7 + $0x28] sm:$0xff]
  %v3927 = vld [vmem:[%s7 + $0x30] sm:$0xff]
  %v3928 = vld [vmem:[%s7 + $0x38] sm:$0xff]
  %v3929 = vld [vmem:[%s7 + $0x40] sm:$0xff]
  %v3930 = vld [vmem:[%s7 + $0x48] sm:$0xff]
  %v3931 = vld [vmem:[%s7 + $0x50] sm:$0xff]
  %v3932 = vld [vmem:[%s7 + $0x58] sm:$0xff]
  %v3933 = vld [vmem:[%s7 + $0x60] sm:$0xff]
  %v3934 = vld [vmem:[%s7 + $0x68] sm:$0xff]
  %v3935 = vld [vmem:[%s7 + $0x70] sm:$0xff]
  %v3936 = vld [vmem:[%s7 + $0x78] sm:$0xff]
  %v3937 = vld [vmem:[%s7 + $0x80] sm:$0xff]
  %v3938 = vld [vmem:[%s7 + $0x88] sm:$0xff]
  %v3939 = vld [vmem:[%s7 + $0x90] sm:$0xff]
  %v3940 = vld [vmem:[%s7 + $0x98] sm:$0xff]
  %v3941 = vld [vmem:[%s7 + $0xa0] sm:$0xff]
  %v3942 = vld [vmem:[%s7 + $0xa8] sm:$0xff]
  %v3943 = vld [vmem:[%s7 + $0xb0] sm:$0xff]
  %v3944 = vld [vmem:[%s7 + $0xb8] sm:$0xff]
  %v3945 = vld [vmem:[%s7 + $0xc0] sm:$0xff]
  %v3946 = vld [vmem:[%s7 + $0xc8] sm:$0xff]
  %v3947 = vld [vmem:[%s7 + $0xd0] sm:$0xff]
  %v3948 = vld [vmem:[%s7 + $0xd8] sm:$0xff]
  %v3949 = vld [vmem:[%s7 + $0xe0] sm:$0xff]
  %v3950 = vld [vmem:[%s7 + $0xe8] sm:$0xff]
  %v3951 = vld [vmem:[%s7 + $0xf0] sm:$0xff]
  %v3952 = vld [vmem:[%s7 + $0xf8] sm:$0xff]
  %v3953 = vld [vmem:[%s8] sm:$0x3]
  %v3955 = vperm.slane %v3953, 0
  %v3956 = vperm.slane %v3953, 1
  %v3991 = vunpack.c.l.b16 %v3921
  %v3992 = vunpack.c.h.b16 %v3921
  %v3993 = vunpack.c.l.b16 %v3922
  %v3994 = vunpack.c.h.b16 %v3922
  %v3995 = vunpack.c.l.b16 %v3923
  %v3996 = vunpack.c.h.b16 %v3923
  %v3997 = vunpack.c.l.b16 %v3924
  %v3998 = vunpack.c.h.b16 %v3924
  %v3999 = vunpack.c.l.b16 %v3925
  %v4000 = vunpack.c.h.b16 %v3925
  %v4001 = vunpack.c.l.b16 %v3926
  %v4002 = vunpack.c.h.b16 %v3926
  %v4003 = vunpack.c.l.b16 %v3927
  %v4004 = vunpack.c.h.b16 %v3927
  %v4005 = vunpack.c.l.b16 %v3928
  %v4006 = vunpack.c.h.b16 %v3928
  %v4007 = vunpack.c.l.b16 %v3929
  %v4008 = vunpack.c.h.b16 %v3929
  %v4009 = vunpack.c.l.b16 %v3930
  %v4010 = vunpack.c.h.b16 %v3930
  %v4011 = vunpack.c.l.b16 %v3931
  %v4012 = vunpack.c.h.b16 %v3931
  %v4013 = vunpack.c.l.b16 %v3932
  %v4014 = vunpack.c.h.b16 %v3932
  %v4015 = vunpack.c.l.b16 %v3933
  %v4016 = vunpack.c.h.b16 %v3933
  %v4017 = vunpack.c.l.b16 %v3934
  %v4018 = vunpack.c.h.b16 %v3934
  %v4019 = vunpack.c.l.b16 %v3935
  %v4020 = vunpack.c.h.b16 %v3935
  %v4021 = vunpack.c.l.b16 %v3936
  %v4022 = vunpack.c.h.b16 %v3936
  %v4023 = vunpack.c.l.b16 %v3937
  %v4024 = vunpack.c.h.b16 %v3937
  %v4025 = vunpack.c.l.b16 %v3938
  %v4026 = vunpack.c.h.b16 %v3938
  %v4027 = vunpack.c.l.b16 %v3939
  %v4028 = vunpack.c.h.b16 %v3939
  %v4029 = vunpack.c.l.b16 %v3940
  %v4030 = vunpack.c.h.b16 %v3940
  %v4031 = vunpack.c.l.b16 %v3941
  %v4032 = vunpack.c.h.b16 %v3941
  %v4033 = vunpack.c.l.b16 %v3942
  %v4034 = vunpack.c.h.b16 %v3942
  %v4035 = vunpack.c.l.b16 %v3943
  %v4036 = vunpack.c.h.b16 %v3943
  %v4037 = vunpack.c.l.b16 %v3944
  %v4038 = vunpack.c.h.b16 %v3944
  %v4039 = vunpack.c.l.b16 %v3945
  %v4040 = vunpack.c.h.b16 %v3945
  %v4041 = vunpack.c.l.b16 %v3946
  %v4042 = vunpack.c.h.b16 %v3946
  %v4043 = vunpack.c.l.b16 %v3947
  %v4044 = vunpack.c.h.b16 %v3947
  %v4045 = vunpack.c.l.b16 %v3948
  %v4046 = vunpack.c.h.b16 %v3948
  %v4047 = vunpack.c.l.b16 %v3949
  %v4048 = vunpack.c.h.b16 %v3949
  %v4049 = vunpack.c.l.b16 %v3950
  %v4050 = vunpack.c.h.b16 %v3950
  %v4051 = vunpack.c.l.b16 %v3951
  %v4052 = vunpack.c.h.b16 %v3951
  %v4053 = vunpack.c.l.b16 %v3952
  %v4054 = vunpack.c.h.b16 %v3952
  %v4055 = vpack.c.b16 %v3993, %v3991
  %v4056 = vpack.c.b16 %v3994, %v3992
  %v4057 = vpack.c.b16 %v3997, %v3995
  %v4058 = vpack.c.b16 %v3998, %v3996
  %v4059 = vpack.c.b16 %v4001, %v3999
  %v4060 = vpack.c.b16 %v4002, %v4000
  %v4061 = vpack.c.b16 %v4005, %v4003
  %v4062 = vpack.c.b16 %v4006, %v4004
  %v4063 = vpack.c.b16 %v4009, %v4007
  %v4064 = vpack.c.b16 %v4010, %v4008
  %v4065 = vpack.c.b16 %v4013, %v4011
  %v4066 = vpack.c.b16 %v4014, %v4012
  %v4067 = vpack.c.b16 %v4017, %v4015
  %v4068 = vpack.c.b16 %v4018, %v4016
  %v4069 = vpack.c.b16 %v4021, %v4019
  %v4070 = vpack.c.b16 %v4022, %v4020
  %v4071 = vpack.c.b16 %v4025, %v4023
  %v4072 = vpack.c.b16 %v4026, %v4024
  %v4073 = vpack.c.b16 %v4029, %v4027
  %v4074 = vpack.c.b16 %v4030, %v4028
  %v4075 = vpack.c.b16 %v4033, %v4031
  %v4076 = vpack.c.b16 %v4034, %v4032
  %v4077 = vpack.c.b16 %v4037, %v4035
  %v4078 = vpack.c.b16 %v4038, %v4036
  %v4079 = vpack.c.b16 %v4041, %v4039
  %v4080 = vpack.c.b16 %v4042, %v4040
  %v4081 = vpack.c.b16 %v4045, %v4043
  %v4082 = vpack.c.b16 %v4046, %v4044
  %v4083 = vpack.c.b16 %v4049, %v4047
  %v4084 = vpack.c.b16 %v4050, %v4048
  %v4085 = vpack.c.b16 %v4053, %v4051
  %v4086 = vpack.c.b16 %v4054, %v4052
  %4119 = vmatpush.bf16.msra.mxu0 %v4069
  %4120 = vmatpush.bf16.msra.mxu0 %v4067
  %4121 = vmatpush.bf16.msra.mxu0 %v4065
  %4122 = vmatpush.bf16.msra.mxu0 %v4063
  %4123 = vmatpush.bf16.msra.mxu0 %v4061
  %4124 = vmatpush.bf16.msra.mxu0 %v4059
  %4125 = vmatpush.bf16.msra.mxu0 %v4057
  %4126 = vmatpush.bf16.msra.mxu0 %v4055
  %4127 = vmatmul.bf16.gmra.mxu0 %v3919
  %v4128 = vpop.f32.mrf.mxu0
  %v4129 = vadd.f32 %v3955, %v4128
  %v4130 = vpop.f32.mrf.mxu0
  %4131 = vdwg.mxu0
  %4132 = vmatpush.bf16.msra.mxu0 %v4085
  %4133 = vmatpush.bf16.msra.mxu0 %v4083
  %4134 = vmatpush.bf16.msra.mxu0 %v4081
  %4135 = vmatpush.bf16.msra.mxu0 %v4079
  %4136 = vmatpush.bf16.msra.mxu0 %v4077
  %4137 = vmatpush.bf16.msra.mxu0 %v4075
  %4138 = vmatpush.bf16.msra.mxu0 %v4073
  %4139 = vmatpush.bf16.msra.mxu0 %v4071
  %4140 = vmatmul.bf16.gmra.mxu0 %v3920
  %v4141 = vpop.f32.mrf.mxu0
  %v4142 = vadd.f32 %v4129, %v4141
  %v4143 = vpop.f32.mrf.mxu0
  %4144 = vdwg.mxu0
  %4145 = vmatpush.bf16.msra.mxu0 %v4070
  %4146 = vmatpush.bf16.msra.mxu0 %v4068
  %4147 = vmatpush.bf16.msra.mxu0 %v4066
  %4148 = vmatpush.bf16.msra.mxu0 %v4064
  %4149 = vmatpush.bf16.msra.mxu0 %v4062
  %4150 = vmatpush.bf16.msra.mxu0 %v4060
  %4151 = vmatpush.bf16.msra.mxu0 %v4058
  %4152 = vmatpush.bf16.msra.mxu0 %v4056
  %4153 = vmatmul.bf16.gmra.mxu0 %v3919
  %v4154 = vpop.f32.mrf.mxu0
  %v4155 = vadd.f32 %v3956, %v4154
  %v4156 = vpop.f32.mrf.mxu0
  %4157 = vdwg.mxu0
  %4158 = vmatpush.bf16.msra.mxu0 %v4086
  %4159 = vmatpush.bf16.msra.mxu0 %v4084
  %4160 = vmatpush.bf16.msra.mxu0 %v4082
  %4161 = vmatpush.bf16.msra.mxu0 %v4080
  %4162 = vmatpush.bf16.msra.mxu0 %v4078
  %4163 = vmatpush.bf16.msra.mxu0 %v4076
  %4164 = vmatpush.bf16.msra.mxu0 %v4074
  %4165 = vmatpush.bf16.msra.mxu0 %v4072
  %4166 = vmatmul.bf16.gmra.mxu0 %v3920
  %v4167 = vpop.f32.mrf.mxu0
  %v4168 = vadd.f32 %v4155, %v4167
  %v4169 = vpop.f32.mrf.mxu0
  %4170 = vdwg.mxu0
  %v4171 = vmax.f32 %v4142, 0.0
  %v4172 = vmax.f32 %v4168, 0.0
  %v4173 = vpack.c.bf16 %v4171, %v4171
  %v4174 = vpack.c.bf16 %v4172, %v4172
  %v4175 = vld [vmem:[%s9] sm:$0xf]
  %v4176 = vld [vmem:[%s9 + $0x4] sm:$0xf]
  %v4177 = vld [vmem:[%s9 + $0x8] sm:$0xf]
  %v4178 = vld [vmem:[%s9 + $0xc] sm:$0xf]
  %v4179 = vld [vmem:[%s9 + $0x10] sm:$0xf]
  %v4180 = vld [vmem:[%s9 + $0x14] sm:$0xf]
  %v4181 = vld [vmem:[%s9 + $0x18] sm:$0xf]
  %v4182 = vld [vmem:[%s9 + $0x1c] sm:$0xf]
  %v4183 = vld [vmem:[%s9 + $0x20] sm:$0xf]
  %v4184 = vld [vmem:[%s9 + $0x24] sm:$0xf]
  %v4185 = vld [vmem:[%s9 + $0x28] sm:$0xf]
  %v4186 = vld [vmem:[%s9 + $0x2c] sm:$0xf]
  %v4187 = vld [vmem:[%s9 + $0x30] sm:$0xf]
  %v4188 = vld [vmem:[%s9 + $0x34] sm:$0xf]
  %v4189 = vld [vmem:[%s9 + $0x38] sm:$0xf]
  %v4190 = vld [vmem:[%s9 + $0x3c] sm:$0xf]
  %v4191 = vld [vmem:[%s9 + $0x40] sm:$0xf]
  %v4192 = vld [vmem:[%s9 + $0x44] sm:$0xf]
  %v4193 = vld [vmem:[%s9 + $0x48] sm:$0xf]
  %v4194 = vld [vmem:[%s9 + $0x4c] sm:$0xf]
  %v4195 = vld [vmem:[%s9 + $0x50] sm:$0xf]
  %v4196 = vld [vmem:[%s9 + $0x54] sm:$0xf]
  %v4197 = vld [vmem:[%s9 + $0x58] sm:$0xf]
  %v4198 = vld [vmem:[%s9 + $0x5c] sm:$0xf]
  %v4199 = vld [vmem:[%s9 + $0x60] sm:$0xf]
  %v4200 = vld [vmem:[%s9 + $0x64] sm:$0xf]
  %v4201 = vld [vmem:[%s9 + $0x68] sm:$0xf]
  %v4202 = vld [vmem:[%s9 + $0x6c] sm:$0xf]
  %v4203 = vld [vmem:[%s9 + $0x70] sm:$0xf]
  %v4204 = vld [vmem:[%s9 + $0x74] sm:$0xf]
  %v4205 = vld [vmem:[%s9 + $0x78] sm:$0xf]
  %v4206 = vld [vmem:[%s9 + $0x7c] sm:$0xf]
  %v4207 = vld [vmem:[%s10] sm:$0x1]
  %v4209 = vperm.slane %v4207, 0
  %v4243 = vunpack.c.l.b16 %v4175
  %v4244 = vunpack.c.l.b16 %v4176
  %v4245 = vunpack.c.l.b16 %v4177
  %v4246 = vunpack.c.l.b16 %v4178
  %v4247 = vunpack.c.l.b16 %v4179
  %v4248 = vunpack.c.l.b16 %v4180
  %v4249 = vunpack.c.l.b16 %v4181
  %v4250 = vunpack.c.l.b16 %v4182
  %v4251 = vunpack.c.l.b16 %v4183
  %v4252 = vunpack.c.l.b16 %v4184
  %v4253 = vunpack.c.l.b16 %v4185
  %v4254 = vunpack.c.l.b16 %v4186
  %v4255 = vunpack.c.l.b16 %v4187
  %v4256 = vunpack.c.l.b16 %v4188
  %v4257 = vunpack.c.l.b16 %v4189
  %v4258 = vunpack.c.l.b16 %v4190
  %v4259 = vunpack.c.l.b16 %v4191
  %v4260 = vunpack.c.l.b16 %v4192
  %v4261 = vunpack.c.l.b16 %v4193
  %v4262 = vunpack.c.l.b16 %v4194
  %v4263 = vunpack.c.l.b16 %v4195
  %v4264 = vunpack.c.l.b16 %v4196
  %v4265 = vunpack.c.l.b16 %v4197
  %v4266 = vunpack.c.l.b16 %v4198
  %v4267 = vunpack.c.l.b16 %v4199
  %v4268 = vunpack.c.l.b16 %v4200
  %v4269 = vunpack.c.l.b16 %v4201
  %v4270 = vunpack.c.l.b16 %v4202
  %v4271 = vunpack.c.l.b16 %v4203
  %v4272 = vunpack.c.l.b16 %v4204
  %v4273 = vunpack.c.l.b16 %v4205
  %v4274 = vunpack.c.l.b16 %v4206
  %v4275 = vpack.c.b16 %v4244, %v4243
  %v4276 = vpack.c.b16 %v4246, %v4245
  %v4277 = vpack.c.b16 %v4248, %v4247
  %v4278 = vpack.c.b16 %v4250, %v4249
  %v4279 = vpack.c.b16 %v4252, %v4251
  %v4280 = vpack.c.b16 %v4254, %v4253
  %v4281 = vpack.c.b16 %v4256, %v4255
  %v4282 = vpack.c.b16 %v4258, %v4257
  %v4283 = vpack.c.b16 %v4260, %v4259
  %v4284 = vpack.c.b16 %v4262, %v4261
  %v4285 = vpack.c.b16 %v4264, %v4263
  %v4286 = vpack.c.b16 %v4266, %v4265
  %v4287 = vpack.c.b16 %v4268, %v4267
  %v4288 = vpack.c.b16 %v4270, %v4269
  %v4289 = vpack.c.b16 %v4272, %v4271
  %v4290 = vpack.c.b16 %v4274, %v4273
  %4307 = vmatpush.bf16.msra.mxu0 %v4282
  %4308 = vmatpush.bf16.msra.mxu0 %v4281
  %4309 = vmatpush.bf16.msra.mxu0 %v4280
  %4310 = vmatpush.bf16.msra.mxu0 %v4279
  %4311 = vmatpush.bf16.msra.mxu0 %v4278
  %4312 = vmatpush.bf16.msra.mxu0 %v4277
  %4313 = vmatpush.bf16.msra.mxu0 %v4276
  %4314 = vmatpush.bf16.msra.mxu0 %v4275
  %4315 = vmatmul.bf16.gmra.mxu0 %v4173
  %v4316 = vpop.f32.mrf.mxu0
  %v4317 = vadd.f32 %v4209, %v4316
  %v4318 = vpop.f32.mrf.mxu0
  %4319 = vdwg.mxu0
  %4320 = vmatpush.bf16.msra.mxu0 %v4290
  %4321 = vmatpush.bf16.msra.mxu0 %v4289
  %4322 = vmatpush.bf16.msra.mxu0 %v4288
  %4323 = vmatpush.bf16.msra.mxu0 %v4287
  %4324 = vmatpush.bf16.msra.mxu0 %v4286
  %4325 = vmatpush.bf16.msra.mxu0 %v4285
  %4326 = vmatpush.bf16.msra.mxu0 %v4284
  %4327 = vmatpush.bf16.msra.mxu0 %v4283
  %4328 = vmatmul.bf16.gmra.mxu0 %v4174
  %v4329 = vpop.f32.mrf.mxu0
  %v4330 = vadd.f32 %v4317, %v4329
  %v4331 = vpop.f32.mrf.mxu0
  %4332 = vdwg.mxu0
  %v4333 = vtanh.pop %v4330
  %v4334 = vadd.f32 %v4333, 1.0
  %v4335 = vmul.f32 %v4334, 3.5
  %v4336 = vadd.f32 %v4335, -5.0
  %v4337 = vlaneseq
  %v4338 = vand.u32 %v4337, 127
  %vm4339 = vcmp.ge.s32.totalorder %v4338, 3
  %vm4340 = vcmp.lt.s32.totalorder %v4338, 6
  %vm4341 = vmand %vm4339, %vm4340
  %v4342 = vsel %vm4341, %v4336, %v4330
  %4343 = vst [vmem:[%s11] sm:$0xff] %v4342
  // Predicated region
  $region46: #{cnn_actor_forward.1} parent=0 // pred_check
    _
  $region47: #{cnn_actor_forward.1} parent=0 // pred_check_branch
    %4345 = sbr.rel (0) target = $region49
  $region48: #{cnn_actor_forward.1} parent=0 // pred_region
    _
  $region49: #{cnn_actor_forward.1} parent=0 // pred_fallthru
    _
  // Predicated region
  $region50: #{cnn_actor_forward.1} parent=0 // pred_check
    _
  $region51: #{cnn_actor_forward.1} parent=0 // pred_check_branch
    %4347 = sbr.rel (0) target = $region53
  $region52: #{cnn_actor_forward.1} parent=0 // pred_region
    _
  $region53: #{cnn_actor_forward.1} parent=0 // pred_fallthru
    _

</llo_original>
